<compile_context>
chip_gen: v5e
topology: v5e:2x2
jax: 0.10.0
libtpu: 0.0.40
codegen_flags: <defaults>
</compile_context>

<pallas_src>
import functools
import math

import jax
import jax.numpy as jnp
from jax.experimental import pallas as pl
from jax.experimental.pallas import tpu as pltpu


# ----------------------------------------------------------------------------
# In-kernel math helpers (VPU/EUP-friendly, no exotic primitives)
# ----------------------------------------------------------------------------
_SQRT_HALF = 0.7071067811865476


def _erf_f32(x):
    # XLA's float32 erf rational approximation (mul/add/div/clip only), so exact
    # erf-based GELU can live inside the kernel without relying on an erf lowering.
    alpha = (0.00022905065861350646, 0.0034082910107109506, 0.050955695062380861,
             0.18520832239976145, 1.128379143519084)
    beta = (-1.1791602954361697e-7, 2.3547966471313185e-5, 0.0010179625278914885,
            0.014070470171167667, 0.11098505178285362, 0.49746925110067538, 1.0)
    x = jnp.clip(x, -3.832506856900711, 3.832506856900711)
    x2 = x * x
    p = alpha[0]
    for c in alpha[1:]:
        p = p * x2 + c
    q = beta[0]
    for c in beta[1:]:
        q = q * x2 + c
    return x * p / q


def _gelu_exact(x):
    # matches torch.nn.functional.gelu (default, erf-based)
    return 0.5 * x * (1.0 + _erf_f32(x * _SQRT_HALF))


# ----------------------------------------------------------------------------
# Pallas kernels (all single grid step; whole operands in VMEM)
# ----------------------------------------------------------------------------
def _matmul_kernel(x_ref, w_ref, o_ref):
    o_ref[...] = jnp.dot(x_ref[...], w_ref[...],
                         preferred_element_type=jnp.float32).astype(o_ref.dtype)


def fused_linear(x, w):
    """[..., K] @ [K, N] on the MXU as a single grid step (embeddings)."""
    lead = x.shape[:-1]
    K = x.shape[-1]
    N = w.shape[1]
    x2 = x.reshape(-1, K)
    out = pl.pallas_call(
        _matmul_kernel,
        out_shape=jax.ShapeDtypeStruct((x2.shape[0], N), jnp.float32),
    )(x2, w)
    return out.reshape(lead + (N,))


def _qkv_corr_kernel(x_ref, ctx_ref, wq_ref, bq_ref, wk_ref, bk_ref,
                     wv_ref, bv_ref, kvmask_ref, rq_ref, rk_ref, mt_ref,
                     v_ref, mv_ref, *, batch, qlen):
    """Flattened-batch Q/K/V projections + in-VMEM delay histogram.

    mean_value[b, tau] = (1/D) * sum_{t,s,d} [(t-s) mod L == tau] Q[t,d] K[s,d]
    (algebraically identical to the mean over heads*channels of
    irfft(rfft(q) * conj(rfft(k)))), computed per batch with two constant
    row-selector matmuls + one constant diagonal-sum matmul so the Gram matrix
    is never flattened/reshaped and nothing but V and mean_value leaves VMEM.
    """
    d_model = wq_ref.shape[0]
    x = x_ref[...]
    ctx = ctx_ref[...]
    q_all = jnp.dot(x, wq_ref[...], preferred_element_type=jnp.float32) + bq_ref[...]
    mask = kvmask_ref[...]              # zero rows when keys/values were zero-padded
    k_all = (jnp.dot(ctx, wk_ref[...], preferred_element_type=jnp.float32)
             + bk_ref[...]) * mask
    v_all = (jnp.dot(ctx, wv_ref[...], preferred_element_type=jnp.float32)
             + bv_ref[...]) * mask
    v_ref[...] = v_all.astype(v_ref.dtype)
    # TODO(synk): a single fused [D, 3D] QKV weight would save 1 MXU push per
    # call but needs 32-lane-offset slices; kept as 3 matmuls for safe lowering.
    inv_d = 1.0 / d_model
    for b in range(batch):              # B is tiny & static -> unrolled
        lo, hi = b * qlen, (b + 1) * qlen
        qb = q_all[lo:hi, :]
        kb = k_all[lo:hi, :]
        qk = jnp.dot(rq_ref[...], qb, preferred_element_type=jnp.float32)  # [L*L, D]
        kk = jnp.dot(rk_ref[...], kb, preferred_element_type=jnp.float32)  # [L*L, D]
        m1 = jnp.dot(mt_ref[...], qk * kk, preferred_element_type=jnp.float32)  # [L, D]
        mv_ref[lo:hi, :] = jnp.sum(m1, axis=-1, keepdims=True) * inv_d


def _agg_block_kernel(delay_ref, wgt_ref, v_ref, x_ref, wo_ref, bo_ref, a_ref,
                      *rest, batch, qlen, top_k, with_ffn, emit_trend, with_norm):
    """Delay aggregation + out-projection + residual + series_decomp,
    optionally fused with the FFN block (+decomp) and my_Layernorm.

    delays/weights live in SMEM; the per-batch combination matrix
    C[t, s] = sum_i w_i * [s == (t + delay_i) mod L] is built in VMEM from
    iota compares (never materialized in HBM) and applied as one MXU matmul.
    """
    idx = 0
    if with_ffn:
        w1_ref, w2_ref = rest[0], rest[1]
        idx = 2
    if with_norm:
        lnw_ref, lnb_ref = rest[idx], rest[idx + 1]
        idx += 2
    out_ref = rest[idx]

    it = jax.lax.broadcasted_iota(jnp.int32, (qlen, qlen), 0)   # t index
    isx = jax.lax.broadcasted_iota(jnp.int32, (qlen, qlen), 1)  # s index
    diff = isx - it                                             # s - t in (-L, L)

    v_all = v_ref[...].astype(jnp.float32)
    x_all = x_ref[...].astype(jnp.float32)
    a_mat = a_ref[...]

    for b in range(batch):
        lo, hi = b * qlen, (b + 1) * qlen
        comb = jnp.zeros((qlen, qlen), jnp.float32)
        for i in range(top_k):                       # top_k <= 3, unrolled
            d_i = delay_ref[b, i]                    # SMEM scalar (int32)
            w_i = wgt_ref[b, i]                      # SMEM scalar (f32)
            comb = comb + jnp.where((diff == d_i) | (diff == d_i - qlen), w_i, 0.0)
        agg = jnp.dot(comb, v_all[lo:hi, :], preferred_element_type=jnp.float32)
        o = jnp.dot(agg, wo_ref[...], preferred_element_type=jnp.float32) + bo_ref[...]
        s = x_all[lo:hi, :] + o
        t = jnp.dot(a_mat, s, preferred_element_type=jnp.float32)
        seas = s - t
        trend = t
        if with_ffn:
            h = _gelu_exact(jnp.dot(seas, w1_ref[...],
                                    preferred_element_type=jnp.float32))
            y = seas + jnp.dot(h, w2_ref[...], preferred_element_type=jnp.float32)
            t2 = jnp.dot(a_mat, y, preferred_element_type=jnp.float32)
            seas = y - t2
            trend = trend + t2
        if with_norm:
            # my_Layernorm: LayerNorm over channels, then subtract its mean over time
            mu = jnp.mean(seas, axis=-1, keepdims=True)
            var = jnp.mean(jnp.square(seas - mu), axis=-1, keepdims=True)
            xh = (seas - mu) * jax.lax.rsqrt(var + 1e-5)
            xh = xh * lnw_ref[...] + lnb_ref[...]
            seas = xh - jnp.mean(xh, axis=0, keepdims=True)
        if emit_trend:
            # single output slab (one DMA stream) holding seasonal and trend.
            # TODO(synk): packing them lane-adjacent ([L, 2D]) would double store
            # lane density but needs unaligned lane-offset stores; skipped for
            # safe lowering.
            out_ref[0, lo:hi, :] = seas.astype(out_ref.dtype)
            out_ref[1, lo:hi, :] = trend.astype(out_ref.dtype)
        else:
            out_ref[lo:hi, :] = seas.astype(out_ref.dtype)


# ----------------------------------------------------------------------------
# Kernel wrappers
# ----------------------------------------------------------------------------
def corr_selectors(L):
    """Trace-time constant selector matrices for the in-kernel delay histogram."""
    r = jnp.arange(L * L)
    t = r // L
    s = r % L
    cols = jnp.arange(L)
    rq = (t[:, None] == cols[None, :]).astype(jnp.float32)            # [L*L, L]
    rk = (s[:, None] == cols[None, :]).astype(jnp.float32)            # [L*L, L]
    mt = (cols[:, None] == ((t - s) % L)[None, :]).astype(jnp.float32)  # [L, L*L]
    return rq, rk, mt


def attn_corr(x, ctx, p):
    """AutoCorrelationLayer projections + delay histogram (Pallas K1).
    Inference-mode AutoCorrelation is head-count independent (delays come from
    the mean over heads*channels and are applied identically to every head),
    so heads stay flattened inside d_model."""
    B, L, D = x.shape
    S = ctx.shape[1]
    if S >= L:
        ctx_adj = ctx[:, :L]                           # torch truncates K/V to L
        mask = jnp.ones((B * L, 1), jnp.float32)
    else:
        # torch zero-pads the *projected* K/V up to L; pad ctx and mask out the
        # bias contribution on the pad rows inside the kernel (exact).
        ctx_adj = jnp.concatenate([ctx, jnp.zeros((B, L - S, D), ctx.dtype)], axis=1)
        mask = jnp.tile((jnp.arange(L) < S).astype(jnp.float32), (B,))[:, None]
    rq, rk, mt = corr_selectors(L)
    kern = functools.partial(_qkv_corr_kernel, batch=B, qlen=L)
    v, mv = pl.pallas_call(
        kern,
        out_shape=(jax.ShapeDtypeStruct((B * L, D), jnp.float32),
                   jax.ShapeDtypeStruct((B * L, 1), jnp.float32)),
    )(x.reshape(B * L, D), ctx_adj.reshape(B * L, D),
      p["wq"], p["bq"].reshape(1, D), p["wk"], p["bk"].reshape(1, D),
      p["wv"], p["bv"].reshape(1, D), mask, rq, rk, mt)
    return v, mv.reshape(B, L)


def topk_delays(mv, factor):
    """time_delay_agg_inference delay selection (data-dependent sort -> XLA)."""
    _, L = mv.shape
    k = max(1, int(factor * math.log(L)))
    w, delay = jax.lax.top_k(mv, k)
    return delay.astype(jnp.int32), jax.nn.softmax(w, axis=-1)


def agg_block(delay, wgt, v, x, wo, bo, A, w1=None, w2=None, ln=None,
              emit_trend=False):
    """Pallas K2: aggregation + projection + residual + decomp (+FFN) (+norm)."""
    B, L, D = x.shape
    with_ffn = w1 is not None
    with_norm = ln is not None
    inputs = [delay, wgt, v, x.reshape(B * L, D), wo, bo.reshape(1, D), A]
    if with_ffn:
        inputs += [w1, w2]
    if with_norm:
        inputs += [ln[0].reshape(1, D), ln[1].reshape(1, D)]
    if emit_trend:
        out_shape = jax.ShapeDtypeStruct((2, B * L, D), jnp.float32)
    else:
        out_shape = jax.ShapeDtypeStruct((B * L, D), jnp.float32)
    kern = functools.partial(
        _agg_block_kernel, batch=B, qlen=L, top_k=int(delay.shape[1]),
        with_ffn=with_ffn, emit_trend=emit_trend, with_norm=with_norm)
    smem = pl.BlockSpec(memory_space=pltpu.MemorySpace.SMEM)
    vmem = pl.BlockSpec(memory_space=pltpu.MemorySpace.VMEM)
    out = pl.pallas_call(
        kern,
        out_shape=out_shape,
        in_specs=[smem, smem] + [vmem] * (len(inputs) - 2),
        out_specs=vmem,
    )(*inputs)
    if emit_trend:
        return out[0].reshape(B, L, D), out[1].reshape(B, L, D)
    return out.reshape(B, L, D)


# ----------------------------------------------------------------------------
# XLA-side glue (constants, N=1 projections)
# ----------------------------------------------------------------------------
def moving_avg_matrix(L, kernel_size):
    """Banded [L, L] matrix folding AvgPool1d + replicate padding:
    trend[l] = (1/k) * sum_j x[clip(l - pad + j, 0, L-1)]."""
    pad = (kernel_size - 1) // 2
    idx = jnp.clip(jnp.arange(L)[:, None] - pad + jnp.arange(kernel_size)[None, :],
                   0, L - 1)                                            # [L, k]
    return jnp.sum(jax.nn.one_hot(idx, L, dtype=jnp.float32), axis=1) / kernel_size


def series_decomp_jnp(x, A):
    # C=1 raw-series decomp: 1-lane output, kept in XLA (fuses with neighbors).
    trend = jnp.einsum('lm,bmc->blc', A, x)
    return x - trend, trend


def circular_conv1d_k3_jnp(x, w_flat):
    """Conv1d(k=3, padding=1, circular, bias=False), channels-last, c_out=1:
    kept in plain JAX (a 1-of-128-lane Pallas store is pure launch overhead)."""
    x3 = jnp.concatenate([jnp.roll(x, 1, axis=1), x, jnp.roll(x, -1, axis=1)], axis=-1)
    return jnp.einsum('blk,kc->blc', x3, w_flat)


# ----------------------------------------------------------------------------
# Model building blocks
# ----------------------------------------------------------------------------
def data_embedding(x, x_mark, p):
    """DataEmbedding_wo_pos: TokenEmbedding (circular conv-3) + TimeFeatureEmbedding,
    fused into one Pallas matmul on [roll(+1) | x | roll(-1) | x_mark]."""
    feats = jnp.concatenate([jnp.roll(x, 1, axis=1), x, jnp.roll(x, -1, axis=1), x_mark],
                            axis=-1)
    w = jnp.concatenate([p["token_w"], p["time_w"]], axis=0)
    return fused_linear(feats, w)            # dropout = identity (eval)


def encoder_layer(p, x, A, factor, norm=None):
    ap = p["attn"]
    v, mv = attn_corr(x, x, ap)                                   # Pallas K1
    delay, wgt = topk_delays(mv, factor)                          # XLA glue (top-k)
    # seasonal-only: encoder trends are never stored.
    return agg_block(delay, wgt, v, x, ap["wo"], ap["bo"], A,
                     w1=p["conv1_w"], w2=p["conv2_w"], ln=norm,
                     emit_trend=False)                            # Pallas K2


def decoder_layer(p, x, cross, A, factor, norm=None):
    sp = p["self_attn"]
    v, mv = attn_corr(x, x, sp)
    delay, wgt = topk_delays(mv, factor)
    x, trend1 = agg_block(delay, wgt, v, x, sp["wo"], sp["bo"], A, emit_trend=True)

    cp = p["cross_attn"]
    v, mv = attn_corr(x, cross, cp)
    delay, wgt = topk_delays(mv, factor)
    x, trend23 = agg_block(delay, wgt, v, x, cp["wo"], cp["bo"], A,
                           w1=p["conv1_w"], w2=p["conv2_w"], ln=norm,
                           emit_trend=True)

    residual_trend = circular_conv1d_k3_jnp(trend1 + trend23, p["trend_proj_w"])
    return x, residual_trend


def autoformer_forward(params, past_target, known_dynamic_feat, cfg):
    pred_len = cfg["pred_len"]
    label_len = cfg["label_len"]
    factor = cfg["factor"]

    if past_target.ndim == 2:
        past_target = past_target[..., None]

    past_known = known_dynamic_feat[:, :-pred_len, :]
    future_known = known_dynamic_feat[:, -pred_len:, :]
    future_pad_target = past_target[:, -label_len:, :]
    B = past_target.shape[0]
    dec_inp = jnp.zeros((B, pred_len, past_target.shape[-1]), past_target.dtype)
    dec_inp = jnp.concatenate([future_pad_target, dec_inp], axis=1)
    future_pad_known = jnp.concatenate([past_known[:, -label_len:, :], future_known], axis=1)

    x_enc, x_mark_enc = past_target, past_known
    x_dec, x_mark_dec = dec_inp, future_pad_known

    L_enc, L_dec = x_enc.shape[1], x_dec.shape[1]
    A_enc = moving_avg_matrix(L_enc, cfg["moving_avg"])
    A_dec = moving_avg_matrix(L_dec, cfg["moving_avg"])

    mean = jnp.repeat(jnp.mean(x_enc, axis=1, keepdims=True), pred_len, axis=1)
    zeros = jnp.zeros((B, pred_len, x_dec.shape[2]), x_enc.dtype)
    seasonal_init, trend_init = series_decomp_jnp(x_enc, A_enc)   # C=1 -> plain JAX
    trend_init = jnp.concatenate([trend_init[:, -label_len:, :], mean], axis=1)
    seasonal_init = jnp.concatenate([seasonal_init[:, -label_len:, :], zeros], axis=1)

    # Encoder (my_Layernorm fused into the last layer's K2)
    enc_out = data_embedding(x_enc, x_mark_enc, params["enc_emb"])
    n_enc = len(params["enc_layers"])
    for li, lp in enumerate(params["enc_layers"]):
        norm = ((params["enc_norm_w"], params["enc_norm_b"])
                if li == n_enc - 1 else None)
        enc_out = encoder_layer(lp, enc_out, A_enc, factor, norm=norm)

    # Decoder (my_Layernorm fused into the last layer's final K2)
    dec_out = data_embedding(seasonal_init, x_mark_dec, params["dec_emb"])
    trend = trend_init
    n_dec = len(params["dec_layers"])
    for li, lp in enumerate(params["dec_layers"]):
        norm = ((params["dec_norm_w"], params["dec_norm_b"])
                if li == n_dec - 1 else None)
        dec_out, residual_trend = decoder_layer(lp, dec_out, enc_out, A_dec, factor,
                                                norm=norm)
        trend = trend + residual_trend

    # Final d_model -> c_out (=1) projection: 1-lane matmul, kept in XLA.
    seasonal_part = (jnp.einsum('bld,dc->blc', dec_out, params["dec_proj_w"])
                     + params["dec_proj_b"])

    out = (trend + seasonal_part)[:, -pred_len:, :]
    # PyTorch does .squeeze(); only drop the size-1 feature axis so batch=1 stays intact.
    if out.shape[-1] == 1:
        out = out[..., 0]
    return out


# ----------------------------------------------------------------------------
# Deterministic parameter init (synthetic; shapes follow the module __init__)
# ----------------------------------------------------------------------------
def init_params(key, cfg):
    d_model, d_ff, c_out = cfg["d_model"], cfg["d_ff"], cfg["c_out"]
    enc_in, dec_in, mark_dim = cfg["enc_in"], cfg["dec_in"], cfg["mark_dim"]
    keys = iter(jax.random.split(key, 512))

    def dense(shape, scale=0.05):
        return scale * jax.random.normal(next(keys), shape, jnp.float32)

    def attn_params():
        return dict(
            wq=dense((d_model, d_model)), bq=dense((d_model,)),
            wk=dense((d_model, d_model)), bk=dense((d_model,)),
            wv=dense((d_model, d_model)), bv=dense((d_model,)),
            wo=dense((d_model, d_model)), bo=dense((d_model,)),
        )

    return dict(
        enc_emb=dict(token_w=dense((3 * enc_in, d_model)), time_w=dense((mark_dim, d_model))),
        dec_emb=dict(token_w=dense((3 * dec_in, d_model)), time_w=dense((mark_dim, d_model))),
        enc_layers=[dict(attn=attn_params(),
                         conv1_w=dense((d_model, d_ff)),
                         conv2_w=dense((d_ff, d_model)))
                    for _ in range(cfg["e_layers"])],
        enc_norm_w=jnp.ones((d_model,), jnp.float32),
        enc_norm_b=jnp.zeros((d_model,), jnp.float32),
        dec_layers=[dict(self_attn=attn_params(),
                         cross_attn=attn_params(),
                         conv1_w=dense((d_model, d_ff)),
                         conv2_w=dense((d_ff, d_model)),
                         trend_proj_w=dense((3 * d_model, c_out)))
                    for _ in range(cfg["d_layers"])],
        dec_norm_w=jnp.ones((d_model,), jnp.float32),
        dec_norm_b=jnp.zeros((d_model,), jnp.float32),
        dec_proj_w=dense((d_model, c_out)),
        dec_proj_b=dense((c_out,)),
    )


# ----------------------------------------------------------------------------
if __name__ == "__main__":
    cfg = dict(
        seq_len=16,        # context_length
        pred_len=8,        # prediction_length
        label_len=8,       # context_length // 2
        d_model=32,
        d_ff=64,
        n_heads=4,         # inference AutoCorrelation is head-count independent
        e_layers=2,
        d_layers=1,
        moving_avg=7,
        factor=1,
        c_out=1,           # decoder_output_dim
        enc_in=1,          # past_target feature dim (lazily inferred in torch)
        dec_in=1,
        mark_dim=3,        # known_dynamic_feat feature dim
    )

    key = jax.random.PRNGKey(0)
    k_pt, k_kf, k_p = jax.random.split(key, 3)
    past_target = jax.random.normal(k_pt, (2, cfg["seq_len"]), jnp.float32)          # [B, 16]
    known_dynamic_feat = jax.random.normal(
        k_kf, (2, cfg["seq_len"] + cfg["pred_len"], cfg["mark_dim"]), jnp.float32)   # [B, 24, 3]
    params = init_params(k_p, cfg)

    fwd = jax.jit(lambda pt, kf: autoformer_forward(params, pt, kf, cfg))
    out = fwd(past_target, known_dynamic_feat)
    out = jax.block_until_ready(out)

    assert out.shape == (2, cfg["pred_len"]), out.shape
    assert bool(jnp.all(jnp.isfinite(out)))
    print("KERNEL_OK")
</pallas_src>

<mosaic_0001>
module attributes {stable_mosaic.version = 11 : i64} {
  func.func @_matmul_kernel(%arg0: memref<32x6xf32, #tpu.memory_space<vmem>>, %arg1: memref<6x32xf32, #tpu.memory_space<vmem>>, %arg2: memref<32x32xf32, #tpu.memory_space<vmem>>) attributes {dimension_semantics = [], scalar_prefetch = 0 : i64, scratch_operands = 0 : i64, tpu.core_type = #tpu.core_type<tc>} {
    %c0 = arith.constant 0 : index
    %c0_0 = arith.constant 0 : index
    %0 = vector.load %arg0[%c0, %c0_0] : memref<32x6xf32, #tpu.memory_space<vmem>>, vector<32x6xf32>
    %c0_1 = arith.constant 0 : index
    %c0_2 = arith.constant 0 : index
    %1 = vector.load %arg1[%c0_1, %c0_2] : memref<6x32xf32, #tpu.memory_space<vmem>>, vector<6x32xf32>
    %cst = arith.constant dense<0.000000e+00> : vector<32x32xf32>
    %2 = tpu.matmul %0, %1, %cst {dimension_numbers = #tpu.dot_dimension_numbers<[1], [0], [0], [1], [0, 0, 1, 1], [], []>} : vector<32x6xf32>, vector<6x32xf32>, vector<32x32xf32> -> vector<32x32xf32>
    %c0_3 = arith.constant 0 : index
    %c0_4 = arith.constant 0 : index
    %3 = vector.load %arg2[%c0_3, %c0_4] : memref<32x32xf32, #tpu.memory_space<vmem>>, vector<32x32xf32>
    tpu.vector_store %arg2[%c0_3, %c0_4], %2 {strides = array<i32>} : memref<32x32xf32, #tpu.memory_space<vmem>>, vector<32x32xf32>,
    return
  }
}

module attributes {stable_mosaic.version = 11 : i64} {
  func.func @_qkv_corr_kernel(%arg0: memref<32x32xf32, #tpu.memory_space<vmem>>, %arg1: memref<32x32xf32, #tpu.memory_space<vmem>>, %arg2: memref<32x32xf32, #tpu.memory_space<vmem>>, %arg3: memref<1x32xf32, #tpu.memory_space<vmem>>, %arg4: memref<32x32xf32, #tpu.memory_space<vmem>>, %arg5: memref<1x32xf32, #tpu.memory_space<vmem>>, %arg6: memref<32x32xf32, #tpu.memory_space<vmem>>, %arg7: memref<1x32xf32, #tpu.memory_space<vmem>>, %arg8: memref<32x1xf32, #tpu.memory_space<vmem>>, %arg9: memref<256x16xf32, #tpu.memory_space<vmem>>, %arg10: memref<256x16xf32, #tpu.memory_space<vmem>>, %arg11: memref<16x256xf32, #tpu.memory_space<vmem>>, %arg12: memref<32x32xf32, #tpu.memory_space<vmem>>, %arg13: memref<32x1xf32, #tpu.memory_space<vmem>>) attributes {dimension_semantics = [], scalar_prefetch = 0 : i64, scratch_operands = 0 : i64, tpu.core_type = #tpu.core_type<tc>} {
    %c0 = arith.constant 0 : index
    %c0_0 = arith.constant 0 : index
    %0 = vector.load %arg0[%c0, %c0_0] : memref<32x32xf32, #tpu.memory_space<vmem>>, vector<32x32xf32>
    %c0_1 = arith.constant 0 : index
    %c0_2 = arith.constant 0 : index
    %1 = vector.load %arg1[%c0_1, %c0_2] : memref<32x32xf32, #tpu.memory_space<vmem>>, vector<32x32xf32>
    %c0_3 = arith.constant 0 : index
    %c0_4 = arith.constant 0 : index
    %2 = vector.load %arg2[%c0_3, %c0_4] : memref<32x32xf32, #tpu.memory_space<vmem>>, vector<32x32xf32>
    %cst = arith.constant dense<0.000000e+00> : vector<32x32xf32>
    %3 = tpu.matmul %0, %2, %cst {dimension_numbers = #tpu.dot_dimension_numbers<[1], [0], [0], [1], [0, 0, 1, 1], [], []>} : vector<32x32xf32>, vector<32x32xf32>, vector<32x32xf32> -> vector<32x32xf32>
    %c0_5 = arith.constant 0 : index
    %c0_6 = arith.constant 0 : index
    %4 = vector.load %arg3[%c0_5, %c0_6] : memref<1x32xf32, #tpu.memory_space<vmem>>, vector<1x32xf32>
    %5 = vector.broadcast %4 : vector<1x32xf32> to vector<32x32xf32>
    %6 = arith.addf %3, %5 : vector<32x32xf32>
    %c0_7 = arith.constant 0 : index
    %c0_8 = arith.constant 0 : index
    %7 = vector.load %arg8[%c0_7, %c0_8] : memref<32x1xf32, #tpu.memory_space<vmem>>, vector<32x1xf32>
    %c0_9 = arith.constant 0 : index
    %c0_10 = arith.constant 0 : index
    %8 = vector.load %arg4[%c0_9, %c0_10] : memref<32x32xf32, #tpu.memory_space<vmem>>, vector<32x32xf32>
    %cst_11 = arith.constant dense<0.000000e+00> : vector<32x32xf32>
    %9 = tpu.matmul %1, %8, %cst_11 {dimension_numbers = #tpu.dot_dimension_numbers<[1], [0], [0], [1], [0, 0, 1, 1], [], []>} : vector<32x32xf32>, vector<32x32xf32>, vector<32x32xf32> -> vector<32x32xf32>
    %c0_12 = arith.constant 0 : index
    %c0_13 = arith.constant 0 : index
    %10 = vector.load %arg5[%c0_12, %c0_13] : memref<1x32xf32, #tpu.memory_space<vmem>>, vector<1x32xf32>
    %11 = vector.broadcast %10 : vector<1x32xf32> to vector<32x32xf32>
    %12 = arith.addf %9, %11 : vector<32x32xf32>
    %13 = vector.broadcast %7 : vector<32x1xf32> to vector<32x32xf32>
    %14 = arith.mulf %12, %13 : vector<32x32xf32>
    %c0_14 = arith.constant 0 : index
    %c0_15 = arith.constant 0 : index
    %15 = vector.load %arg6[%c0_14, %c0_15] : memref<32x32xf32, #tpu.memory_space<vmem>>, vector<32x32xf32>
    %cst_16 = arith.constant dense<0.000000e+00> : vector<32x32xf32>
    %16 = tpu.matmul %1, %15, %cst_16 {dimension_numbers = #tpu.dot_dimension_numbers<[1], [0], [0], [1], [0, 0, 1, 1], [], []>} : vector<32x32xf32>, vector<32x32xf32>, vector<32x32xf32> -> vector<32x32xf32>
    %c0_17 = arith.constant 0 : index
    %c0_18 = arith.constant 0 : index
    %17 = vector.load %arg7[%c0_17, %c0_18] : memref<1x32xf32, #tpu.memory_space<vmem>>, vector<1x32xf32>
    %18 = vector.broadcast %17 : vector<1x32xf32> to vector<32x32xf32>
    %19 = arith.addf %16, %18 : vector<32x32xf32>
    %20 = vector.broadcast %7 : vector<32x1xf32> to vector<32x32xf32>
    %21 = arith.mulf %19, %20 : vector<32x32xf32>
    %c0_19 = arith.constant 0 : index
    %c0_20 = arith.constant 0 : index
    %22 = vector.load %arg12[%c0_19, %c0_20] : memref<32x32xf32, #tpu.memory_space<vmem>>, vector<32x32xf32>
    tpu.vector_store %arg12[%c0_19, %c0_20], %21 {strides = array<i32>} : memref<32x32xf32, #tpu.memory_space<vmem>>, vector<32x32xf32>,
    %23 = vector.extract_strided_slice %6 {offsets = [0, 0], sizes = [16, 32], strides = [1, 1]} : vector<32x32xf32> to vector<16x32xf32>
    %24 = vector.extract_strided_slice %14 {offsets = [0, 0], sizes = [16, 32], strides = [1, 1]} : vector<32x32xf32> to vector<16x32xf32>
    %c0_21 = arith.constant 0 : index
    %c0_22 = arith.constant 0 : index
    %25 = vector.load %arg9[%c0_21, %c0_22] : memref<256x16xf32, #tpu.memory_space<vmem>>, vector<256x16xf32>
    %cst_23 = arith.constant dense<0.000000e+00> : vector<256x32xf32>
    %26 = tpu.matmul %25, %23, %cst_23 {dimension_numbers = #tpu.dot_dimension_numbers<[1], [0], [0], [1], [0, 0, 1, 1], [], []>} : vector<256x16xf32>, vector<16x32xf32>, vector<256x32xf32> -> vector<256x32xf32>
    %c0_24 = arith.constant 0 : index
    %c0_25 = arith.constant 0 : index
    %27 = vector.load %arg10[%c0_24, %c0_25] : memref<256x16xf32, #tpu.memory_space<vmem>>, vector<256x16xf32>
    %cst_26 = arith.constant dense<0.000000e+00> : vector<256x32xf32>
    %28 = tpu.matmul %27, %24, %cst_26 {dimension_numbers = #tpu.dot_dimension_numbers<[1], [0], [0], [1], [0, 0, 1, 1], [], []>} : vector<256x16xf32>, vector<16x32xf32>, vector<256x32xf32> -> vector<256x32xf32>
    %c0_27 = arith.constant 0 : index
    %c0_28 = arith.constant 0 : index
    %29 = vector.load %arg11[%c0_27, %c0_28] : memref<16x256xf32, #tpu.memory_space<vmem>>, vector<16x256xf32>
    %30 = arith.mulf %26, %28 : vector<256x32xf32>
    %cst_29 = arith.constant dense<0.000000e+00> : vector<16x32xf32>
    %31 = tpu.matmul %29, %30, %cst_29 {dimension_numbers = #tpu.dot_dimension_numbers<[1], [0], [0], [1], [0, 0, 1, 1], [], []>} : vector<16x256xf32>, vector<256x32xf32>, vector<16x32xf32> -> vector<16x32xf32>
    %cst_30 = arith.constant dense<0.000000e+00> : vector<16xf32>
    %32 = vector.multi_reduction <add>, %31, %cst_30 [1] : vector<16x32xf32> to vector<16xf32>
    %33 = vector.shape_cast %32 : vector<16xf32> to vector<16x1xf32>
    %cst_31 = arith.constant 3.125000e-02 : f32
    %34 = vector.broadcast %cst_31 : f32 to vector<16x1xf32>
    %35 = arith.mulf %33, %34 : vector<16x1xf32>
    %c0_32 = arith.constant 0 : index
    %c0_33 = arith.constant 0 : index
    %36 = vector.load %arg13[%c0_32, %c0_33] : memref<32x1xf32, #tpu.memory_space<vmem>>, vector<16x1xf32>
    tpu.vector_store %arg13[%c0_32, %c0_33], %35 {strides = array<i32>} : memref<32x1xf32, #tpu.memory_space<vmem>>, vector<16x1xf32>,
    %37 = vector.extract_strided_slice %6 {offsets = [16, 0], sizes = [16, 32], strides = [1, 1]} : vector<32x32xf32> to vector<16x32xf32>
    %38 = vector.extract_strided_slice %14 {offsets = [16, 0], sizes = [16, 32], strides = [1, 1]} : vector<32x32xf32> to vector<16x32xf32>
    %c0_34 = arith.constant 0 : index
    %c0_35 = arith.constant 0 : index
    %39 = vector.load %arg9[%c0_34, %c0_35] : memref<256x16xf32, #tpu.memory_space<vmem>>, vector<256x16xf32>
    %cst_36 = arith.constant dense<0.000000e+00> : vector<256x32xf32>
    %40 = tpu.matmul %39, %37, %cst_36 {dimension_numbers = #tpu.dot_dimension_numbers<[1], [0], [0], [1], [0, 0, 1, 1], [], []>} : vector<256x16xf32>, vector<16x32xf32>, vector<256x32xf32> -> vector<256x32xf32>
    %c0_37 = arith.constant 0 : index
    %c0_38 = arith.constant 0 : index
    %41 = vector.load %arg10[%c0_37, %c0_38] : memref<256x16xf32, #tpu.memory_space<vmem>>, vector<256x16xf32>
    %cst_39 = arith.constant dense<0.000000e+00> : vector<256x32xf32>
    %42 = tpu.matmul %41, %38, %cst_39 {dimension_numbers = #tpu.dot_dimension_numbers<[1], [0], [0], [1], [0, 0, 1, 1], [], []>} : vector<256x16xf32>, vector<16x32xf32>, vector<256x32xf32> -> vector<256x32xf32>
    %c0_40 = arith.constant 0 : index
    %c0_41 = arith.constant 0 : index
    %43 = vector.load %arg11[%c0_40, %c0_41] : memref<16x256xf32, #tpu.memory_space<vmem>>, vector<16x256xf32>
    %44 = arith.mulf %40, %42 : vector<256x32xf32>
    %cst_42 = arith.constant dense<0.000000e+00> : vector<16x32xf32>
    %45 = tpu.matmul %43, %44, %cst_42 {dimension_numbers = #tpu.dot_dimension_numbers<[1], [0], [0], [1], [0, 0, 1, 1], [], []>} : vector<16x256xf32>, vector<256x32xf32>, vector<16x32xf32> -> vector<16x32xf32>
    %cst_43 = arith.constant dense<0.000000e+00> : vector<16xf32>
    %46 = vector.multi_reduction <add>, %45, %cst_43 [1] : vector<16x32xf32> to vector<16xf32>
    %47 = vector.shape_cast %46 : vector<16xf32> to vector<16x1xf32>
    %cst_44 = arith.constant 3.125000e-02 : f32
    %48 = vector.broadcast %cst_44 : f32 to vector<16x1xf32>
    %49 = arith.mulf %47, %48 : vector<16x1xf32>
    %c16 = arith.constant 16 : index
    %c0_45 = arith.constant 0 : index
    %50 = vector.load %arg13[%c16, %c0_45] : memref<32x1xf32, #tpu.memory_space<vmem>>, vector<16x1xf32>
    tpu.vector_store %arg13[%c16, %c0_45], %49 {strides = array<i32>} : memref<32x1xf32, #tpu.memory_space<vmem>>, vector<16x1xf32>,
    return
  }
}

module attributes {stable_mosaic.version = 11 : i64} {
  func.func @_agg_block_kernel(%arg0: memref<2x2xi32, #tpu.memory_space<smem>>, %arg1: memref<2x2xf32, #tpu.memory_space<smem>>, %arg2: memref<32x32xf32, #tpu.memory_space<vmem>>, %arg3: memref<32x32xf32, #tpu.memory_space<vmem>>, %arg4: memref<32x32xf32, #tpu.memory_space<vmem>>, %arg5: memref<1x32xf32, #tpu.memory_space<vmem>>, %arg6: memref<16x16xf32, #tpu.memory_space<vmem>>, %arg7: memref<32x64xf32, #tpu.memory_space<vmem>>, %arg8: memref<64x32xf32, #tpu.memory_space<vmem>>, %arg9: memref<32x32xf32, #tpu.memory_space<vmem>>) attributes {dimension_semantics = [], scalar_prefetch = 0 : i64, scratch_operands = 0 : i64, tpu.core_type = #tpu.core_type<tc>} {
    %0 = tpu.iota {dimensions = array<i32: 0>} : vector<16x16xi32>
    %1 = tpu.iota {dimensions = array<i32: 1>} : vector<16x16xi32>
    %2 = arith.subi %1, %0 : vector<16x16xi32>
    %c0 = arith.constant 0 : index
    %c0_0 = arith.constant 0 : index
    %3 = vector.load %arg2[%c0, %c0_0] : memref<32x32xf32, #tpu.memory_space<vmem>>, vector<32x32xf32>
    %c0_1 = arith.constant 0 : index
    %c0_2 = arith.constant 0 : index
    %4 = vector.load %arg3[%c0_1, %c0_2] : memref<32x32xf32, #tpu.memory_space<vmem>>, vector<32x32xf32>
    %c0_3 = arith.constant 0 : index
    %c0_4 = arith.constant 0 : index
    %5 = vector.load %arg6[%c0_3, %c0_4] : memref<16x16xf32, #tpu.memory_space<vmem>>, vector<16x16xf32>
    %cst = arith.constant 0.000000e+00 : f32
    %6 = vector.broadcast %cst : f32 to vector<16x16xf32>
    %c0_5 = arith.constant 0 : index
    %c0_6 = arith.constant 0 : index
    %7 = memref.load %arg0[%c0_5, %c0_6] : memref<2x2xi32, #tpu.memory_space<smem>>
    %c0_7 = arith.constant 0 : index
    %c0_8 = arith.constant 0 : index
    %8 = memref.load %arg1[%c0_7, %c0_8] : memref<2x2xf32, #tpu.memory_space<smem>>
    %9 = vector.broadcast %7 : i32 to vector<16x16xi32>
    %10 = arith.cmpi eq, %2, %9 : vector<16x16xi32>
    %c16_i32 = arith.constant 16 : i32
    %11 = arith.subi %7, %c16_i32 : i32
    %12 = vector.broadcast %11 : i32 to vector<16x16xi32>
    %13 = arith.cmpi eq, %2, %12 : vector<16x16xi32>
    %14 = arith.ori %10, %13 : vector<16x16xi1>
    %cst_9 = arith.constant 0.000000e+00 : f32
    %15 = vector.broadcast %8 : f32 to vector<16x16xf32>
    %16 = vector.broadcast %cst_9 : f32 to vector<16x16xf32>
    %17 = arith.select %14, %15, %16 : vector<16x16xi1>, vector<16x16xf32>
    %18 = arith.addf %6, %17 : vector<16x16xf32>
    %c0_10 = arith.constant 0 : index
    %c1 = arith.constant 1 : index
    %19 = memref.load %arg0[%c0_10, %c1] : memref<2x2xi32, #tpu.memory_space<smem>>
    %c0_11 = arith.constant 0 : index
    %c1_12 = arith.constant 1 : index
    %20 = memref.load %arg1[%c0_11, %c1_12] : memref<2x2xf32, #tpu.memory_space<smem>>
    %21 = vector.broadcast %19 : i32 to vector<16x16xi32>
    %22 = arith.cmpi eq, %2, %21 : vector<16x16xi32>
    %c16_i32_13 = arith.constant 16 : i32
    %23 = arith.subi %19, %c16_i32_13 : i32
    %24 = vector.broadcast %23 : i32 to vector<16x16xi32>
    %25 = arith.cmpi eq, %2, %24 : vector<16x16xi32>
    %26 = arith.ori %22, %25 : vector<16x16xi1>
    %cst_14 = arith.constant 0.000000e+00 : f32
    %27 = vector.broadcast %20 : f32 to vector<16x16xf32>
    %28 = vector.broadcast %cst_14 : f32 to vector<16x16xf32>
    %29 = arith.select %26, %27, %28 : vector<16x16xi1>, vector<16x16xf32>
    %30 = arith.addf %18, %29 : vector<16x16xf32>
    %31 = vector.extract_strided_slice %3 {offsets = [0, 0], sizes = [16, 32], strides = [1, 1]} : vector<32x32xf32> to vector<16x32xf32>
    %cst_15 = arith.constant dense<0.000000e+00> : vector<16x32xf32>
    %32 = tpu.matmul %30, %31, %cst_15 {dimension_numbers = #tpu.dot_dimension_numbers<[1], [0], [0], [1], [0, 0, 1, 1], [], []>} : vector<16x16xf32>, vector<16x32xf32>, vector<16x32xf32> -> vector<16x32xf32>
    %c0_16 = arith.constant 0 : index
    %c0_17 = arith.constant 0 : index
    %33 = vector.load %arg4[%c0_16, %c0_17] : memref<32x32xf32, #tpu.memory_space<vmem>>, vector<32x32xf32>
    %cst_18 = arith.constant dense<0.000000e+00> : vector<16x32xf32>
    %34 = tpu.matmul %32, %33, %cst_18 {dimension_numbers = #tpu.dot_dimension_numbers<[1], [0], [0], [1], [0, 0, 1, 1], [], []>} : vector<16x32xf32>, vector<32x32xf32>, vector<16x32xf32> -> vector<16x32xf32>
    %c0_19 = arith.constant 0 : index
    %c0_20 = arith.constant 0 : index
    %35 = vector.load %arg5[%c0_19, %c0_20] : memref<1x32xf32, #tpu.memory_space<vmem>>, vector<1x32xf32>
    %36 = vector.broadcast %35 : vector<1x32xf32> to vector<16x32xf32>
    %37 = arith.addf %34, %36 : vector<16x32xf32>
    %38 = vector.extract_strided_slice %4 {offsets = [0, 0], sizes = [16, 32], strides = [1, 1]} : vector<32x32xf32> to vector<16x32xf32>
    %39 = arith.addf %38, %37 : vector<16x32xf32>
    %cst_21 = arith.constant dense<0.000000e+00> : vector<16x32xf32>
    %40 = tpu.matmul %5, %39, %cst_21 {dimension_numbers = #tpu.dot_dimension_numbers<[1], [0], [0], [1], [0, 0, 1, 1], [], []>} : vector<16x16xf32>, vector<16x32xf32>, vector<16x32xf32> -> vector<16x32xf32>
    %41 = arith.subf %39, %40 : vector<16x32xf32>
    %c0_22 = arith.constant 0 : index
    %c0_23 = arith.constant 0 : index
    %42 = vector.load %arg7[%c0_22, %c0_23] : memref<32x64xf32, #tpu.memory_space<vmem>>, vector<32x64xf32>
    %cst_24 = arith.constant dense<0.000000e+00> : vector<16x64xf32>
    %43 = tpu.matmul %41, %42, %cst_24 {dimension_numbers = #tpu.dot_dimension_numbers<[1], [0], [0], [1], [0, 0, 1, 1], [], []>} : vector<16x32xf32>, vector<32x64xf32>, vector<16x64xf32> -> vector<16x64xf32>
    %cst_25 = arith.constant 5.000000e-01 : f32
    %44 = vector.broadcast %cst_25 : f32 to vector<16x64xf32>
    %45 = arith.mulf %44, %43 : vector<16x64xf32>
    %cst_26 = arith.constant 0.707106769 : f32
    %46 = vector.broadcast %cst_26 : f32 to vector<16x64xf32>
    %47 = arith.mulf %43, %46 : vector<16x64xf32>
    %cst_27 = arith.constant -3.8325069 : f32
    %cst_28 = arith.constant 3.8325069 : f32
    %48 = vector.broadcast %cst_27 : f32 to vector<16x64xf32>
    %49 = arith.maximumf %48, %47 : vector<16x64xf32>
    %50 = vector.broadcast %cst_28 : f32 to vector<16x64xf32>
    %51 = arith.minimumf %50, %49 : vector<16x64xf32>
    %52 = arith.mulf %51, %51 : vector<16x64xf32>
    %cst_29 = arith.constant 2.29050653E-4 : f32
    %53 = vector.broadcast %cst_29 : f32 to vector<16x64xf32>
    %54 = arith.mulf %53, %52 : vector<16x64xf32>
    %cst_30 = arith.constant 0.00340829091 : f32
    %55 = vector.broadcast %cst_30 : f32 to vector<16x64xf32>
    %56 = arith.addf %54, %55 : vector<16x64xf32>
    %57 = arith.mulf %56, %52 : vector<16x64xf32>
    %cst_31 = arith.constant 0.0509556942 : f32
    %58 = vector.broadcast %cst_31 : f32 to vector<16x64xf32>
    %59 = arith.addf %57, %58 : vector<16x64xf32>
    %60 = arith.mulf %59, %52 : vector<16x64xf32>
    %cst_32 = arith.constant 0.185208321 : f32
    %61 = vector.broadcast %cst_32 : f32 to vector<16x64xf32>
    %62 = arith.addf %60, %61 : vector<16x64xf32>
    %63 = arith.mulf %62, %52 : vector<16x64xf32>
    %cst_33 = arith.constant 1.12837911 : f32
    %64 = vector.broadcast %cst_33 : f32 to vector<16x64xf32>
    %65 = arith.addf %63, %64 : vector<16x64xf32>
    %cst_34 = arith.constant -1.17916031E-7 : f32
    %66 = vector.broadcast %cst_34 : f32 to vector<16x64xf32>
    %67 = arith.mulf %66, %52 : vector<16x64xf32>
    %cst_35 = arith.constant 2.35479656E-5 : f32
    %68 = vector.broadcast %cst_35 : f32 to vector<16x64xf32>
    %69 = arith.addf %67, %68 : vector<16x64xf32>
    %70 = arith.mulf %69, %52 : vector<16x64xf32>
    %cst_36 = arith.constant 0.00101796258 : f32
    %71 = vector.broadcast %cst_36 : f32 to vector<16x64xf32>
    %72 = arith.addf %70, %71 : vector<16x64xf32>
    %73 = arith.mulf %72, %52 : vector<16x64xf32>
    %cst_37 = arith.constant 0.0140704699 : f32
    %74 = vector.broadcast %cst_37 : f32 to vector<16x64xf32>
    %75 = arith.addf %73, %74 : vector<16x64xf32>
    %76 = arith.mulf %75, %52 : vector<16x64xf32>
    %cst_38 = arith.constant 0.110985048 : f32
    %77 = vector.broadcast %cst_38 : f32 to vector<16x64xf32>
    %78 = arith.addf %76, %77 : vector<16x64xf32>
    %79 = arith.mulf %78, %52 : vector<16x64xf32>
    %cst_39 = arith.constant 0.497469246 : f32
    %80 = vector.broadcast %cst_39 : f32 to vector<16x64xf32>
    %81 = arith.addf %79, %80 : vector<16x64xf32>
    %82 = arith.mulf %81, %52 : vector<16x64xf32>
    %cst_40 = arith.constant 1.000000e+00 : f32
    %83 = vector.broadcast %cst_40 : f32 to vector<16x64xf32>
    %84 = arith.addf %82, %83 : vector<16x64xf32>
    %85 = arith.mulf %51, %65 : vector<16x64xf32>
    %86 = arith.divf %85, %84 : vector<16x64xf32>
    %cst_41 = arith.constant 1.000000e+00 : f32
    %87 = vector.broadcast %cst_41 : f32 to vector<16x64xf32>
    %88 = arith.addf %87, %86 : vector<16x64xf32>
    %89 = arith.mulf %45, %88 : vector<16x64xf32>
    %c0_42 = arith.constant 0 : index
    %c0_43 = arith.constant 0 : index
    %90 = vector.load %arg8[%c0_42, %c0_43] : memref<64x32xf32, #tpu.memory_space<vmem>>, vector<64x32xf32>
    %cst_44 = arith.constant dense<0.000000e+00> : vector<16x32xf32>
    %91 = tpu.matmul %89, %90, %cst_44 {dimension_numbers = #tpu.dot_dimension_numbers<[1], [0], [0], [1], [0, 0, 1, 1], [], []>} : vector<16x64xf32>, vector<64x32xf32>, vector<16x32xf32> -> vector<16x32xf32>
    %92 = arith.addf %41, %91 : vector<16x32xf32>
    %cst_45 = arith.constant dense<0.000000e+00> : vector<16x32xf32>
    %93 = tpu.matmul %5, %92, %cst_45 {dimension_numbers = #tpu.dot_dimension_numbers<[1], [0], [0], [1], [0, 0, 1, 1], [], []>} : vector<16x16xf32>, vector<16x32xf32>, vector<16x32xf32> -> vector<16x32xf32>
    %94 = arith.subf %92, %93 : vector<16x32xf32>
    %c0_46 = arith.constant 0 : index
    %c0_47 = arith.constant 0 : index
    %95 = vector.load %arg9[%c0_46, %c0_47] : memref<32x32xf32, #tpu.memory_space<vmem>>, vector<16x32xf32>
    tpu.vector_store %arg9[%c0_46, %c0_47], %94 {strides = array<i32>} : memref<32x32xf32, #tpu.memory_space<vmem>>, vector<16x32xf32>,
    %cst_48 = arith.constant 0.000000e+00 : f32
    %96 = vector.broadcast %cst_48 : f32 to vector<16x16xf32>
    %c1_49 = arith.constant 1 : index
    %c0_50 = arith.constant 0 : index
    %97 = memref.load %arg0[%c1_49, %c0_50] : memref<2x2xi32, #tpu.memory_space<smem>>
    %c1_51 = arith.constant 1 : index
    %c0_52 = arith.constant 0 : index
    %98 = memref.load %arg1[%c1_51, %c0_52] : memref<2x2xf32, #tpu.memory_space<smem>>
    %99 = vector.broadcast %97 : i32 to vector<16x16xi32>
    %100 = arith.cmpi eq, %2, %99 : vector<16x16xi32>
    %c16_i32_53 = arith.constant 16 : i32
    %101 = arith.subi %97, %c16_i32_53 : i32
    %102 = vector.broadcast %101 : i32 to vector<16x16xi32>
    %103 = arith.cmpi eq, %2, %102 : vector<16x16xi32>
    %104 = arith.ori %100, %103 : vector<16x16xi1>
    %cst_54 = arith.constant 0.000000e+00 : f32
    %105 = vector.broadcast %98 : f32 to vector<16x16xf32>
    %106 = vector.broadcast %cst_54 : f32 to vector<16x16xf32>
    %107 = arith.select %104, %105, %106 : vector<16x16xi1>, vector<16x16xf32>
    %108 = arith.addf %96, %107 : vector<16x16xf32>
    %c1_55 = arith.constant 1 : index
    %c1_56 = arith.constant 1 : index
    %109 = memref.load %arg0[%c1_55, %c1_56] : memref<2x2xi32, #tpu.memory_space<smem>>
    %c1_57 = arith.constant 1 : index
    %c1_58 = arith.constant 1 : index
    %110 = memref.load %arg1[%c1_57, %c1_58] : memref<2x2xf32, #tpu.memory_space<smem>>
    %111 = vector.broadcast %109 : i32 to vector<16x16xi32>
    %112 = arith.cmpi eq, %2, %111 : vector<16x16xi32>
    %c16_i32_59 = arith.constant 16 : i32
    %113 = arith.subi %109, %c16_i32_59 : i32
    %114 = vector.broadcast %113 : i32 to vector<16x16xi32>
    %115 = arith.cmpi eq, %2, %114 : vector<16x16xi32>
    %116 = arith.ori %112, %115 : vector<16x16xi1>
    %cst_60 = arith.constant 0.000000e+00 : f32
    %117 = vector.broadcast %110 : f32 to vector<16x16xf32>
    %118 = vector.broadcast %cst_60 : f32 to vector<16x16xf32>
    %119 = arith.select %116, %117, %118 : vector<16x16xi1>, vector<16x16xf32>
    %120 = arith.addf %108, %119 : vector<16x16xf32>
    %121 = vector.extract_strided_slice %3 {offsets = [16, 0], sizes = [16, 32], strides = [1, 1]} : vector<32x32xf32> to vector<16x32xf32>
    %cst_61 = arith.constant dense<0.000000e+00> : vector<16x32xf32>
    %122 = tpu.matmul %120, %121, %cst_61 {dimension_numbers = #tpu.dot_dimension_numbers<[1], [0], [0], [1], [0, 0, 1, 1], [], []>} : vector<16x16xf32>, vector<16x32xf32>, vector<16x32xf32> -> vector<16x32xf32>
    %c0_62 = arith.constant 0 : index
    %c0_63 = arith.constant 0 : index
    %123 = vector.load %arg4[%c0_62, %c0_63] : memref<32x32xf32, #tpu.memory_space<vmem>>, vector<32x32xf32>
    %cst_64 = arith.constant dense<0.000000e+00> : vector<16x32xf32>
    %124 = tpu.matmul %122, %123, %cst_64 {dimension_numbers = #tpu.dot_dimension_numbers<[1], [0], [0], [1], [0, 0, 1, 1], [], []>} : vector<16x32xf32>, vector<32x32xf32>, vector<16x32xf32> -> vector<16x32xf32>
    %c0_65 = arith.constant 0 : index
    %c0_66 = arith.constant 0 : index
    %125 = vector.load %arg5[%c0_65, %c0_66] : memref<1x32xf32, #tpu.memory_space<vmem>>, vector<1x32xf32>
    %126 = vector.broadcast %125 : vector<1x32xf32> to vector<16x32xf32>
    %127 = arith.addf %124, %126 : vector<16x32xf32>
    %128 = vector.extract_strided_slice %4 {offsets = [16, 0], sizes = [16, 32], strides = [1, 1]} : vector<32x32xf32> to vector<16x32xf32>
    %129 = arith.addf %128, %127 : vector<16x32xf32>
    %cst_67 = arith.constant dense<0.000000e+00> : vector<16x32xf32>
    %130 = tpu.matmul %5, %129, %cst_67 {dimension_numbers = #tpu.dot_dimension_numbers<[1], [0], [0], [1], [0, 0, 1, 1], [], []>} : vector<16x16xf32>, vector<16x32xf32>, vector<16x32xf32> -> vector<16x32xf32>
    %131 = arith.subf %129, %130 : vector<16x32xf32>
    %c0_68 = arith.constant 0 : index
    %c0_69 = arith.constant 0 : index
    %132 = vector.load %arg7[%c0_68, %c0_69] : memref<32x64xf32, #tpu.memory_space<vmem>>, vector<32x64xf32>
    %cst_70 = arith.constant dense<0.000000e+00> : vector<16x64xf32>
    %133 = tpu.matmul %131, %132, %cst_70 {dimension_numbers = #tpu.dot_dimension_numbers<[1], [0], [0], [1], [0, 0, 1, 1], [], []>} : vector<16x32xf32>, vector<32x64xf32>, vector<16x64xf32> -> vector<16x64xf32>
    %cst_71 = arith.constant 5.000000e-01 : f32
    %134 = vector.broadcast %cst_71 : f32 to vector<16x64xf32>
    %135 = arith.mulf %134, %133 : vector<16x64xf32>
    %cst_72 = arith.constant 0.707106769 : f32
    %136 = vector.broadcast %cst_72 : f32 to vector<16x64xf32>
    %137 = arith.mulf %133, %136 : vector<16x64xf32>
    %cst_73 = arith.constant -3.8325069 : f32
    %cst_74 = arith.constant 3.8325069 : f32
    %138 = vector.broadcast %cst_73 : f32 to vector<16x64xf32>
    %139 = arith.maximumf %138, %137 : vector<16x64xf32>
    %140 = vector.broadcast %cst_74 : f32 to vector<16x64xf32>
    %141 = arith.minimumf %140, %139 : vector<16x64xf32>
    %142 = arith.mulf %141, %141 : vector<16x64xf32>
    %cst_75 = arith.constant 2.29050653E-4 : f32
    %143 = vector.broadcast %cst_75 : f32 to vector<16x64xf32>
    %144 = arith.mulf %143, %142 : vector<16x64xf32>
    %cst_76 = arith.constant 0.00340829091 : f32
    %145 = vector.broadcast %cst_76 : f32 to vector<16x64xf32>
    %146 = arith.addf %144, %145 : vector<16x64xf32>
    %147 = arith.mulf %146, %142 : vector<16x64xf32>
    %cst_77 = arith.constant 0.0509556942 : f32
    %148 = vector.broadcast %cst_77 : f32 to vector<16x64xf32>
    %149 = arith.addf %147, %148 : vector<16x64xf32>
    %150 = arith.mulf %149, %142 : vector<16x64xf32>
    %cst_78 = arith.constant 0.185208321 : f32
    %151 = vector.broadcast %cst_78 : f32 to vector<16x64xf32>
    %152 = arith.addf %150, %151 : vector<16x64xf32>
    %153 = arith.mulf %152, %142 : vector<16x64xf32>
    %cst_79 = arith.constant 1.12837911 : f32
    %154 = vector.broadcast %cst_79 : f32 to vector<16x64xf32>
    %155 = arith.addf %153, %154 : vector<16x64xf32>
    %cst_80 = arith.constant -1.17916031E-7 : f32
    %156 = vector.broadcast %cst_80 : f32 to vector<16x64xf32>
    %157 = arith.mulf %156, %142 : vector<16x64xf32>
    %cst_81 = arith.constant 2.35479656E-5 : f32
    %158 = vector.broadcast %cst_81 : f32 to vector<16x64xf32>
    %159 = arith.addf %157, %158 : vector<16x64xf32>
    %160 = arith.mulf %159, %142 : vector<16x64xf32>
    %cst_82 = arith.constant 0.00101796258 : f32
    %161 = vector.broadcast %cst_82 : f32 to vector<16x64xf32>
    %162 = arith.addf %160, %161 : vector<16x64xf32>
    %163 = arith.mulf %162, %142 : vector<16x64xf32>
    %cst_83 = arith.constant 0.0140704699 : f32
    %164 = vector.broadcast %cst_83 : f32 to vector<16x64xf32>
    %165 = arith.addf %163, %164 : vector<16x64xf32>
    %166 = arith.mulf %165, %142 : vector<16x64xf32>
    %cst_84 = arith.constant 0.110985048 : f32
    %167 = vector.broadcast %cst_84 : f32 to vector<16x64xf32>
    %168 = arith.addf %166, %167 : vector<16x64xf32>
    %169 = arith.mulf %168, %142 : vector<16x64xf32>
    %cst_85 = arith.constant 0.497469246 : f32
    %170 = vector.broadcast %cst_85 : f32 to vector<16x64xf32>
    %171 = arith.addf %169, %170 : vector<16x64xf32>
    %172 = arith.mulf %171, %142 : vector<16x64xf32>
    %cst_86 = arith.constant 1.000000e+00 : f32
    %173 = vector.broadcast %cst_86 : f32 to vector<16x64xf32>
    %174 = arith.addf %172, %173 : vector<16x64xf32>
    %175 = arith.mulf %141, %155 : vector<16x64xf32>
    %176 = arith.divf %175, %174 : vector<16x64xf32>
    %cst_87 = arith.constant 1.000000e+00 : f32
    %177 = vector.broadcast %cst_87 : f32 to vector<16x64xf32>
    %178 = arith.addf %177, %176 : vector<16x64xf32>
    %179 = arith.mulf %135, %178 : vector<16x64xf32>
    %c0_88 = arith.constant 0 : index
    %c0_89 = arith.constant 0 : index
    %180 = vector.load %arg8[%c0_88, %c0_89] : memref<64x32xf32, #tpu.memory_space<vmem>>, vector<64x32xf32>
    %cst_90 = arith.constant dense<0.000000e+00> : vector<16x32xf32>
    %181 = tpu.matmul %179, %180, %cst_90 {dimension_numbers = #tpu.dot_dimension_numbers<[1], [0], [0], [1], [0, 0, 1, 1], [], []>} : vector<16x64xf32>, vector<64x32xf32>, vector<16x32xf32> -> vector<16x32xf32>
    %182 = arith.addf %131, %181 : vector<16x32xf32>
    %cst_91 = arith.constant dense<0.000000e+00> : vector<16x32xf32>
    %183 = tpu.matmul %5, %182, %cst_91 {dimension_numbers = #tpu.dot_dimension_numbers<[1], [0], [0], [1], [0, 0, 1, 1], [], []>} : vector<16x16xf32>, vector<16x32xf32>, vector<16x32xf32> -> vector<16x32xf32>
    %184 = arith.subf %182, %183 : vector<16x32xf32>
    %c16 = arith.constant 16 : index
    %c0_92 = arith.constant 0 : index
    %185 = vector.load %arg9[%c16, %c0_92] : memref<32x32xf32, #tpu.memory_space<vmem>>, vector<16x32xf32>
    tpu.vector_store %arg9[%c16, %c0_92], %184 {strides = array<i32>} : memref<32x32xf32, #tpu.memory_space<vmem>>, vector<16x32xf32>,
    return
  }
}

module attributes {stable_mosaic.version = 11 : i64} {
  func.func @_agg_block_kernel(%arg0: memref<2x2xi32, #tpu.memory_space<smem>>, %arg1: memref<2x2xf32, #tpu.memory_space<smem>>, %arg2: memref<32x32xf32, #tpu.memory_space<vmem>>, %arg3: memref<32x32xf32, #tpu.memory_space<vmem>>, %arg4: memref<32x32xf32, #tpu.memory_space<vmem>>, %arg5: memref<1x32xf32, #tpu.memory_space<vmem>>, %arg6: memref<16x16xf32, #tpu.memory_space<vmem>>, %arg7: memref<32x64xf32, #tpu.memory_space<vmem>>, %arg8: memref<64x32xf32, #tpu.memory_space<vmem>>, %arg9: memref<1x32xf32, #tpu.memory_space<vmem>>, %arg10: memref<1x32xf32, #tpu.memory_space<vmem>>, %arg11: memref<32x32xf32, #tpu.memory_space<vmem>>) attributes {dimension_semantics = [], scalar_prefetch = 0 : i64, scratch_operands = 0 : i64, tpu.core_type = #tpu.core_type<tc>} {
    %0 = tpu.iota {dimensions = array<i32: 0>} : vector<16x16xi32>
    %1 = tpu.iota {dimensions = array<i32: 1>} : vector<16x16xi32>
    %2 = arith.subi %1, %0 : vector<16x16xi32>
    %c0 = arith.constant 0 : index
    %c0_0 = arith.constant 0 : index
    %3 = vector.load %arg2[%c0, %c0_0] : memref<32x32xf32, #tpu.memory_space<vmem>>, vector<32x32xf32>
    %c0_1 = arith.constant 0 : index
    %c0_2 = arith.constant 0 : index
    %4 = vector.load %arg3[%c0_1, %c0_2] : memref<32x32xf32, #tpu.memory_space<vmem>>, vector<32x32xf32>
    %c0_3 = arith.constant 0 : index
    %c0_4 = arith.constant 0 : index
    %5 = vector.load %arg6[%c0_3, %c0_4] : memref<16x16xf32, #tpu.memory_space<vmem>>, vector<16x16xf32>
    %cst = arith.constant 0.000000e+00 : f32
    %6 = vector.broadcast %cst : f32 to vector<16x16xf32>
    %c0_5 = arith.constant 0 : index
    %c0_6 = arith.constant 0 : index
    %7 = memref.load %arg0[%c0_5, %c0_6] : memref<2x2xi32, #tpu.memory_space<smem>>
    %c0_7 = arith.constant 0 : index
    %c0_8 = arith.constant 0 : index
    %8 = memref.load %arg1[%c0_7, %c0_8] : memref<2x2xf32, #tpu.memory_space<smem>>
    %9 = vector.broadcast %7 : i32 to vector<16x16xi32>
    %10 = arith.cmpi eq, %2, %9 : vector<16x16xi32>
    %c16_i32 = arith.constant 16 : i32
    %11 = arith.subi %7, %c16_i32 : i32
    %12 = vector.broadcast %11 : i32 to vector<16x16xi32>
    %13 = arith.cmpi eq, %2, %12 : vector<16x16xi32>
    %14 = arith.ori %10, %13 : vector<16x16xi1>
    %cst_9 = arith.constant 0.000000e+00 : f32
    %15 = vector.broadcast %8 : f32 to vector<16x16xf32>
    %16 = vector.broadcast %cst_9 : f32 to vector<16x16xf32>
    %17 = arith.select %14, %15, %16 : vector<16x16xi1>, vector<16x16xf32>
    %18 = arith.addf %6, %17 : vector<16x16xf32>
    %c0_10 = arith.constant 0 : index
    %c1 = arith.constant 1 : index
    %19 = memref.load %arg0[%c0_10, %c1] : memref<2x2xi32, #tpu.memory_space<smem>>
    %c0_11 = arith.constant 0 : index
    %c1_12 = arith.constant 1 : index
    %20 = memref.load %arg1[%c0_11, %c1_12] : memref<2x2xf32, #tpu.memory_space<smem>>
    %21 = vector.broadcast %19 : i32 to vector<16x16xi32>
    %22 = arith.cmpi eq, %2, %21 : vector<16x16xi32>
    %c16_i32_13 = arith.constant 16 : i32
    %23 = arith.subi %19, %c16_i32_13 : i32
    %24 = vector.broadcast %23 : i32 to vector<16x16xi32>
    %25 = arith.cmpi eq, %2, %24 : vector<16x16xi32>
    %26 = arith.ori %22, %25 : vector<16x16xi1>
    %cst_14 = arith.constant 0.000000e+00 : f32
    %27 = vector.broadcast %20 : f32 to vector<16x16xf32>
    %28 = vector.broadcast %cst_14 : f32 to vector<16x16xf32>
    %29 = arith.select %26, %27, %28 : vector<16x16xi1>, vector<16x16xf32>
    %30 = arith.addf %18, %29 : vector<16x16xf32>
    %31 = vector.extract_strided_slice %3 {offsets = [0, 0], sizes = [16, 32], strides = [1, 1]} : vector<32x32xf32> to vector<16x32xf32>
    %cst_15 = arith.constant dense<0.000000e+00> : vector<16x32xf32>
    %32 = tpu.matmul %30, %31, %cst_15 {dimension_numbers = #tpu.dot_dimension_numbers<[1], [0], [0], [1], [0, 0, 1, 1], [], []>} : vector<16x16xf32>, vector<16x32xf32>, vector<16x32xf32> -> vector<16x32xf32>
    %c0_16 = arith.constant 0 : index
    %c0_17 = arith.constant 0 : index
    %33 = vector.load %arg4[%c0_16, %c0_17] : memref<32x32xf32, #tpu.memory_space<vmem>>, vector<32x32xf32>
    %cst_18 = arith.constant dense<0.000000e+00> : vector<16x32xf32>
    %34 = tpu.matmul %32, %33, %cst_18 {dimension_numbers = #tpu.dot_dimension_numbers<[1], [0], [0], [1], [0, 0, 1, 1], [], []>} : vector<16x32xf32>, vector<32x32xf32>, vector<16x32xf32> -> vector<16x32xf32>
    %c0_19 = arith.constant 0 : index
    %c0_20 = arith.constant 0 : index
    %35 = vector.load %arg5[%c0_19, %c0_20] : memref<1x32xf32, #tpu.memory_space<vmem>>, vector<1x32xf32>
    %36 = vector.broadcast %35 : vector<1x32xf32> to vector<16x32xf32>
    %37 = arith.addf %34, %36 : vector<16x32xf32>
    %38 = vector.extract_strided_slice %4 {offsets = [0, 0], sizes = [16, 32], strides = [1, 1]} : vector<32x32xf32> to vector<16x32xf32>
    %39 = arith.addf %38, %37 : vector<16x32xf32>
    %cst_21 = arith.constant dense<0.000000e+00> : vector<16x32xf32>
    %40 = tpu.matmul %5, %39, %cst_21 {dimension_numbers = #tpu.dot_dimension_numbers<[1], [0], [0], [1], [0, 0, 1, 1], [], []>} : vector<16x16xf32>, vector<16x32xf32>, vector<16x32xf32> -> vector<16x32xf32>
    %41 = arith.subf %39, %40 : vector<16x32xf32>
    %c0_22 = arith.constant 0 : index
    %c0_23 = arith.constant 0 : index
    %42 = vector.load %arg7[%c0_22, %c0_23] : memref<32x64xf32, #tpu.memory_space<vmem>>, vector<32x64xf32>
    %cst_24 = arith.constant dense<0.000000e+00> : vector<16x64xf32>
    %43 = tpu.matmul %41, %42, %cst_24 {dimension_numbers = #tpu.dot_dimension_numbers<[1], [0], [0], [1], [0, 0, 1, 1], [], []>} : vector<16x32xf32>, vector<32x64xf32>, vector<16x64xf32> -> vector<16x64xf32>
    %cst_25 = arith.constant 5.000000e-01 : f32
    %44 = vector.broadcast %cst_25 : f32 to vector<16x64xf32>
    %45 = arith.mulf %44, %43 : vector<16x64xf32>
    %cst_26 = arith.constant 0.707106769 : f32
    %46 = vector.broadcast %cst_26 : f32 to vector<16x64xf32>
    %47 = arith.mulf %43, %46 : vector<16x64xf32>
    %cst_27 = arith.constant -3.8325069 : f32
    %cst_28 = arith.constant 3.8325069 : f32
    %48 = vector.broadcast %cst_27 : f32 to vector<16x64xf32>
    %49 = arith.maximumf %48, %47 : vector<16x64xf32>
    %50 = vector.broadcast %cst_28 : f32 to vector<16x64xf32>
    %51 = arith.minimumf %50, %49 : vector<16x64xf32>
    %52 = arith.mulf %51, %51 : vector<16x64xf32>
    %cst_29 = arith.constant 2.29050653E-4 : f32
    %53 = vector.broadcast %cst_29 : f32 to vector<16x64xf32>
    %54 = arith.mulf %53, %52 : vector<16x64xf32>
    %cst_30 = arith.constant 0.00340829091 : f32
    %55 = vector.broadcast %cst_30 : f32 to vector<16x64xf32>
    %56 = arith.addf %54, %55 : vector<16x64xf32>
    %57 = arith.mulf %56, %52 : vector<16x64xf32>
    %cst_31 = arith.constant 0.0509556942 : f32
    %58 = vector.broadcast %cst_31 : f32 to vector<16x64xf32>
    %59 = arith.addf %57, %58 : vector<16x64xf32>
    %60 = arith.mulf %59, %52 : vector<16x64xf32>
    %cst_32 = arith.constant 0.185208321 : f32
    %61 = vector.broadcast %cst_32 : f32 to vector<16x64xf32>
    %62 = arith.addf %60, %61 : vector<16x64xf32>
    %63 = arith.mulf %62, %52 : vector<16x64xf32>
    %cst_33 = arith.constant 1.12837911 : f32
    %64 = vector.broadcast %cst_33 : f32 to vector<16x64xf32>
    %65 = arith.addf %63, %64 : vector<16x64xf32>
    %cst_34 = arith.constant -1.17916031E-7 : f32
    %66 = vector.broadcast %cst_34 : f32 to vector<16x64xf32>
    %67 = arith.mulf %66, %52 : vector<16x64xf32>
    %cst_35 = arith.constant 2.35479656E-5 : f32
    %68 = vector.broadcast %cst_35 : f32 to vector<16x64xf32>
    %69 = arith.addf %67, %68 : vector<16x64xf32>
    %70 = arith.mulf %69, %52 : vector<16x64xf32>
    %cst_36 = arith.constant 0.00101796258 : f32
    %71 = vector.broadcast %cst_36 : f32 to vector<16x64xf32>
    %72 = arith.addf %70, %71 : vector<16x64xf32>
    %73 = arith.mulf %72, %52 : vector<16x64xf32>
    %cst_37 = arith.constant 0.0140704699 : f32
    %74 = vector.broadcast %cst_37 : f32 to vector<16x64xf32>
    %75 = arith.addf %73, %74 : vector<16x64xf32>
    %76 = arith.mulf %75, %52 : vector<16x64xf32>
    %cst_38 = arith.constant 0.110985048 : f32
    %77 = vector.broadcast %cst_38 : f32 to vector<16x64xf32>
    %78 = arith.addf %76, %77 : vector<16x64xf32>
    %79 = arith.mulf %78, %52 : vector<16x64xf32>
    %cst_39 = arith.constant 0.497469246 : f32
    %80 = vector.broadcast %cst_39 : f32 to vector<16x64xf32>
    %81 = arith.addf %79, %80 : vector<16x64xf32>
    %82 = arith.mulf %81, %52 : vector<16x64xf32>
    %cst_40 = arith.constant 1.000000e+00 : f32
    %83 = vector.broadcast %cst_40 : f32 to vector<16x64xf32>
    %84 = arith.addf %82, %83 : vector<16x64xf32>
    %85 = arith.mulf %51, %65 : vector<16x64xf32>
    %86 = arith.divf %85, %84 : vector<16x64xf32>
    %cst_41 = arith.constant 1.000000e+00 : f32
    %87 = vector.broadcast %cst_41 : f32 to vector<16x64xf32>
    %88 = arith.addf %87, %86 : vector<16x64xf32>
    %89 = arith.mulf %45, %88 : vector<16x64xf32>
    %c0_42 = arith.constant 0 : index
    %c0_43 = arith.constant 0 : index
    %90 = vector.load %arg8[%c0_42, %c0_43] : memref<64x32xf32, #tpu.memory_space<vmem>>, vector<64x32xf32>
    %cst_44 = arith.constant dense<0.000000e+00> : vector<16x32xf32>
    %91 = tpu.matmul %89, %90, %cst_44 {dimension_numbers = #tpu.dot_dimension_numbers<[1], [0], [0], [1], [0, 0, 1, 1], [], []>} : vector<16x64xf32>, vector<64x32xf32>, vector<16x32xf32> -> vector<16x32xf32>
    %92 = arith.addf %41, %91 : vector<16x32xf32>
    %cst_45 = arith.constant dense<0.000000e+00> : vector<16x32xf32>
    %93 = tpu.matmul %5, %92, %cst_45 {dimension_numbers = #tpu.dot_dimension_numbers<[1], [0], [0], [1], [0, 0, 1, 1], [], []>} : vector<16x16xf32>, vector<16x32xf32>, vector<16x32xf32> -> vector<16x32xf32>
    %94 = arith.subf %92, %93 : vector<16x32xf32>
    %cst_46 = arith.constant dense<0.000000e+00> : vector<16xf32>
    %95 = vector.multi_reduction <add>, %94, %cst_46 [1] : vector<16x32xf32> to vector<16xf32>
    %96 = vector.shape_cast %95 : vector<16xf32> to vector<16x1xf32>
    %cst_47 = arith.constant 3.200000e+01 : f32
    %97 = vector.broadcast %cst_47 : f32 to vector<16x1xf32>
    %98 = arith.divf %96, %97 : vector<16x1xf32>
    %99 = vector.broadcast %98 : vector<16x1xf32> to vector<16x32xf32>
    %100 = arith.subf %94, %99 : vector<16x32xf32>
    %101 = arith.mulf %100, %100 : vector<16x32xf32>
    %cst_48 = arith.constant dense<0.000000e+00> : vector<16xf32>
    %102 = vector.multi_reduction <add>, %101, %cst_48 [1] : vector<16x32xf32> to vector<16xf32>
    %103 = vector.shape_cast %102 : vector<16xf32> to vector<16x1xf32>
    %cst_49 = arith.constant 3.200000e+01 : f32
    %104 = vector.broadcast %cst_49 : f32 to vector<16x1xf32>
    %105 = arith.divf %103, %104 : vector<16x1xf32>
    %106 = vector.broadcast %98 : vector<16x1xf32> to vector<16x32xf32>
    %107 = arith.subf %94, %106 : vector<16x32xf32>
    %cst_50 = arith.constant 9.99999974E-6 : f32
    %108 = vector.broadcast %cst_50 : f32 to vector<16x1xf32>
    %109 = arith.addf %105, %108 : vector<16x1xf32>
    %110 = math.rsqrt %109 : vector<16x1xf32>
    %111 = vector.broadcast %110 : vector<16x1xf32> to vector<16x32xf32>
    %112 = arith.mulf %107, %111 : vector<16x32xf32>
    %c0_51 = arith.constant 0 : index
    %c0_52 = arith.constant 0 : index
    %113 = vector.load %arg9[%c0_51, %c0_52] : memref<1x32xf32, #tpu.memory_space<vmem>>, vector<1x32xf32>
    %114 = vector.broadcast %113 : vector<1x32xf32> to vector<16x32xf32>
    %115 = arith.mulf %112, %114 : vector<16x32xf32>
    %c0_53 = arith.constant 0 : index
    %c0_54 = arith.constant 0 : index
    %116 = vector.load %arg10[%c0_53, %c0_54] : memref<1x32xf32, #tpu.memory_space<vmem>>, vector<1x32xf32>
    %117 = vector.broadcast %116 : vector<1x32xf32> to vector<16x32xf32>
    %118 = arith.addf %115, %117 : vector<16x32xf32>
    %cst_55 = arith.constant dense<0.000000e+00> : vector<32xf32>
    %119 = vector.multi_reduction <add>, %118, %cst_55 [0] : vector<16x32xf32> to vector<32xf32>
    %120 = vector.shape_cast %119 : vector<32xf32> to vector<1x32xf32>
    %cst_56 = arith.constant 1.600000e+01 : f32
    %121 = vector.broadcast %cst_56 : f32 to vector<1x32xf32>
    %122 = arith.divf %120, %121 : vector<1x32xf32>
    %123 = vector.broadcast %122 : vector<1x32xf32> to vector<16x32xf32>
    %124 = arith.subf %118, %123 : vector<16x32xf32>
    %c0_57 = arith.constant 0 : index
    %c0_58 = arith.constant 0 : index
    %125 = vector.load %arg11[%c0_57, %c0_58] : memref<32x32xf32, #tpu.memory_space<vmem>>, vector<16x32xf32>
    tpu.vector_store %arg11[%c0_57, %c0_58], %124 {strides = array<i32>} : memref<32x32xf32, #tpu.memory_space<vmem>>, vector<16x32xf32>,
    %cst_59 = arith.constant 0.000000e+00 : f32
    %126 = vector.broadcast %cst_59 : f32 to vector<16x16xf32>
    %c1_60 = arith.constant 1 : index
    %c0_61 = arith.constant 0 : index
    %127 = memref.load %arg0[%c1_60, %c0_61] : memref<2x2xi32, #tpu.memory_space<smem>>
    %c1_62 = arith.constant 1 : index
    %c0_63 = arith.constant 0 : index
    %128 = memref.load %arg1[%c1_62, %c0_63] : memref<2x2xf32, #tpu.memory_space<smem>>
    %129 = vector.broadcast %127 : i32 to vector<16x16xi32>
    %130 = arith.cmpi eq, %2, %129 : vector<16x16xi32>
    %c16_i32_64 = arith.constant 16 : i32
    %131 = arith.subi %127, %c16_i32_64 : i32
    %132 = vector.broadcast %131 : i32 to vector<16x16xi32>
    %133 = arith.cmpi eq, %2, %132 : vector<16x16xi32>
    %134 = arith.ori %130, %133 : vector<16x16xi1>
    %cst_65 = arith.constant 0.000000e+00 : f32
    %135 = vector.broadcast %128 : f32 to vector<16x16xf32>
    %136 = vector.broadcast %cst_65 : f32 to vector<16x16xf32>
    %137 = arith.select %134, %135, %136 : vector<16x16xi1>, vector<16x16xf32>
    %138 = arith.addf %126, %137 : vector<16x16xf32>
    %c1_66 = arith.constant 1 : index
    %c1_67 = arith.constant 1 : index
    %139 = memref.load %arg0[%c1_66, %c1_67] : memref<2x2xi32, #tpu.memory_space<smem>>
    %c1_68 = arith.constant 1 : index
    %c1_69 = arith.constant 1 : index
    %140 = memref.load %arg1[%c1_68, %c1_69] : memref<2x2xf32, #tpu.memory_space<smem>>
    %141 = vector.broadcast %139 : i32 to vector<16x16xi32>
    %142 = arith.cmpi eq, %2, %141 : vector<16x16xi32>
    %c16_i32_70 = arith.constant 16 : i32
    %143 = arith.subi %139, %c16_i32_70 : i32
    %144 = vector.broadcast %143 : i32 to vector<16x16xi32>
    %145 = arith.cmpi eq, %2, %144 : vector<16x16xi32>
    %146 = arith.ori %142, %145 : vector<16x16xi1>
    %cst_71 = arith.constant 0.000000e+00 : f32
    %147 = vector.broadcast %140 : f32 to vector<16x16xf32>
    %148 = vector.broadcast %cst_71 : f32 to vector<16x16xf32>
    %149 = arith.select %146, %147, %148 : vector<16x16xi1>, vector<16x16xf32>
    %150 = arith.addf %138, %149 : vector<16x16xf32>
    %151 = vector.extract_strided_slice %3 {offsets = [16, 0], sizes = [16, 32], strides = [1, 1]} : vector<32x32xf32> to vector<16x32xf32>
    %cst_72 = arith.constant dense<0.000000e+00> : vector<16x32xf32>
    %152 = tpu.matmul %150, %151, %cst_72 {dimension_numbers = #tpu.dot_dimension_numbers<[1], [0], [0], [1], [0, 0, 1, 1], [], []>} : vector<16x16xf32>, vector<16x32xf32>, vector<16x32xf32> -> vector<16x32xf32>
    %c0_73 = arith.constant 0 : index
    %c0_74 = arith.constant 0 : index
    %153 = vector.load %arg4[%c0_73, %c0_74] : memref<32x32xf32, #tpu.memory_space<vmem>>, vector<32x32xf32>
    %cst_75 = arith.constant dense<0.000000e+00> : vector<16x32xf32>
    %154 = tpu.matmul %152, %153, %cst_75 {dimension_numbers = #tpu.dot_dimension_numbers<[1], [0], [0], [1], [0, 0, 1, 1], [], []>} : vector<16x32xf32>, vector<32x32xf32>, vector<16x32xf32> -> vector<16x32xf32>
    %c0_76 = arith.constant 0 : index
    %c0_77 = arith.constant 0 : index
    %155 = vector.load %arg5[%c0_76, %c0_77] : memref<1x32xf32, #tpu.memory_space<vmem>>, vector<1x32xf32>
    %156 = vector.broadcast %155 : vector<1x32xf32> to vector<16x32xf32>
    %157 = arith.addf %154, %156 : vector<16x32xf32>
    %158 = vector.extract_strided_slice %4 {offsets = [16, 0], sizes = [16, 32], strides = [1, 1]} : vector<32x32xf32> to vector<16x32xf32>
    %159 = arith.addf %158, %157 : vector<16x32xf32>
    %cst_78 = arith.constant dense<0.000000e+00> : vector<16x32xf32>
    %160 = tpu.matmul %5, %159, %cst_78 {dimension_numbers = #tpu.dot_dimension_numbers<[1], [0], [0], [1], [0, 0, 1, 1], [], []>} : vector<16x16xf32>, vector<16x32xf32>, vector<16x32xf32> -> vector<16x32xf32>
    %161 = arith.subf %159, %160 : vector<16x32xf32>
    %c0_79 = arith.constant 0 : index
    %c0_80 = arith.constant 0 : index
    %162 = vector.load %arg7[%c0_79, %c0_80] : memref<32x64xf32, #tpu.memory_space<vmem>>, vector<32x64xf32>
    %cst_81 = arith.constant dense<0.000000e+00> : vector<16x64xf32>
    %163 = tpu.matmul %161, %162, %cst_81 {dimension_numbers = #tpu.dot_dimension_numbers<[1], [0], [0], [1], [0, 0, 1, 1], [], []>} : vector<16x32xf32>, vector<32x64xf32>, vector<16x64xf32> -> vector<16x64xf32>
    %cst_82 = arith.constant 5.000000e-01 : f32
    %164 = vector.broadcast %cst_82 : f32 to vector<16x64xf32>
    %165 = arith.mulf %164, %163 : vector<16x64xf32>
    %cst_83 = arith.constant 0.707106769 : f32
    %166 = vector.broadcast %cst_83 : f32 to vector<16x64xf32>
    %167 = arith.mulf %163, %166 : vector<16x64xf32>
    %cst_84 = arith.constant -3.8325069 : f32
    %cst_85 = arith.constant 3.8325069 : f32
    %168 = vector.broadcast %cst_84 : f32 to vector<16x64xf32>
    %169 = arith.maximumf %168, %167 : vector<16x64xf32>
    %170 = vector.broadcast %cst_85 : f32 to vector<16x64xf32>
    %171 = arith.minimumf %170, %169 : vector<16x64xf32>
    %172 = arith.mulf %171, %171 : vector<16x64xf32>
    %cst_86 = arith.constant 2.29050653E-4 : f32
    %173 = vector.broadcast %cst_86 : f32 to vector<16x64xf32>
    %174 = arith.mulf %173, %172 : vector<16x64xf32>
    %cst_87 = arith.constant 0.00340829091 : f32
    %175 = vector.broadcast %cst_87 : f32 to vector<16x64xf32>
    %176 = arith.addf %174, %175 : vector<16x64xf32>
    %177 = arith.mulf %176, %172 : vector<16x64xf32>
    %cst_88 = arith.constant 0.0509556942 : f32
    %178 = vector.broadcast %cst_88 : f32 to vector<16x64xf32>
    %179 = arith.addf %177, %178 : vector<16x64xf32>
    %180 = arith.mulf %179, %172 : vector<16x64xf32>
    %cst_89 = arith.constant 0.185208321 : f32
    %181 = vector.broadcast %cst_89 : f32 to vector<16x64xf32>
    %182 = arith.addf %180, %181 : vector<16x64xf32>
    %183 = arith.mulf %182, %172 : vector<16x64xf32>
    %cst_90 = arith.constant 1.12837911 : f32
    %184 = vector.broadcast %cst_90 : f32 to vector<16x64xf32>
    %185 = arith.addf %183, %184 : vector<16x64xf32>
    %cst_91 = arith.constant -1.17916031E-7 : f32
    %186 = vector.broadcast %cst_91 : f32 to vector<16x64xf32>
    %187 = arith.mulf %186, %172 : vector<16x64xf32>
    %cst_92 = arith.constant 2.35479656E-5 : f32
    %188 = vector.broadcast %cst_92 : f32 to vector<16x64xf32>
    %189 = arith.addf %187, %188 : vector<16x64xf32>
    %190 = arith.mulf %189, %172 : vector<16x64xf32>
    %cst_93 = arith.constant 0.00101796258 : f32
    %191 = vector.broadcast %cst_93 : f32 to vector<16x64xf32>
    %192 = arith.addf %190, %191 : vector<16x64xf32>
    %193 = arith.mulf %192, %172 : vector<16x64xf32>
    %cst_94 = arith.constant 0.0140704699 : f32
    %194 = vector.broadcast %cst_94 : f32 to vector<16x64xf32>
    %195 = arith.addf %193, %194 : vector<16x64xf32>
    %196 = arith.mulf %195, %172 : vector<16x64xf32>
    %cst_95 = arith.constant 0.110985048 : f32
    %197 = vector.broadcast %cst_95 : f32 to vector<16x64xf32>
    %198 = arith.addf %196, %197 : vector<16x64xf32>
    %199 = arith.mulf %198, %172 : vector<16x64xf32>
    %cst_96 = arith.constant 0.497469246 : f32
    %200 = vector.broadcast %cst_96 : f32 to vector<16x64xf32>
    %201 = arith.addf %199, %200 : vector<16x64xf32>
    %202 = arith.mulf %201, %172 : vector<16x64xf32>
    %cst_97 = arith.constant 1.000000e+00 : f32
    %203 = vector.broadcast %cst_97 : f32 to vector<16x64xf32>
    %204 = arith.addf %202, %203 : vector<16x64xf32>
    %205 = arith.mulf %171, %185 : vector<16x64xf32>
    %206 = arith.divf %205, %204 : vector<16x64xf32>
    %cst_98 = arith.constant 1.000000e+00 : f32
    %207 = vector.broadcast %cst_98 : f32 to vector<16x64xf32>
    %208 = arith.addf %207, %206 : vector<16x64xf32>
    %209 = arith.mulf %165, %208 : vector<16x64xf32>
    %c0_99 = arith.constant 0 : index
    %c0_100 = arith.constant 0 : index
    %210 = vector.load %arg8[%c0_99, %c0_100] : memref<64x32xf32, #tpu.memory_space<vmem>>, vector<64x32xf32>
    %cst_101 = arith.constant dense<0.000000e+00> : vector<16x32xf32>
    %211 = tpu.matmul %209, %210, %cst_101 {dimension_numbers = #tpu.dot_dimension_numbers<[1], [0], [0], [1], [0, 0, 1, 1], [], []>} : vector<16x64xf32>, vector<64x32xf32>, vector<16x32xf32> -> vector<16x32xf32>
    %212 = arith.addf %161, %211 : vector<16x32xf32>
    %cst_102 = arith.constant dense<0.000000e+00> : vector<16x32xf32>
    %213 = tpu.matmul %5, %212, %cst_102 {dimension_numbers = #tpu.dot_dimension_numbers<[1], [0], [0], [1], [0, 0, 1, 1], [], []>} : vector<16x16xf32>, vector<16x32xf32>, vector<16x32xf32> -> vector<16x32xf32>
    %214 = arith.subf %212, %213 : vector<16x32xf32>
    %cst_103 = arith.constant dense<0.000000e+00> : vector<16xf32>
    %215 = vector.multi_reduction <add>, %214, %cst_103 [1] : vector<16x32xf32> to vector<16xf32>
    %216 = vector.shape_cast %215 : vector<16xf32> to vector<16x1xf32>
    %cst_104 = arith.constant 3.200000e+01 : f32
    %217 = vector.broadcast %cst_104 : f32 to vector<16x1xf32>
    %218 = arith.divf %216, %217 : vector<16x1xf32>
    %219 = vector.broadcast %218 : vector<16x1xf32> to vector<16x32xf32>
    %220 = arith.subf %214, %219 : vector<16x32xf32>
    %221 = arith.mulf %220, %220 : vector<16x32xf32>
    %cst_105 = arith.constant dense<0.000000e+00> : vector<16xf32>
    %222 = vector.multi_reduction <add>, %221, %cst_105 [1] : vector<16x32xf32> to vector<16xf32>
    %223 = vector.shape_cast %222 : vector<16xf32> to vector<16x1xf32>
    %cst_106 = arith.constant 3.200000e+01 : f32
    %224 = vector.broadcast %cst_106 : f32 to vector<16x1xf32>
    %225 = arith.divf %223, %224 : vector<16x1xf32>
    %226 = vector.broadcast %218 : vector<16x1xf32> to vector<16x32xf32>
    %227 = arith.subf %214, %226 : vector<16x32xf32>
    %cst_107 = arith.constant 9.99999974E-6 : f32
    %228 = vector.broadcast %cst_107 : f32 to vector<16x1xf32>
    %229 = arith.addf %225, %228 : vector<16x1xf32>
    %230 = math.rsqrt %229 : vector<16x1xf32>
    %231 = vector.broadcast %230 : vector<16x1xf32> to vector<16x32xf32>
    %232 = arith.mulf %227, %231 : vector<16x32xf32>
    %c0_108 = arith.constant 0 : index
    %c0_109 = arith.constant 0 : index
    %233 = vector.load %arg9[%c0_108, %c0_109] : memref<1x32xf32, #tpu.memory_space<vmem>>, vector<1x32xf32>
    %234 = vector.broadcast %233 : vector<1x32xf32> to vector<16x32xf32>
    %235 = arith.mulf %232, %234 : vector<16x32xf32>
    %c0_110 = arith.constant 0 : index
    %c0_111 = arith.constant 0 : index
    %236 = vector.load %arg10[%c0_110, %c0_111] : memref<1x32xf32, #tpu.memory_space<vmem>>, vector<1x32xf32>
    %237 = vector.broadcast %236 : vector<1x32xf32> to vector<16x32xf32>
    %238 = arith.addf %235, %237 : vector<16x32xf32>
    %cst_112 = arith.constant dense<0.000000e+00> : vector<32xf32>
    %239 = vector.multi_reduction <add>, %238, %cst_112 [0] : vector<16x32xf32> to vector<32xf32>
    %240 = vector.shape_cast %239 : vector<32xf32> to vector<1x32xf32>
    %cst_113 = arith.constant 1.600000e+01 : f32
    %241 = vector.broadcast %cst_113 : f32 to vector<1x32xf32>
    %242 = arith.divf %240, %241 : vector<1x32xf32>
    %243 = vector.broadcast %242 : vector<1x32xf32> to vector<16x32xf32>
    %244 = arith.subf %238, %243 : vector<16x32xf32>
    %c16 = arith.constant 16 : index
    %c0_114 = arith.constant 0 : index
    %245 = vector.load %arg11[%c16, %c0_114] : memref<32x32xf32, #tpu.memory_space<vmem>>, vector<16x32xf32>
    tpu.vector_store %arg11[%c16, %c0_114], %244 {strides = array<i32>} : memref<32x32xf32, #tpu.memory_space<vmem>>, vector<16x32xf32>,
    return
  }
}

module attributes {stable_mosaic.version = 11 : i64} {
  func.func @_agg_block_kernel(%arg0: memref<2x2xi32, #tpu.memory_space<smem>>, %arg1: memref<2x2xf32, #tpu.memory_space<smem>>, %arg2: memref<32x32xf32, #tpu.memory_space<vmem>>, %arg3: memref<32x32xf32, #tpu.memory_space<vmem>>, %arg4: memref<32x32xf32, #tpu.memory_space<vmem>>, %arg5: memref<1x32xf32, #tpu.memory_space<vmem>>, %arg6: memref<16x16xf32, #tpu.memory_space<vmem>>, %arg7: memref<32x64xf32, #tpu.memory_space<vmem>>, %arg8: memref<64x32xf32, #tpu.memory_space<vmem>>, %arg9: memref<1x32xf32, #tpu.memory_space<vmem>>, %arg10: memref<1x32xf32, #tpu.memory_space<vmem>>, %arg11: memref<2x32x32xf32, #tpu.memory_space<vmem>>) attributes {dimension_semantics = [], scalar_prefetch = 0 : i64, scratch_operands = 0 : i64, tpu.core_type = #tpu.core_type<tc>} {
    %0 = tpu.iota {dimensions = array<i32: 0>} : vector<16x16xi32>
    %1 = tpu.iota {dimensions = array<i32: 1>} : vector<16x16xi32>
    %2 = arith.subi %1, %0 : vector<16x16xi32>
    %c0 = arith.constant 0 : index
    %c0_0 = arith.constant 0 : index
    %3 = vector.load %arg2[%c0, %c0_0] : memref<32x32xf32, #tpu.memory_space<vmem>>, vector<32x32xf32>
    %c0_1 = arith.constant 0 : index
    %c0_2 = arith.constant 0 : index
    %4 = vector.load %arg3[%c0_1, %c0_2] : memref<32x32xf32, #tpu.memory_space<vmem>>, vector<32x32xf32>
    %c0_3 = arith.constant 0 : index
    %c0_4 = arith.constant 0 : index
    %5 = vector.load %arg6[%c0_3, %c0_4] : memref<16x16xf32, #tpu.memory_space<vmem>>, vector<16x16xf32>
    %cst = arith.constant 0.000000e+00 : f32
    %6 = vector.broadcast %cst : f32 to vector<16x16xf32>
    %c0_5 = arith.constant 0 : index
    %c0_6 = arith.constant 0 : index
    %7 = memref.load %arg0[%c0_5, %c0_6] : memref<2x2xi32, #tpu.memory_space<smem>>
    %c0_7 = arith.constant 0 : index
    %c0_8 = arith.constant 0 : index
    %8 = memref.load %arg1[%c0_7, %c0_8] : memref<2x2xf32, #tpu.memory_space<smem>>
    %9 = vector.broadcast %7 : i32 to vector<16x16xi32>
    %10 = arith.cmpi eq, %2, %9 : vector<16x16xi32>
    %c16_i32 = arith.constant 16 : i32
    %11 = arith.subi %7, %c16_i32 : i32
    %12 = vector.broadcast %11 : i32 to vector<16x16xi32>
    %13 = arith.cmpi eq, %2, %12 : vector<16x16xi32>
    %14 = arith.ori %10, %13 : vector<16x16xi1>
    %cst_9 = arith.constant 0.000000e+00 : f32
    %15 = vector.broadcast %8 : f32 to vector<16x16xf32>
    %16 = vector.broadcast %cst_9 : f32 to vector<16x16xf32>
    %17 = arith.select %14, %15, %16 : vector<16x16xi1>, vector<16x16xf32>
    %18 = arith.addf %6, %17 : vector<16x16xf32>
    %c0_10 = arith.constant 0 : index
    %c1 = arith.constant 1 : index
    %19 = memref.load %arg0[%c0_10, %c1] : memref<2x2xi32, #tpu.memory_space<smem>>
    %c0_11 = arith.constant 0 : index
    %c1_12 = arith.constant 1 : index
    %20 = memref.load %arg1[%c0_11, %c1_12] : memref<2x2xf32, #tpu.memory_space<smem>>
    %21 = vector.broadcast %19 : i32 to vector<16x16xi32>
    %22 = arith.cmpi eq, %2, %21 : vector<16x16xi32>
    %c16_i32_13 = arith.constant 16 : i32
    %23 = arith.subi %19, %c16_i32_13 : i32
    %24 = vector.broadcast %23 : i32 to vector<16x16xi32>
    %25 = arith.cmpi eq, %2, %24 : vector<16x16xi32>
    %26 = arith.ori %22, %25 : vector<16x16xi1>
    %cst_14 = arith.constant 0.000000e+00 : f32
    %27 = vector.broadcast %20 : f32 to vector<16x16xf32>
    %28 = vector.broadcast %cst_14 : f32 to vector<16x16xf32>
    %29 = arith.select %26, %27, %28 : vector<16x16xi1>, vector<16x16xf32>
    %30 = arith.addf %18, %29 : vector<16x16xf32>
    %31 = vector.extract_strided_slice %3 {offsets = [0, 0], sizes = [16, 32], strides = [1, 1]} : vector<32x32xf32> to vector<16x32xf32>
    %cst_15 = arith.constant dense<0.000000e+00> : vector<16x32xf32>
    %32 = tpu.matmul %30, %31, %cst_15 {dimension_numbers = #tpu.dot_dimension_numbers<[1], [0], [0], [1], [0, 0, 1, 1], [], []>} : vector<16x16xf32>, vector<16x32xf32>, vector<16x32xf32> -> vector<16x32xf32>
    %c0_16 = arith.constant 0 : index
    %c0_17 = arith.constant 0 : index
    %33 = vector.load %arg4[%c0_16, %c0_17] : memref<32x32xf32, #tpu.memory_space<vmem>>, vector<32x32xf32>
    %cst_18 = arith.constant dense<0.000000e+00> : vector<16x32xf32>
    %34 = tpu.matmul %32, %33, %cst_18 {dimension_numbers = #tpu.dot_dimension_numbers<[1], [0], [0], [1], [0, 0, 1, 1], [], []>} : vector<16x32xf32>, vector<32x32xf32>, vector<16x32xf32> -> vector<16x32xf32>
    %c0_19 = arith.constant 0 : index
    %c0_20 = arith.constant 0 : index
    %35 = vector.load %arg5[%c0_19, %c0_20] : memref<1x32xf32, #tpu.memory_space<vmem>>, vector<1x32xf32>
    %36 = vector.broadcast %35 : vector<1x32xf32> to vector<16x32xf32>
    %37 = arith.addf %34, %36 : vector<16x32xf32>
    %38 = vector.extract_strided_slice %4 {offsets = [0, 0], sizes = [16, 32], strides = [1, 1]} : vector<32x32xf32> to vector<16x32xf32>
    %39 = arith.addf %38, %37 : vector<16x32xf32>
    %cst_21 = arith.constant dense<0.000000e+00> : vector<16x32xf32>
    %40 = tpu.matmul %5, %39, %cst_21 {dimension_numbers = #tpu.dot_dimension_numbers<[1], [0], [0], [1], [0, 0, 1, 1], [], []>} : vector<16x16xf32>, vector<16x32xf32>, vector<16x32xf32> -> vector<16x32xf32>
    %41 = arith.subf %39, %40 : vector<16x32xf32>
    %c0_22 = arith.constant 0 : index
    %c0_23 = arith.constant 0 : index
    %42 = vector.load %arg7[%c0_22, %c0_23] : memref<32x64xf32, #tpu.memory_space<vmem>>, vector<32x64xf32>
    %cst_24 = arith.constant dense<0.000000e+00> : vector<16x64xf32>
    %43 = tpu.matmul %41, %42, %cst_24 {dimension_numbers = #tpu.dot_dimension_numbers<[1], [0], [0], [1], [0, 0, 1, 1], [], []>} : vector<16x32xf32>, vector<32x64xf32>, vector<16x64xf32> -> vector<16x64xf32>
    %cst_25 = arith.constant 5.000000e-01 : f32
    %44 = vector.broadcast %cst_25 : f32 to vector<16x64xf32>
    %45 = arith.mulf %44, %43 : vector<16x64xf32>
    %cst_26 = arith.constant 0.707106769 : f32
    %46 = vector.broadcast %cst_26 : f32 to vector<16x64xf32>
    %47 = arith.mulf %43, %46 : vector<16x64xf32>
    %cst_27 = arith.constant -3.8325069 : f32
    %cst_28 = arith.constant 3.8325069 : f32
    %48 = vector.broadcast %cst_27 : f32 to vector<16x64xf32>
    %49 = arith.maximumf %48, %47 : vector<16x64xf32>
    %50 = vector.broadcast %cst_28 : f32 to vector<16x64xf32>
    %51 = arith.minimumf %50, %49 : vector<16x64xf32>
    %52 = arith.mulf %51, %51 : vector<16x64xf32>
    %cst_29 = arith.constant 2.29050653E-4 : f32
    %53 = vector.broadcast %cst_29 : f32 to vector<16x64xf32>
    %54 = arith.mulf %53, %52 : vector<16x64xf32>
    %cst_30 = arith.constant 0.00340829091 : f32
    %55 = vector.broadcast %cst_30 : f32 to vector<16x64xf32>
    %56 = arith.addf %54, %55 : vector<16x64xf32>
    %57 = arith.mulf %56, %52 : vector<16x64xf32>
    %cst_31 = arith.constant 0.0509556942 : f32
    %58 = vector.broadcast %cst_31 : f32 to vector<16x64xf32>
    %59 = arith.addf %57, %58 : vector<16x64xf32>
    %60 = arith.mulf %59, %52 : vector<16x64xf32>
    %cst_32 = arith.constant 0.185208321 : f32
    %61 = vector.broadcast %cst_32 : f32 to vector<16x64xf32>
    %62 = arith.addf %60, %61 : vector<16x64xf32>
    %63 = arith.mulf %62, %52 : vector<16x64xf32>
    %cst_33 = arith.constant 1.12837911 : f32
    %64 = vector.broadcast %cst_33 : f32 to vector<16x64xf32>
    %65 = arith.addf %63, %64 : vector<16x64xf32>
    %cst_34 = arith.constant -1.17916031E-7 : f32
    %66 = vector.broadcast %cst_34 : f32 to vector<16x64xf32>
    %67 = arith.mulf %66, %52 : vector<16x64xf32>
    %cst_35 = arith.constant 2.35479656E-5 : f32
    %68 = vector.broadcast %cst_35 : f32 to vector<16x64xf32>
    %69 = arith.addf %67, %68 : vector<16x64xf32>
    %70 = arith.mulf %69, %52 : vector<16x64xf32>
    %cst_36 = arith.constant 0.00101796258 : f32
    %71 = vector.broadcast %cst_36 : f32 to vector<16x64xf32>
    %72 = arith.addf %70, %71 : vector<16x64xf32>
    %73 = arith.mulf %72, %52 : vector<16x64xf32>
    %cst_37 = arith.constant 0.0140704699 : f32
    %74 = vector.broadcast %cst_37 : f32 to vector<16x64xf32>
    %75 = arith.addf %73, %74 : vector<16x64xf32>
    %76 = arith.mulf %75, %52 : vector<16x64xf32>
    %cst_38 = arith.constant 0.110985048 : f32
    %77 = vector.broadcast %cst_38 : f32 to vector<16x64xf32>
    %78 = arith.addf %76, %77 : vector<16x64xf32>
    %79 = arith.mulf %78, %52 : vector<16x64xf32>
    %cst_39 = arith.constant 0.497469246 : f32
    %80 = vector.broadcast %cst_39 : f32 to vector<16x64xf32>
    %81 = arith.addf %79, %80 : vector<16x64xf32>
    %82 = arith.mulf %81, %52 : vector<16x64xf32>
    %cst_40 = arith.constant 1.000000e+00 : f32
    %83 = vector.broadcast %cst_40 : f32 to vector<16x64xf32>
    %84 = arith.addf %82, %83 : vector<16x64xf32>
    %85 = arith.mulf %51, %65 : vector<16x64xf32>
    %86 = arith.divf %85, %84 : vector<16x64xf32>
    %cst_41 = arith.constant 1.000000e+00 : f32
    %87 = vector.broadcast %cst_41 : f32 to vector<16x64xf32>
    %88 = arith.addf %87, %86 : vector<16x64xf32>
    %89 = arith.mulf %45, %88 : vector<16x64xf32>
    %c0_42 = arith.constant 0 : index
    %c0_43 = arith.constant 0 : index
    %90 = vector.load %arg8[%c0_42, %c0_43] : memref<64x32xf32, #tpu.memory_space<vmem>>, vector<64x32xf32>
    %cst_44 = arith.constant dense<0.000000e+00> : vector<16x32xf32>
    %91 = tpu.matmul %89, %90, %cst_44 {dimension_numbers = #tpu.dot_dimension_numbers<[1], [0], [0], [1], [0, 0, 1, 1], [], []>} : vector<16x64xf32>, vector<64x32xf32>, vector<16x32xf32> -> vector<16x32xf32>
    %92 = arith.addf %41, %91 : vector<16x32xf32>
    %cst_45 = arith.constant dense<0.000000e+00> : vector<16x32xf32>
    %93 = tpu.matmul %5, %92, %cst_45 {dimension_numbers = #tpu.dot_dimension_numbers<[1], [0], [0], [1], [0, 0, 1, 1], [], []>} : vector<16x16xf32>, vector<16x32xf32>, vector<16x32xf32> -> vector<16x32xf32>
    %94 = arith.subf %92, %93 : vector<16x32xf32>
    %95 = arith.addf %40, %93 : vector<16x32xf32>
    %cst_46 = arith.constant dense<0.000000e+00> : vector<16xf32>
    %96 = vector.multi_reduction <add>, %94, %cst_46 [1] : vector<16x32xf32> to vector<16xf32>
    %97 = vector.shape_cast %96 : vector<16xf32> to vector<16x1xf32>
    %cst_47 = arith.constant 3.200000e+01 : f32
    %98 = vector.broadcast %cst_47 : f32 to vector<16x1xf32>
    %99 = arith.divf %97, %98 : vector<16x1xf32>
    %100 = vector.broadcast %99 : vector<16x1xf32> to vector<16x32xf32>
    %101 = arith.subf %94, %100 : vector<16x32xf32>
    %102 = arith.mulf %101, %101 : vector<16x32xf32>
    %cst_48 = arith.constant dense<0.000000e+00> : vector<16xf32>
    %103 = vector.multi_reduction <add>, %102, %cst_48 [1] : vector<16x32xf32> to vector<16xf32>
    %104 = vector.shape_cast %103 : vector<16xf32> to vector<16x1xf32>
    %cst_49 = arith.constant 3.200000e+01 : f32
    %105 = vector.broadcast %cst_49 : f32 to vector<16x1xf32>
    %106 = arith.divf %104, %105 : vector<16x1xf32>
    %107 = vector.broadcast %99 : vector<16x1xf32> to vector<16x32xf32>
    %108 = arith.subf %94, %107 : vector<16x32xf32>
    %cst_50 = arith.constant 9.99999974E-6 : f32
    %109 = vector.broadcast %cst_50 : f32 to vector<16x1xf32>
    %110 = arith.addf %106, %109 : vector<16x1xf32>
    %111 = math.rsqrt %110 : vector<16x1xf32>
    %112 = vector.broadcast %111 : vector<16x1xf32> to vector<16x32xf32>
    %113 = arith.mulf %108, %112 : vector<16x32xf32>
    %c0_51 = arith.constant 0 : index
    %c0_52 = arith.constant 0 : index
    %114 = vector.load %arg9[%c0_51, %c0_52] : memref<1x32xf32, #tpu.memory_space<vmem>>, vector<1x32xf32>
    %115 = vector.broadcast %114 : vector<1x32xf32> to vector<16x32xf32>
    %116 = arith.mulf %113, %115 : vector<16x32xf32>
    %c0_53 = arith.constant 0 : index
    %c0_54 = arith.constant 0 : index
    %117 = vector.load %arg10[%c0_53, %c0_54] : memref<1x32xf32, #tpu.memory_space<vmem>>, vector<1x32xf32>
    %118 = vector.broadcast %117 : vector<1x32xf32> to vector<16x32xf32>
    %119 = arith.addf %116, %118 : vector<16x32xf32>
    %cst_55 = arith.constant dense<0.000000e+00> : vector<32xf32>
    %120 = vector.multi_reduction <add>, %119, %cst_55 [0] : vector<16x32xf32> to vector<32xf32>
    %121 = vector.shape_cast %120 : vector<32xf32> to vector<1x32xf32>
    %cst_56 = arith.constant 1.600000e+01 : f32
    %122 = vector.broadcast %cst_56 : f32 to vector<1x32xf32>
    %123 = arith.divf %121, %122 : vector<1x32xf32>
    %124 = vector.broadcast %123 : vector<1x32xf32> to vector<16x32xf32>
    %125 = arith.subf %119, %124 : vector<16x32xf32>
    %c0_57 = arith.constant 0 : index
    %c0_58 = arith.constant 0 : index
    %c0_59 = arith.constant 0 : index
    %126 = vector.load %arg11[%c0_57, %c0_58, %c0_59] : memref<2x32x32xf32, #tpu.memory_space<vmem>>, vector<1x16x32xf32>
    %127 = vector.shape_cast %126 : vector<1x16x32xf32> to vector<16x32xf32>
    %128 = vector.shape_cast %125 : vector<16x32xf32> to vector<1x16x32xf32>
    tpu.vector_store %arg11[%c0_57, %c0_58, %c0_59], %128 {strides = array<i32>} : memref<2x32x32xf32, #tpu.memory_space<vmem>>, vector<1x16x32xf32>,
    %c1_60 = arith.constant 1 : index
    %c0_61 = arith.constant 0 : index
    %c0_62 = arith.constant 0 : index
    %129 = vector.load %arg11[%c1_60, %c0_61, %c0_62] : memref<2x32x32xf32, #tpu.memory_space<vmem>>, vector<1x16x32xf32>
    %130 = vector.shape_cast %129 : vector<1x16x32xf32> to vector<16x32xf32>
    %131 = vector.shape_cast %95 : vector<16x32xf32> to vector<1x16x32xf32>
    tpu.vector_store %arg11[%c1_60, %c0_61, %c0_62], %131 {strides = array<i32>} : memref<2x32x32xf32, #tpu.memory_space<vmem>>, vector<1x16x32xf32>,
    %cst_63 = arith.constant 0.000000e+00 : f32
    %132 = vector.broadcast %cst_63 : f32 to vector<16x16xf32>
    %c1_64 = arith.constant 1 : index
    %c0_65 = arith.constant 0 : index
    %133 = memref.load %arg0[%c1_64, %c0_65] : memref<2x2xi32, #tpu.memory_space<smem>>
    %c1_66 = arith.constant 1 : index
    %c0_67 = arith.constant 0 : index
    %134 = memref.load %arg1[%c1_66, %c0_67] : memref<2x2xf32, #tpu.memory_space<smem>>
    %135 = vector.broadcast %133 : i32 to vector<16x16xi32>
    %136 = arith.cmpi eq, %2, %135 : vector<16x16xi32>
    %c16_i32_68 = arith.constant 16 : i32
    %137 = arith.subi %133, %c16_i32_68 : i32
    %138 = vector.broadcast %137 : i32 to vector<16x16xi32>
    %139 = arith.cmpi eq, %2, %138 : vector<16x16xi32>
    %140 = arith.ori %136, %139 : vector<16x16xi1>
    %cst_69 = arith.constant 0.000000e+00 : f32
    %141 = vector.broadcast %134 : f32 to vector<16x16xf32>
    %142 = vector.broadcast %cst_69 : f32 to vector<16x16xf32>
    %143 = arith.select %140, %141, %142 : vector<16x16xi1>, vector<16x16xf32>
    %144 = arith.addf %132, %143 : vector<16x16xf32>
    %c1_70 = arith.constant 1 : index
    %c1_71 = arith.constant 1 : index
    %145 = memref.load %arg0[%c1_70, %c1_71] : memref<2x2xi32, #tpu.memory_space<smem>>
    %c1_72 = arith.constant 1 : index
    %c1_73 = arith.constant 1 : index
    %146 = memref.load %arg1[%c1_72, %c1_73] : memref<2x2xf32, #tpu.memory_space<smem>>
    %147 = vector.broadcast %145 : i32 to vector<16x16xi32>
    %148 = arith.cmpi eq, %2, %147 : vector<16x16xi32>
    %c16_i32_74 = arith.constant 16 : i32
    %149 = arith.subi %145, %c16_i32_74 : i32
    %150 = vector.broadcast %149 : i32 to vector<16x16xi32>
    %151 = arith.cmpi eq, %2, %150 : vector<16x16xi32>
    %152 = arith.ori %148, %151 : vector<16x16xi1>
    %cst_75 = arith.constant 0.000000e+00 : f32
    %153 = vector.broadcast %146 : f32 to vector<16x16xf32>
    %154 = vector.broadcast %cst_75 : f32 to vector<16x16xf32>
    %155 = arith.select %152, %153, %154 : vector<16x16xi1>, vector<16x16xf32>
    %156 = arith.addf %144, %155 : vector<16x16xf32>
    %157 = vector.extract_strided_slice %3 {offsets = [16, 0], sizes = [16, 32], strides = [1, 1]} : vector<32x32xf32> to vector<16x32xf32>
    %cst_76 = arith.constant dense<0.000000e+00> : vector<16x32xf32>
    %158 = tpu.matmul %156, %157, %cst_76 {dimension_numbers = #tpu.dot_dimension_numbers<[1], [0], [0], [1], [0, 0, 1, 1], [], []>} : vector<16x16xf32>, vector<16x32xf32>, vector<16x32xf32> -> vector<16x32xf32>
    %c0_77 = arith.constant 0 : index
    %c0_78 = arith.constant 0 : index
    %159 = vector.load %arg4[%c0_77, %c0_78] : memref<32x32xf32, #tpu.memory_space<vmem>>, vector<32x32xf32>
    %cst_79 = arith.constant dense<0.000000e+00> : vector<16x32xf32>
    %160 = tpu.matmul %158, %159, %cst_79 {dimension_numbers = #tpu.dot_dimension_numbers<[1], [0], [0], [1], [0, 0, 1, 1], [], []>} : vector<16x32xf32>, vector<32x32xf32>, vector<16x32xf32> -> vector<16x32xf32>
    %c0_80 = arith.constant 0 : index
    %c0_81 = arith.constant 0 : index
    %161 = vector.load %arg5[%c0_80, %c0_81] : memref<1x32xf32, #tpu.memory_space<vmem>>, vector<1x32xf32>
    %162 = vector.broadcast %161 : vector<1x32xf32> to vector<16x32xf32>
    %163 = arith.addf %160, %162 : vector<16x32xf32>
    %164 = vector.extract_strided_slice %4 {offsets = [16, 0], sizes = [16, 32], strides = [1, 1]} : vector<32x32xf32> to vector<16x32xf32>
    %165 = arith.addf %164, %163 : vector<16x32xf32>
    %cst_82 = arith.constant dense<0.000000e+00> : vector<16x32xf32>
    %166 = tpu.matmul %5, %165, %cst_82 {dimension_numbers = #tpu.dot_dimension_numbers<[1], [0], [0], [1], [0, 0, 1, 1], [], []>} : vector<16x16xf32>, vector<16x32xf32>, vector<16x32xf32> -> vector<16x32xf32>
    %167 = arith.subf %165, %166 : vector<16x32xf32>
    %c0_83 = arith.constant 0 : index
    %c0_84 = arith.constant 0 : index
    %168 = vector.load %arg7[%c0_83, %c0_84] : memref<32x64xf32, #tpu.memory_space<vmem>>, vector<32x64xf32>
    %cst_85 = arith.constant dense<0.000000e+00> : vector<16x64xf32>
    %169 = tpu.matmul %167, %168, %cst_85 {dimension_numbers = #tpu.dot_dimension_numbers<[1], [0], [0], [1], [0, 0, 1, 1], [], []>} : vector<16x32xf32>, vector<32x64xf32>, vector<16x64xf32> -> vector<16x64xf32>
    %cst_86 = arith.constant 5.000000e-01 : f32
    %170 = vector.broadcast %cst_86 : f32 to vector<16x64xf32>
    %171 = arith.mulf %170, %169 : vector<16x64xf32>
    %cst_87 = arith.constant 0.707106769 : f32
    %172 = vector.broadcast %cst_87 : f32 to vector<16x64xf32>
    %173 = arith.mulf %169, %172 : vector<16x64xf32>
    %cst_88 = arith.constant -3.8325069 : f32
    %cst_89 = arith.constant 3.8325069 : f32
    %174 = vector.broadcast %cst_88 : f32 to vector<16x64xf32>
    %175 = arith.maximumf %174, %173 : vector<16x64xf32>
    %176 = vector.broadcast %cst_89 : f32 to vector<16x64xf32>
    %177 = arith.minimumf %176, %175 : vector<16x64xf32>
    %178 = arith.mulf %177, %177 : vector<16x64xf32>
    %cst_90 = arith.constant 2.29050653E-4 : f32
    %179 = vector.broadcast %cst_90 : f32 to vector<16x64xf32>
    %180 = arith.mulf %179, %178 : vector<16x64xf32>
    %cst_91 = arith.constant 0.00340829091 : f32
    %181 = vector.broadcast %cst_91 : f32 to vector<16x64xf32>
    %182 = arith.addf %180, %181 : vector<16x64xf32>
    %183 = arith.mulf %182, %178 : vector<16x64xf32>
    %cst_92 = arith.constant 0.0509556942 : f32
    %184 = vector.broadcast %cst_92 : f32 to vector<16x64xf32>
    %185 = arith.addf %183, %184 : vector<16x64xf32>
    %186 = arith.mulf %185, %178 : vector<16x64xf32>
    %cst_93 = arith.constant 0.185208321 : f32
    %187 = vector.broadcast %cst_93 : f32 to vector<16x64xf32>
    %188 = arith.addf %186, %187 : vector<16x64xf32>
    %189 = arith.mulf %188, %178 : vector<16x64xf32>
    %cst_94 = arith.constant 1.12837911 : f32
    %190 = vector.broadcast %cst_94 : f32 to vector<16x64xf32>
    %191 = arith.addf %189, %190 : vector<16x64xf32>
    %cst_95 = arith.constant -1.17916031E-7 : f32
    %192 = vector.broadcast %cst_95 : f32 to vector<16x64xf32>
    %193 = arith.mulf %192, %178 : vector<16x64xf32>
    %cst_96 = arith.constant 2.35479656E-5 : f32
    %194 = vector.broadcast %cst_96 : f32 to vector<16x64xf32>
    %195 = arith.addf %193, %194 : vector<16x64xf32>
    %196 = arith.mulf %195, %178 : vector<16x64xf32>
    %cst_97 = arith.constant 0.00101796258 : f32
    %197 = vector.broadcast %cst_97 : f32 to vector<16x64xf32>
    %198 = arith.addf %196, %197 : vector<16x64xf32>
    %199 = arith.mulf %198, %178 : vector<16x64xf32>
    %cst_98 = arith.constant 0.0140704699 : f32
    %200 = vector.broadcast %cst_98 : f32 to vector<16x64xf32>
    %201 = arith.addf %199, %200 : vector<16x64xf32>
    %202 = arith.mulf %201, %178 : vector<16x64xf32>
    %cst_99 = arith.constant 0.110985048 : f32
    %203 = vector.broadcast %cst_99 : f32 to vector<16x64xf32>
    %204 = arith.addf %202, %203 : vector<16x64xf32>
    %205 = arith.mulf %204, %178 : vector<16x64xf32>
    %cst_100 = arith.constant 0.497469246 : f32
    %206 = vector.broadcast %cst_100 : f32 to vector<16x64xf32>
    %207 = arith.addf %205, %206 : vector<16x64xf32>
    %208 = arith.mulf %207, %178 : vector<16x64xf32>
    %cst_101 = arith.constant 1.000000e+00 : f32
    %209 = vector.broadcast %cst_101 : f32 to vector<16x64xf32>
    %210 = arith.addf %208, %209 : vector<16x64xf32>
    %211 = arith.mulf %177, %191 : vector<16x64xf32>
    %212 = arith.divf %211, %210 : vector<16x64xf32>
    %cst_102 = arith.constant 1.000000e+00 : f32
    %213 = vector.broadcast %cst_102 : f32 to vector<16x64xf32>
    %214 = arith.addf %213, %212 : vector<16x64xf32>
    %215 = arith.mulf %171, %214 : vector<16x64xf32>
    %c0_103 = arith.constant 0 : index
    %c0_104 = arith.constant 0 : index
    %216 = vector.load %arg8[%c0_103, %c0_104] : memref<64x32xf32, #tpu.memory_space<vmem>>, vector<64x32xf32>
    %cst_105 = arith.constant dense<0.000000e+00> : vector<16x32xf32>
    %217 = tpu.matmul %215, %216, %cst_105 {dimension_numbers = #tpu.dot_dimension_numbers<[1], [0], [0], [1], [0, 0, 1, 1], [], []>} : vector<16x64xf32>, vector<64x32xf32>, vector<16x32xf32> -> vector<16x32xf32>
    %218 = arith.addf %167, %217 : vector<16x32xf32>
    %cst_106 = arith.constant dense<0.000000e+00> : vector<16x32xf32>
    %219 = tpu.matmul %5, %218, %cst_106 {dimension_numbers = #tpu.dot_dimension_numbers<[1], [0], [0], [1], [0, 0, 1, 1], [], []>} : vector<16x16xf32>, vector<16x32xf32>, vector<16x32xf32> -> vector<16x32xf32>
    %220 = arith.subf %218, %219 : vector<16x32xf32>
    %221 = arith.addf %166, %219 : vector<16x32xf32>
    %cst_107 = arith.constant dense<0.000000e+00> : vector<16xf32>
    %222 = vector.multi_reduction <add>, %220, %cst_107 [1] : vector<16x32xf32> to vector<16xf32>
    %223 = vector.shape_cast %222 : vector<16xf32> to vector<16x1xf32>
    %cst_108 = arith.constant 3.200000e+01 : f32
    %224 = vector.broadcast %cst_108 : f32 to vector<16x1xf32>
    %225 = arith.divf %223, %224 : vector<16x1xf32>
    %226 = vector.broadcast %225 : vector<16x1xf32> to vector<16x32xf32>
    %227 = arith.subf %220, %226 : vector<16x32xf32>
    %228 = arith.mulf %227, %227 : vector<16x32xf32>
    %cst_109 = arith.constant dense<0.000000e+00> : vector<16xf32>
    %229 = vector.multi_reduction <add>, %228, %cst_109 [1] : vector<16x32xf32> to vector<16xf32>
    %230 = vector.shape_cast %229 : vector<16xf32> to vector<16x1xf32>
    %cst_110 = arith.constant 3.200000e+01 : f32
    %231 = vector.broadcast %cst_110 : f32 to vector<16x1xf32>
    %232 = arith.divf %230, %231 : vector<16x1xf32>
    %233 = vector.broadcast %225 : vector<16x1xf32> to vector<16x32xf32>
    %234 = arith.subf %220, %233 : vector<16x32xf32>
    %cst_111 = arith.constant 9.99999974E-6 : f32
    %235 = vector.broadcast %cst_111 : f32 to vector<16x1xf32>
    %236 = arith.addf %232, %235 : vector<16x1xf32>
    %237 = math.rsqrt %236 : vector<16x1xf32>
    %238 = vector.broadcast %237 : vector<16x1xf32> to vector<16x32xf32>
    %239 = arith.mulf %234, %238 : vector<16x32xf32>
    %c0_112 = arith.constant 0 : index
    %c0_113 = arith.constant 0 : index
    %240 = vector.load %arg9[%c0_112, %c0_113] : memref<1x32xf32, #tpu.memory_space<vmem>>, vector<1x32xf32>
    %241 = vector.broadcast %240 : vector<1x32xf32> to vector<16x32xf32>
    %242 = arith.mulf %239, %241 : vector<16x32xf32>
    %c0_114 = arith.constant 0 : index
    %c0_115 = arith.constant 0 : index
    %243 = vector.load %arg10[%c0_114, %c0_115] : memref<1x32xf32, #tpu.memory_space<vmem>>, vector<1x32xf32>
    %244 = vector.broadcast %243 : vector<1x32xf32> to vector<16x32xf32>
    %245 = arith.addf %242, %244 : vector<16x32xf32>
    %cst_116 = arith.constant dense<0.000000e+00> : vector<32xf32>
    %246 = vector.multi_reduction <add>, %245, %cst_116 [0] : vector<16x32xf32> to vector<32xf32>
    %247 = vector.shape_cast %246 : vector<32xf32> to vector<1x32xf32>
    %cst_117 = arith.constant 1.600000e+01 : f32
    %248 = vector.broadcast %cst_117 : f32 to vector<1x32xf32>
    %249 = arith.divf %247, %248 : vector<1x32xf32>
    %250 = vector.broadcast %249 : vector<1x32xf32> to vector<16x32xf32>
    %251 = arith.subf %245, %250 : vector<16x32xf32>
    %c0_118 = arith.constant 0 : index
    %c16 = arith.constant 16 : index
    %c0_119 = arith.constant 0 : index
    %252 = vector.load %arg11[%c0_118, %c16, %c0_119] : memref<2x32x32xf32, #tpu.memory_space<vmem>>, vector<1x16x32xf32>
    %253 = vector.shape_cast %252 : vector<1x16x32xf32> to vector<16x32xf32>
    %254 = vector.shape_cast %251 : vector<16x32xf32> to vector<1x16x32xf32>
    tpu.vector_store %arg11[%c0_118, %c16, %c0_119], %254 {strides = array<i32>} : memref<2x32x32xf32, #tpu.memory_space<vmem>>, vector<1x16x32xf32>,
    %c1_120 = arith.constant 1 : index
    %c16_121 = arith.constant 16 : index
    %c0_122 = arith.constant 0 : index
    %255 = vector.load %arg11[%c1_120, %c16_121, %c0_122] : memref<2x32x32xf32, #tpu.memory_space<vmem>>, vector<1x16x32xf32>
    %256 = vector.shape_cast %255 : vector<1x16x32xf32> to vector<16x32xf32>
    %257 = vector.shape_cast %221 : vector<16x32xf32> to vector<1x16x32xf32>
    tpu.vector_store %arg11[%c1_120, %c16_121, %c0_122], %257 {strides = array<i32>} : memref<2x32x32xf32, #tpu.memory_space<vmem>>, vector<1x16x32xf32>,
    return
  }
}

module attributes {stable_mosaic.version = 11 : i64} {
  func.func @_agg_block_kernel(%arg0: memref<2x2xi32, #tpu.memory_space<smem>>, %arg1: memref<2x2xf32, #tpu.memory_space<smem>>, %arg2: memref<32x32xf32, #tpu.memory_space<vmem>>, %arg3: memref<32x32xf32, #tpu.memory_space<vmem>>, %arg4: memref<32x32xf32, #tpu.memory_space<vmem>>, %arg5: memref<1x32xf32, #tpu.memory_space<vmem>>, %arg6: memref<16x16xf32, #tpu.memory_space<vmem>>, %arg7: memref<2x32x32xf32, #tpu.memory_space<vmem>>) attributes {dimension_semantics = [], scalar_prefetch = 0 : i64, scratch_operands = 0 : i64, tpu.core_type = #tpu.core_type<tc>} {
    %0 = tpu.iota {dimensions = array<i32: 0>} : vector<16x16xi32>
    %1 = tpu.iota {dimensions = array<i32: 1>} : vector<16x16xi32>
    %2 = arith.subi %1, %0 : vector<16x16xi32>
    %c0 = arith.constant 0 : index
    %c0_0 = arith.constant 0 : index
    %3 = vector.load %arg2[%c0, %c0_0] : memref<32x32xf32, #tpu.memory_space<vmem>>, vector<32x32xf32>
    %c0_1 = arith.constant 0 : index
    %c0_2 = arith.constant 0 : index
    %4 = vector.load %arg3[%c0_1, %c0_2] : memref<32x32xf32, #tpu.memory_space<vmem>>, vector<32x32xf32>
    %c0_3 = arith.constant 0 : index
    %c0_4 = arith.constant 0 : index
    %5 = vector.load %arg6[%c0_3, %c0_4] : memref<16x16xf32, #tpu.memory_space<vmem>>, vector<16x16xf32>
    %cst = arith.constant 0.000000e+00 : f32
    %6 = vector.broadcast %cst : f32 to vector<16x16xf32>
    %c0_5 = arith.constant 0 : index
    %c0_6 = arith.constant 0 : index
    %7 = memref.load %arg0[%c0_5, %c0_6] : memref<2x2xi32, #tpu.memory_space<smem>>
    %c0_7 = arith.constant 0 : index
    %c0_8 = arith.constant 0 : index
    %8 = memref.load %arg1[%c0_7, %c0_8] : memref<2x2xf32, #tpu.memory_space<smem>>
    %9 = vector.broadcast %7 : i32 to vector<16x16xi32>
    %10 = arith.cmpi eq, %2, %9 : vector<16x16xi32>
    %c16_i32 = arith.constant 16 : i32
    %11 = arith.subi %7, %c16_i32 : i32
    %12 = vector.broadcast %11 : i32 to vector<16x16xi32>
    %13 = arith.cmpi eq, %2, %12 : vector<16x16xi32>
    %14 = arith.ori %10, %13 : vector<16x16xi1>
    %cst_9 = arith.constant 0.000000e+00 : f32
    %15 = vector.broadcast %8 : f32 to vector<16x16xf32>
    %16 = vector.broadcast %cst_9 : f32 to vector<16x16xf32>
    %17 = arith.select %14, %15, %16 : vector<16x16xi1>, vector<16x16xf32>
    %18 = arith.addf %6, %17 : vector<16x16xf32>
    %c0_10 = arith.constant 0 : index
    %c1 = arith.constant 1 : index
    %19 = memref.load %arg0[%c0_10, %c1] : memref<2x2xi32, #tpu.memory_space<smem>>
    %c0_11 = arith.constant 0 : index
    %c1_12 = arith.constant 1 : index
    %20 = memref.load %arg1[%c0_11, %c1_12] : memref<2x2xf32, #tpu.memory_space<smem>>
    %21 = vector.broadcast %19 : i32 to vector<16x16xi32>
    %22 = arith.cmpi eq, %2, %21 : vector<16x16xi32>
    %c16_i32_13 = arith.constant 16 : i32
    %23 = arith.subi %19, %c16_i32_13 : i32
    %24 = vector.broadcast %23 : i32 to vector<16x16xi32>
    %25 = arith.cmpi eq, %2, %24 : vector<16x16xi32>
    %26 = arith.ori %22, %25 : vector<16x16xi1>
    %cst_14 = arith.constant 0.000000e+00 : f32
    %27 = vector.broadcast %20 : f32 to vector<16x16xf32>
    %28 = vector.broadcast %cst_14 : f32 to vector<16x16xf32>
    %29 = arith.select %26, %27, %28 : vector<16x16xi1>, vector<16x16xf32>
    %30 = arith.addf %18, %29 : vector<16x16xf32>
    %31 = vector.extract_strided_slice %3 {offsets = [0, 0], sizes = [16, 32], strides = [1, 1]} : vector<32x32xf32> to vector<16x32xf32>
    %cst_15 = arith.constant dense<0.000000e+00> : vector<16x32xf32>
    %32 = tpu.matmul %30, %31, %cst_15 {dimension_numbers = #tpu.dot_dimension_numbers<[1], [0], [0], [1], [0, 0, 1, 1], [], []>} : vector<16x16xf32>, vector<16x32xf32>, vector<16x32xf32> -> vector<16x32xf32>
    %c0_16 = arith.constant 0 : index
    %c0_17 = arith.constant 0 : index
    %33 = vector.load %arg4[%c0_16, %c0_17] : memref<32x32xf32, #tpu.memory_space<vmem>>, vector<32x32xf32>
    %cst_18 = arith.constant dense<0.000000e+00> : vector<16x32xf32>
    %34 = tpu.matmul %32, %33, %cst_18 {dimension_numbers = #tpu.dot_dimension_numbers<[1], [0], [0], [1], [0, 0, 1, 1], [], []>} : vector<16x32xf32>, vector<32x32xf32>, vector<16x32xf32> -> vector<16x32xf32>
    %c0_19 = arith.constant 0 : index
    %c0_20 = arith.constant 0 : index
    %35 = vector.load %arg5[%c0_19, %c0_20] : memref<1x32xf32, #tpu.memory_space<vmem>>, vector<1x32xf32>
    %36 = vector.broadcast %35 : vector<1x32xf32> to vector<16x32xf32>
    %37 = arith.addf %34, %36 : vector<16x32xf32>
    %38 = vector.extract_strided_slice %4 {offsets = [0, 0], sizes = [16, 32], strides = [1, 1]} : vector<32x32xf32> to vector<16x32xf32>
    %39 = arith.addf %38, %37 : vector<16x32xf32>
    %cst_21 = arith.constant dense<0.000000e+00> : vector<16x32xf32>
    %40 = tpu.matmul %5, %39, %cst_21 {dimension_numbers = #tpu.dot_dimension_numbers<[1], [0], [0], [1], [0, 0, 1, 1], [], []>} : vector<16x16xf32>, vector<16x32xf32>, vector<16x32xf32> -> vector<16x32xf32>
    %41 = arith.subf %39, %40 : vector<16x32xf32>
    %c0_22 = arith.constant 0 : index
    %c0_23 = arith.constant 0 : index
    %c0_24 = arith.constant 0 : index
    %42 = vector.load %arg7[%c0_22, %c0_23, %c0_24] : memref<2x32x32xf32, #tpu.memory_space<vmem>>, vector<1x16x32xf32>
    %43 = vector.shape_cast %42 : vector<1x16x32xf32> to vector<16x32xf32>
    %44 = vector.shape_cast %41 : vector<16x32xf32> to vector<1x16x32xf32>
    tpu.vector_store %arg7[%c0_22, %c0_23, %c0_24], %44 {strides = array<i32>} : memref<2x32x32xf32, #tpu.memory_space<vmem>>, vector<1x16x32xf32>,
    %c1_25 = arith.constant 1 : index
    %c0_26 = arith.constant 0 : index
    %c0_27 = arith.constant 0 : index
    %45 = vector.load %arg7[%c1_25, %c0_26, %c0_27] : memref<2x32x32xf32, #tpu.memory_space<vmem>>, vector<1x16x32xf32>
    %46 = vector.shape_cast %45 : vector<1x16x32xf32> to vector<16x32xf32>
    %47 = vector.shape_cast %40 : vector<16x32xf32> to vector<1x16x32xf32>
    tpu.vector_store %arg7[%c1_25, %c0_26, %c0_27], %47 {strides = array<i32>} : memref<2x32x32xf32, #tpu.memory_space<vmem>>, vector<1x16x32xf32>,
    %cst_28 = arith.constant 0.000000e+00 : f32
    %48 = vector.broadcast %cst_28 : f32 to vector<16x16xf32>
    %c1_29 = arith.constant 1 : index
    %c0_30 = arith.constant 0 : index
    %49 = memref.load %arg0[%c1_29, %c0_30] : memref<2x2xi32, #tpu.memory_space<smem>>
    %c1_31 = arith.constant 1 : index
    %c0_32 = arith.constant 0 : index
    %50 = memref.load %arg1[%c1_31, %c0_32] : memref<2x2xf32, #tpu.memory_space<smem>>
    %51 = vector.broadcast %49 : i32 to vector<16x16xi32>
    %52 = arith.cmpi eq, %2, %51 : vector<16x16xi32>
    %c16_i32_33 = arith.constant 16 : i32
    %53 = arith.subi %49, %c16_i32_33 : i32
    %54 = vector.broadcast %53 : i32 to vector<16x16xi32>
    %55 = arith.cmpi eq, %2, %54 : vector<16x16xi32>
    %56 = arith.ori %52, %55 : vector<16x16xi1>
    %cst_34 = arith.constant 0.000000e+00 : f32
    %57 = vector.broadcast %50 : f32 to vector<16x16xf32>
    %58 = vector.broadcast %cst_34 : f32 to vector<16x16xf32>
    %59 = arith.select %56, %57, %58 : vector<16x16xi1>, vector<16x16xf32>
    %60 = arith.addf %48, %59 : vector<16x16xf32>
    %c1_35 = arith.constant 1 : index
    %c1_36 = arith.constant 1 : index
    %61 = memref.load %arg0[%c1_35, %c1_36] : memref<2x2xi32, #tpu.memory_space<smem>>
    %c1_37 = arith.constant 1 : index
    %c1_38 = arith.constant 1 : index
    %62 = memref.load %arg1[%c1_37, %c1_38] : memref<2x2xf32, #tpu.memory_space<smem>>
    %63 = vector.broadcast %61 : i32 to vector<16x16xi32>
    %64 = arith.cmpi eq, %2, %63 : vector<16x16xi32>
    %c16_i32_39 = arith.constant 16 : i32
    %65 = arith.subi %61, %c16_i32_39 : i32
    %66 = vector.broadcast %65 : i32 to vector<16x16xi32>
    %67 = arith.cmpi eq, %2, %66 : vector<16x16xi32>
    %68 = arith.ori %64, %67 : vector<16x16xi1>
    %cst_40 = arith.constant 0.000000e+00 : f32
    %69 = vector.broadcast %62 : f32 to vector<16x16xf32>
    %70 = vector.broadcast %cst_40 : f32 to vector<16x16xf32>
    %71 = arith.select %68, %69, %70 : vector<16x16xi1>, vector<16x16xf32>
    %72 = arith.addf %60, %71 : vector<16x16xf32>
    %73 = vector.extract_strided_slice %3 {offsets = [16, 0], sizes = [16, 32], strides = [1, 1]} : vector<32x32xf32> to vector<16x32xf32>
    %cst_41 = arith.constant dense<0.000000e+00> : vector<16x32xf32>
    %74 = tpu.matmul %72, %73, %cst_41 {dimension_numbers = #tpu.dot_dimension_numbers<[1], [0], [0], [1], [0, 0, 1, 1], [], []>} : vector<16x16xf32>, vector<16x32xf32>, vector<16x32xf32> -> vector<16x32xf32>
    %c0_42 = arith.constant 0 : index
    %c0_43 = arith.constant 0 : index
    %75 = vector.load %arg4[%c0_42, %c0_43] : memref<32x32xf32, #tpu.memory_space<vmem>>, vector<32x32xf32>
    %cst_44 = arith.constant dense<0.000000e+00> : vector<16x32xf32>
    %76 = tpu.matmul %74, %75, %cst_44 {dimension_numbers = #tpu.dot_dimension_numbers<[1], [0], [0], [1], [0, 0, 1, 1], [], []>} : vector<16x32xf32>, vector<32x32xf32>, vector<16x32xf32> -> vector<16x32xf32>
    %c0_45 = arith.constant 0 : index
    %c0_46 = arith.constant 0 : index
    %77 = vector.load %arg5[%c0_45, %c0_46] : memref<1x32xf32, #tpu.memory_space<vmem>>, vector<1x32xf32>
    %78 = vector.broadcast %77 : vector<1x32xf32> to vector<16x32xf32>
    %79 = arith.addf %76, %78 : vector<16x32xf32>
    %80 = vector.extract_strided_slice %4 {offsets = [16, 0], sizes = [16, 32], strides = [1, 1]} : vector<32x32xf32> to vector<16x32xf32>
    %81 = arith.addf %80, %79 : vector<16x32xf32>
    %cst_47 = arith.constant dense<0.000000e+00> : vector<16x32xf32>
    %82 = tpu.matmul %5, %81, %cst_47 {dimension_numbers = #tpu.dot_dimension_numbers<[1], [0], [0], [1], [0, 0, 1, 1], [], []>} : vector<16x16xf32>, vector<16x32xf32>, vector<16x32xf32> -> vector<16x32xf32>
    %83 = arith.subf %81, %82 : vector<16x32xf32>
    %c0_48 = arith.constant 0 : index
    %c16 = arith.constant 16 : index
    %c0_49 = arith.constant 0 : index
    %84 = vector.load %arg7[%c0_48, %c16, %c0_49] : memref<2x32x32xf32, #tpu.memory_space<vmem>>, vector<1x16x32xf32>
    %85 = vector.shape_cast %84 : vector<1x16x32xf32> to vector<16x32xf32>
    %86 = vector.shape_cast %83 : vector<16x32xf32> to vector<1x16x32xf32>
    tpu.vector_store %arg7[%c0_48, %c16, %c0_49], %86 {strides = array<i32>} : memref<2x32x32xf32, #tpu.memory_space<vmem>>, vector<1x16x32xf32>,
    %c1_50 = arith.constant 1 : index
    %c16_51 = arith.constant 16 : index
    %c0_52 = arith.constant 0 : index
    %87 = vector.load %arg7[%c1_50, %c16_51, %c0_52] : memref<2x32x32xf32, #tpu.memory_space<vmem>>, vector<1x16x32xf32>
    %88 = vector.shape_cast %87 : vector<1x16x32xf32> to vector<16x32xf32>
    %89 = vector.shape_cast %82 : vector<16x32xf32> to vector<1x16x32xf32>
    tpu.vector_store %arg7[%c1_50, %c16_51, %c0_52], %89 {strides = array<i32>} : memref<2x32x32xf32, #tpu.memory_space<vmem>>, vector<1x16x32xf32>,
    return
  }
}

</mosaic_0001>

<llo_original>
// kernel: _lambda_.10
$region0: #{_lambda_.10}
  #allocation0 [shape = 'u32[]', space=smem, size = 0x4, offset = 0x4, fixed_abs, tag = 'smem constant byte address 0x4 - core index']
  #allocation1 [shape = 'u32[72,128]{1,0:T(1,128)}', space=vmem, size = 0x9000, scoped, tag = 'internal scratch']
  %s0 = inlined_call_operand.vmem [shape: f32[32,6], index: 0, kind: input, shape index: {}]
  %s1 = inlined_call_operand.vmem [shape: f32[6,32], index: 1, kind: input, shape index: {}]
  %s2 = inlined_call_operand.vmem [shape: f32[32,32], index: 2, kind: output, shape index: {}]
  %s3 = sld [smem:[#allocation0]]
  $region18: #{_lambda_.10} parent=0
    _
  %s5 = ssub.s32 1, %s3
  %s6 = scalar_select 0, %s5, %s3
  // Predicated region
  $region2: #{_lambda_.10} parent=0 // pred_check
    _
  $region3: #{_lambda_.10} parent=0 // pred_check_branch
    %8 = sbr.rel (0) target = $region5
  $region4: #{_lambda_.10} parent=0 // pred_region
    _
  $region5: #{_lambda_.10} parent=0 // pred_fallthru
    _
  // Predicated region
  $region6: #{_lambda_.10} parent=0 // pred_check
    _
  $region7: #{_lambda_.10} parent=0 // pred_check_branch
    %10 = sbr.rel (0) target = $region9
  $region8: #{_lambda_.10} parent=0 // pred_region
    _
  $region9: #{_lambda_.10} parent=0 // pred_fallthru
    _
  %v11 = vld [vmem:[%s0] sm:$0xff]
  %v12 = vld [vmem:[%s0 + $0x8] sm:$0xff]
  %v13 = vld [vmem:[%s0 + $0x10] sm:$0xff]
  %v14 = vld [vmem:[%s0 + $0x18] sm:$0xff]
  %v15 = vld [vmem:[%s1] sm:$0x3f]
  %vm16 = vcmask 48128
  %v18 = vsel %vm16, %v11, 0
  %v21 = vsel %vm16, %v12, 0
  %v24 = vsel %vm16, %v13, 0
  %v27 = vsel %vm16, %v14, 0
  %vm29 = vcmask 1045504
  %v31 = vsel %vm29, %v15, 0
  %33 = vmatpush.msra.mxu0 0.0
  %34 = vmatpush.msra.mxu0 0.0
  %35 = vmatpush.msra.mxu0 0.0
  %36 = vmatpush.msra.mxu0 0.0
  %37 = vmatpush.msra.mxu0 0.0
  %38 = vmatpush.msra.mxu0 0.0
  %39 = vmatpush.msra.mxu0 0.0
  %40 = vmatpush.msra.mxu0 0.0
  %41 = vmatpush.msra.mxu0 0.0
  %42 = vmatpush.msra.mxu0 0.0
  %43 = vmatpush.msra.mxu0 0.0
  %44 = vmatpush.msra.mxu0 0.0
  %45 = vmatpush.msra.mxu0 0.0
  %46 = vmatpush.msra.mxu0 0.0
  %47 = vmatpush.msra.mxu0 0.0
  %48 = vmatpush.msra.mxu0 %v31
  %49 = vmatmul.f32.gmra.mxu0 %v18
  %v50 = vpop.f32.mrf.mxu0
  %v51 = vadd.f32 0.0, %v50
  %52 = vmatmul.f32.gmra.mxu0 %v21
  %v53 = vpop.f32.mrf.mxu0
  %v54 = vadd.f32 0.0, %v53
  %55 = vmatmul.f32.gmra.mxu0 %v24
  %v56 = vpop.f32.mrf.mxu0
  %v57 = vadd.f32 0.0, %v56
  %58 = vmatmul.f32.gmra.mxu0 %v27
  %v59 = vpop.f32.mrf.mxu0
  %v60 = vadd.f32 0.0, %v59
  %61 = vdwg.mxu0
  %vm62 = vcmask 261120
  %63 = vst.msk [vmem:[%s2] sm:$0xff] %vm62, %v51
  %64 = vst.msk [vmem:[%s2 + $0x8] sm:$0xff] %vm62, %v54
  %65 = vst.msk [vmem:[%s2 + $0x10] sm:$0xff] %vm62, %v57
  %66 = vst.msk [vmem:[%s2 + $0x18] sm:$0xff] %vm62, %v60
  // Predicated region
  $region10: #{_lambda_.10} parent=0 // pred_check
    _
  $region11: #{_lambda_.10} parent=0 // pred_check_branch
    %68 = sbr.rel (0) target = $region13
  $region12: #{_lambda_.10} parent=0 // pred_region
    _
  $region13: #{_lambda_.10} parent=0 // pred_fallthru
    _
  // Predicated region
  $region14: #{_lambda_.10} parent=0 // pred_check
    _
  $region15: #{_lambda_.10} parent=0 // pred_check_branch
    %70 = sbr.rel (0) target = $region17
  $region16: #{_lambda_.10} parent=0 // pred_region
    _
  $region17: #{_lambda_.10} parent=0 // pred_fallthru
    _

// kernel: _lambda_.11
$region0: #{_lambda_.11}
  #allocation0 [shape = 'u32[]', space=smem, size = 0x4, offset = 0x4, fixed_abs, tag = 'smem constant byte address 0x4 - core index']
  #allocation1 [shape = 'u32[72,128]{1,0:T(1,128)}', space=vmem, size = 0x9000, scoped, tag = 'internal scratch']
  %s0 = inlined_call_operand.vmem [shape: f32[32,32], index: 0, kind: input, shape index: {}, may-alias: {0,1}]
  %s1 = inlined_call_operand.vmem [shape: f32[32,32], index: 1, kind: input, shape index: {}, may-alias: {0,1}]
  %s2 = inlined_call_operand.vmem [shape: f32[32,32], index: 2, kind: input, shape index: {}]
  %s3 = inlined_call_operand.vmem [shape: f32[1,32], index: 3, kind: input, shape index: {}]
  %s4 = inlined_call_operand.vmem [shape: f32[32,32], index: 4, kind: input, shape index: {}]
  %s5 = inlined_call_operand.vmem [shape: f32[1,32], index: 5, kind: input, shape index: {}]
  %s6 = inlined_call_operand.vmem [shape: f32[32,32], index: 6, kind: input, shape index: {}]
  %s7 = inlined_call_operand.vmem [shape: f32[1,32], index: 7, kind: input, shape index: {}]
  %s8 = inlined_call_operand.vmem [shape: f32[32,1], index: 8, kind: input, shape index: {}]
  %s9 = inlined_call_operand.vmem [shape: f32[256,16], index: 9, kind: input, shape index: {}]
  %s10 = inlined_call_operand.vmem [shape: f32[256,16], index: 10, kind: input, shape index: {}]
  %s11 = inlined_call_operand.vmem [shape: f32[16,256], index: 11, kind: input, shape index: {}]
  %s12 = inlined_call_operand.vmem [shape: f32[32,32], index: 12, kind: output, shape index: {0}]
  %s13 = inlined_call_operand.vmem [shape: f32[32,1], index: 13, kind: output, shape index: {1}]
  %14 = xla_tuple %s12, %s13
  %s15 = sld [smem:[#allocation0]]
  $region66: #{_lambda_.11} parent=0
    _
  %s17 = ssub.s32 1, %s15
  %s18 = scalar_select 0, %s17, %s15
  // Predicated region
  $region2: #{_lambda_.11} parent=0 // pred_check
    _
  $region3: #{_lambda_.11} parent=0 // pred_check_branch
    %20 = sbr.rel (0) target = $region5
  $region4: #{_lambda_.11} parent=0 // pred_region
    _
  $region5: #{_lambda_.11} parent=0 // pred_fallthru
    _
  // Predicated region
  $region6: #{_lambda_.11} parent=0 // pred_check
    _
  $region7: #{_lambda_.11} parent=0 // pred_check_branch
    %22 = sbr.rel (0) target = $region9
  $region8: #{_lambda_.11} parent=0 // pred_region
    _
  $region9: #{_lambda_.11} parent=0 // pred_fallthru
    _
  // Predicated region
  $region10: #{_lambda_.11} parent=0 // pred_check
    _
  $region11: #{_lambda_.11} parent=0 // pred_check_branch
    %24 = sbr.rel (0) target = $region13
  $region12: #{_lambda_.11} parent=0 // pred_region
    _
  $region13: #{_lambda_.11} parent=0 // pred_fallthru
    _
  // Predicated region
  $region14: #{_lambda_.11} parent=0 // pred_check
    _
  $region15: #{_lambda_.11} parent=0 // pred_check_branch
    %26 = sbr.rel (0) target = $region17
  $region16: #{_lambda_.11} parent=0 // pred_region
    _
  $region17: #{_lambda_.11} parent=0 // pred_fallthru
    _
  // Predicated region
  $region18: #{_lambda_.11} parent=0 // pred_check
    _
  $region19: #{_lambda_.11} parent=0 // pred_check_branch
    %28 = sbr.rel (0) target = $region21
  $region20: #{_lambda_.11} parent=0 // pred_region
    _
  $region21: #{_lambda_.11} parent=0 // pred_fallthru
    _
  // Predicated region
  $region22: #{_lambda_.11} parent=0 // pred_check
    _
  $region23: #{_lambda_.11} parent=0 // pred_check_branch
    %30 = sbr.rel (0) target = $region25
  $region24: #{_lambda_.11} parent=0 // pred_region
    _
  $region25: #{_lambda_.11} parent=0 // pred_fallthru
    _
  // Predicated region
  $region26: #{_lambda_.11} parent=0 // pred_check
    _
  $region27: #{_lambda_.11} parent=0 // pred_check_branch
    %32 = sbr.rel (0) target = $region29
  $region28: #{_lambda_.11} parent=0 // pred_region
    _
  $region29: #{_lambda_.11} parent=0 // pred_fallthru
    _
  // Predicated region
  $region30: #{_lambda_.11} parent=0 // pred_check
    _
  $region31: #{_lambda_.11} parent=0 // pred_check_branch
    %34 = sbr.rel (0) target = $region33
  $region32: #{_lambda_.11} parent=0 // pred_region
    _
  $region33: #{_lambda_.11} parent=0 // pred_fallthru
    _
  // Predicated region
  $region34: #{_lambda_.11} parent=0 // pred_check
    _
  $region35: #{_lambda_.11} parent=0 // pred_check_branch
    %36 = sbr.rel (0) target = $region37
  $region36: #{_lambda_.11} parent=0 // pred_region
    _
  $region37: #{_lambda_.11} parent=0 // pred_fallthru
    _
  // Predicated region
  $region38: #{_lambda_.11} parent=0 // pred_check
    _
  $region39: #{_lambda_.11} parent=0 // pred_check_branch
    %38 = sbr.rel (0) target = $region41
  $region40: #{_lambda_.11} parent=0 // pred_region
    _
  $region41: #{_lambda_.11} parent=0 // pred_fallthru
    _
  // Predicated region
  $region42: #{_lambda_.11} parent=0 // pred_check
    _
  $region43: #{_lambda_.11} parent=0 // pred_check_branch
    %40 = sbr.rel (0) target = $region45
  $region44: #{_lambda_.11} parent=0 // pred_region
    _
  $region45: #{_lambda_.11} parent=0 // pred_fallthru
    _
  // Predicated region
  $region46: #{_lambda_.11} parent=0 // pred_check
    _
  $region47: #{_lambda_.11} parent=0 // pred_check_branch
    %42 = sbr.rel (0) target = $region49
  $region48: #{_lambda_.11} parent=0 // pred_region
    _
  $region49: #{_lambda_.11} parent=0 // pred_fallthru
    _
  %v43 = vld [vmem:[%s0] sm:$0xff]
  %v44 = vld [vmem:[%s0 + $0x8] sm:$0xff]
  %v45 = vld [vmem:[%s0 + $0x10] sm:$0xff]
  %v46 = vld [vmem:[%s0 + $0x18] sm:$0xff]
  %v47 = vld [vmem:[%s1] sm:$0xff]
  %v48 = vld [vmem:[%s1 + $0x8] sm:$0xff]
  %v49 = vld [vmem:[%s1 + $0x10] sm:$0xff]
  %v50 = vld [vmem:[%s1 + $0x18] sm:$0xff]
  %v51 = vld [vmem:[%s2] sm:$0xff]
  %v52 = vld [vmem:[%s2 + $0x8] sm:$0xff]
  %v53 = vld [vmem:[%s2 + $0x10] sm:$0xff]
  %v54 = vld [vmem:[%s2 + $0x18] sm:$0xff]
  %v55 = vld [vmem:[%s3] sm:$0x1]
  %v57 = vperm.slane %v55, 0
  %vm59 = vcmask 261120
  %v61 = vsel %vm59, %v43, 0
  %v64 = vsel %vm59, %v44, 0
  %v67 = vsel %vm59, %v45, 0
  %v70 = vsel %vm59, %v46, 0
  %72 = vmatpush.msra.mxu0 0.0
  %73 = vmatpush.msra.mxu0 0.0
  %74 = vmatpush.msra.mxu0 0.0
  %75 = vmatpush.msra.mxu0 0.0
  %76 = vmatpush.msra.mxu0 0.0
  %77 = vmatpush.msra.mxu0 0.0
  %78 = vmatpush.msra.mxu0 0.0
  %79 = vmatpush.msra.mxu0 0.0
  %80 = vmatpush.msra.mxu0 0.0
  %81 = vmatpush.msra.mxu0 0.0
  %82 = vmatpush.msra.mxu0 0.0
  %83 = vmatpush.msra.mxu0 0.0
  %84 = vmatpush.msra.mxu0 %v54
  %85 = vmatpush.msra.mxu0 %v53
  %86 = vmatpush.msra.mxu0 %v52
  %87 = vmatpush.msra.mxu0 %v51
  %88 = vmatmul.f32.gmra.mxu0 %v61
  %v89 = vpop.f32.mrf.mxu0
  %v90 = vadd.f32 %v57, %v89
  %91 = vmatmul.f32.gmra.mxu0 %v64
  %v92 = vpop.f32.mrf.mxu0
  %v93 = vadd.f32 %v57, %v92
  %94 = vmatmul.f32.gmra.mxu0 %v67
  %v95 = vpop.f32.mrf.mxu0
  %v96 = vadd.f32 %v57, %v95
  %97 = vmatmul.f32.gmra.mxu0 %v70
  %v98 = vpop.f32.mrf.mxu0
  %v99 = vadd.f32 %v57, %v98
  %100 = vdwg.mxu0
  %v101 = vld [vmem:[%s8] sm:$0xff]
  %v102 = vld [vmem:[%s8 + $0x8] sm:$0xff]
  %v103 = vld [vmem:[%s8 + $0x10] sm:$0xff]
  %v104 = vld [vmem:[%s8 + $0x18] sm:$0xff]
  %v105 = vld [vmem:[%s4] sm:$0xff]
  %v106 = vld [vmem:[%s4 + $0x8] sm:$0xff]
  %v107 = vld [vmem:[%s4 + $0x10] sm:$0xff]
  %v108 = vld [vmem:[%s4 + $0x18] sm:$0xff]
  %v109 = vld [vmem:[%s5] sm:$0x1]
  %v111 = vperm.slane %v109, 0
  %v114 = vsel %vm59, %v47, 0
  %v117 = vsel %vm59, %v48, 0
  %v120 = vsel %vm59, %v49, 0
  %v123 = vsel %vm59, %v50, 0
  %125 = vmatpush.msra.mxu0 0.0
  %126 = vmatpush.msra.mxu0 0.0
  %127 = vmatpush.msra.mxu0 0.0
  %128 = vmatpush.msra.mxu0 0.0
  %129 = vmatpush.msra.mxu0 0.0
  %130 = vmatpush.msra.mxu0 0.0
  %131 = vmatpush.msra.mxu0 0.0
  %132 = vmatpush.msra.mxu0 0.0
  %133 = vmatpush.msra.mxu0 0.0
  %134 = vmatpush.msra.mxu0 0.0
  %135 = vmatpush.msra.mxu0 0.0
  %136 = vmatpush.msra.mxu0 0.0
  %137 = vmatpush.msra.mxu0 %v108
  %138 = vmatpush.msra.mxu0 %v107
  %139 = vmatpush.msra.mxu0 %v106
  %140 = vmatpush.msra.mxu0 %v105
  %141 = vmatmul.f32.gmra.mxu0 %v114
  %v142 = vpop.f32.mrf.mxu0
  %v143 = vadd.f32 %v111, %v142
  %144 = vmatmul.f32.gmra.mxu0 %v117
  %v145 = vpop.f32.mrf.mxu0
  %v146 = vadd.f32 %v111, %v145
  %147 = vmatmul.f32.gmra.mxu0 %v120
  %v148 = vpop.f32.mrf.mxu0
  %v149 = vadd.f32 %v111, %v148
  %150 = vmatmul.f32.gmra.mxu0 %v123
  %v151 = vpop.f32.mrf.mxu0
  %v152 = vadd.f32 %v111, %v151
  %153 = vdwg.mxu0
  %155 = vset.pattern.permute.xlu0 0
  %156 = vperm.xlu0 %155, %v101
  %v157 = vpop.permute.xlu0 %156
  %160 = vset.pattern.permute.xlu0 0
  %161 = vperm.xlu0 %160, %v102
  %v162 = vpop.permute.xlu0 %161
  %165 = vset.pattern.permute.xlu0 0
  %166 = vperm.xlu0 %165, %v103
  %v167 = vpop.permute.xlu0 %166
  %170 = vset.pattern.permute.xlu0 0
  %171 = vperm.xlu0 %170, %v104
  %v172 = vpop.permute.xlu0 %171
  %v174 = vmul.f32 %v143, %v157
  %v175 = vmul.f32 %v146, %v162
  %v176 = vmul.f32 %v149, %v167
  %v177 = vmul.f32 %v152, %v172
  %v178 = vld [vmem:[%s6] sm:$0xff]
  %v179 = vld [vmem:[%s6 + $0x8] sm:$0xff]
  %v180 = vld [vmem:[%s6 + $0x10] sm:$0xff]
  %v181 = vld [vmem:[%s6 + $0x18] sm:$0xff]
  %v182 = vld [vmem:[%s7] sm:$0x1]
  %v184 = vperm.slane %v182, 0
  %186 = vmatpush.msra.mxu0 0.0
  %187 = vmatpush.msra.mxu0 0.0
  %188 = vmatpush.msra.mxu0 0.0
  %189 = vmatpush.msra.mxu0 0.0
  %190 = vmatpush.msra.mxu0 0.0
  %191 = vmatpush.msra.mxu0 0.0
  %192 = vmatpush.msra.mxu0 0.0
  %193 = vmatpush.msra.mxu0 0.0
  %194 = vmatpush.msra.mxu0 0.0
  %195 = vmatpush.msra.mxu0 0.0
  %196 = vmatpush.msra.mxu0 0.0
  %197 = vmatpush.msra.mxu0 0.0
  %198 = vmatpush.msra.mxu0 %v181
  %199 = vmatpush.msra.mxu0 %v180
  %200 = vmatpush.msra.mxu0 %v179
  %201 = vmatpush.msra.mxu0 %v178
  %202 = vmatmul.f32.gmra.mxu0 %v114
  %v203 = vpop.f32.mrf.mxu0
  %v204 = vadd.f32 %v184, %v203
  %205 = vmatmul.f32.gmra.mxu0 %v117
  %v206 = vpop.f32.mrf.mxu0
  %v207 = vadd.f32 %v184, %v206
  %208 = vmatmul.f32.gmra.mxu0 %v120
  %v209 = vpop.f32.mrf.mxu0
  %v210 = vadd.f32 %v184, %v209
  %211 = vmatmul.f32.gmra.mxu0 %v123
  %v212 = vpop.f32.mrf.mxu0
  %v213 = vadd.f32 %v184, %v212
  %214 = vdwg.mxu0
  %v215 = vmul.f32 %v204, %v157
  %v216 = vmul.f32 %v207, %v162
  %v217 = vmul.f32 %v210, %v167
  %v218 = vmul.f32 %v213, %v172
  %219 = vst.msk [vmem:[%s12] sm:$0xff] %vm59, %v215
  %220 = vst.msk [vmem:[%s12 + $0x8] sm:$0xff] %vm59, %v216
  %221 = vst.msk [vmem:[%s12 + $0x10] sm:$0xff] %vm59, %v217
  %222 = vst.msk [vmem:[%s12 + $0x18] sm:$0xff] %vm59, %v218
  %v223 = vld [vmem:[%s9] sm:$0xff]
  %v224 = vld [vmem:[%s9 + $0x8] sm:$0xff]
  %v225 = vld [vmem:[%s9 + $0x10] sm:$0xff]
  %v226 = vld [vmem:[%s9 + $0x18] sm:$0xff]
  %v227 = vld [vmem:[%s9 + $0x20] sm:$0xff]
  %v228 = vld [vmem:[%s9 + $0x28] sm:$0xff]
  %v229 = vld [vmem:[%s9 + $0x30] sm:$0xff]
  %v230 = vld [vmem:[%s9 + $0x38] sm:$0xff]
  %v231 = vld [vmem:[%s9 + $0x40] sm:$0xff]
  %v232 = vld [vmem:[%s9 + $0x48] sm:$0xff]
  %v233 = vld [vmem:[%s9 + $0x50] sm:$0xff]
  %v234 = vld [vmem:[%s9 + $0x58] sm:$0xff]
  %v235 = vld [vmem:[%s9 + $0x60] sm:$0xff]
  %v236 = vld [vmem:[%s9 + $0x68] sm:$0xff]
  %v237 = vld [vmem:[%s9 + $0x70] sm:$0xff]
  %v238 = vld [vmem:[%s9 + $0x78] sm:$0xff]
  %v239 = vld [vmem:[%s9 + $0x80] sm:$0xff]
  %v240 = vld [vmem:[%s9 + $0x88] sm:$0xff]
  %v241 = vld [vmem:[%s9 + $0x90] sm:$0xff]
  %v242 = vld [vmem:[%s9 + $0x98] sm:$0xff]
  %v243 = vld [vmem:[%s9 + $0xa0] sm:$0xff]
  %v244 = vld [vmem:[%s9 + $0xa8] sm:$0xff]
  %v245 = vld [vmem:[%s9 + $0xb0] sm:$0xff]
  %v246 = vld [vmem:[%s9 + $0xb8] sm:$0xff]
  %v247 = vld [vmem:[%s9 + $0xc0] sm:$0xff]
  %v248 = vld [vmem:[%s9 + $0xc8] sm:$0xff]
  %v249 = vld [vmem:[%s9 + $0xd0] sm:$0xff]
  %v250 = vld [vmem:[%s9 + $0xd8] sm:$0xff]
  %v251 = vld [vmem:[%s9 + $0xe0] sm:$0xff]
  %v252 = vld [vmem:[%s9 + $0xe8] sm:$0xff]
  %v253 = vld [vmem:[%s9 + $0xf0] sm:$0xff]
  %v254 = vld [vmem:[%s9 + $0xf8] sm:$0xff]
  %vm255 = vcmask 130048
  %v257 = vsel %vm255, %v223, 0
  %v260 = vsel %vm255, %v224, 0
  %v263 = vsel %vm255, %v225, 0
  %v266 = vsel %vm255, %v226, 0
  %v269 = vsel %vm255, %v227, 0
  %v272 = vsel %vm255, %v228, 0
  %v275 = vsel %vm255, %v229, 0
  %v278 = vsel %vm255, %v230, 0
  %v281 = vsel %vm255, %v231, 0
  %v284 = vsel %vm255, %v232, 0
  %v287 = vsel %vm255, %v233, 0
  %v290 = vsel %vm255, %v234, 0
  %v293 = vsel %vm255, %v235, 0
  %v296 = vsel %vm255, %v236, 0
  %v299 = vsel %vm255, %v237, 0
  %v302 = vsel %vm255, %v238, 0
  %v305 = vsel %vm255, %v239, 0
  %v308 = vsel %vm255, %v240, 0
  %v311 = vsel %vm255, %v241, 0
  %v314 = vsel %vm255, %v242, 0
  %v317 = vsel %vm255, %v243, 0
  %v320 = vsel %vm255, %v244, 0
  %v323 = vsel %vm255, %v245, 0
  %v326 = vsel %vm255, %v246, 0
  %v329 = vsel %vm255, %v247, 0
  %v332 = vsel %vm255, %v248, 0
  %v335 = vsel %vm255, %v249, 0
  %v338 = vsel %vm255, %v250, 0
  %v341 = vsel %vm255, %v251, 0
  %v344 = vsel %vm255, %v252, 0
  %v347 = vsel %vm255, %v253, 0
  %v350 = vsel %vm255, %v254, 0
  %352 = vmatpush.msra.mxu0 0.0
  %353 = vmatpush.msra.mxu0 0.0
  %354 = vmatpush.msra.mxu0 0.0
  %355 = vmatpush.msra.mxu0 0.0
  %356 = vmatpush.msra.mxu0 0.0
  %357 = vmatpush.msra.mxu0 0.0
  %358 = vmatpush.msra.mxu0 0.0
  %359 = vmatpush.msra.mxu0 0.0
  %360 = vmatpush.msra.mxu0 0.0
  %361 = vmatpush.msra.mxu0 0.0
  %362 = vmatpush.msra.mxu0 0.0
  %363 = vmatpush.msra.mxu0 0.0
  %364 = vmatpush.msra.mxu0 0.0
  %365 = vmatpush.msra.mxu0 0.0
  %366 = vmatpush.msra.mxu0 %v93
  %367 = vmatpush.msra.mxu0 %v90
  %368 = vmatmul.f32.gmra.mxu0 %v257
  %v369 = vpop.f32.mrf.mxu0
  %v370 = vadd.f32 0.0, %v369
  %371 = vmatmul.f32.gmra.mxu0 %v260
  %v372 = vpop.f32.mrf.mxu0
  %v373 = vadd.f32 0.0, %v372
  %374 = vmatmul.f32.gmra.mxu0 %v263
  %v375 = vpop.f32.mrf.mxu0
  %v376 = vadd.f32 0.0, %v375
  %377 = vmatmul.f32.gmra.mxu0 %v266
  %v378 = vpop.f32.mrf.mxu0
  %v379 = vadd.f32 0.0, %v378
  %380 = vmatmul.f32.gmra.mxu0 %v269
  %v381 = vpop.f32.mrf.mxu0
  %v382 = vadd.f32 0.0, %v381
  %383 = vmatmul.f32.gmra.mxu0 %v272
  %v384 = vpop.f32.mrf.mxu0
  %v385 = vadd.f32 0.0, %v384
  %386 = vmatmul.f32.gmra.mxu0 %v275
  %v387 = vpop.f32.mrf.mxu0
  %v388 = vadd.f32 0.0, %v387
  %389 = vmatmul.f32.gmra.mxu0 %v278
  %v390 = vpop.f32.mrf.mxu0
  %v391 = vadd.f32 0.0, %v390
  %392 = vmatmul.f32.gmra.mxu0 %v281
  %v393 = vpop.f32.mrf.mxu0
  %v394 = vadd.f32 0.0, %v393
  %395 = vmatmul.f32.gmra.mxu0 %v284
  %v396 = vpop.f32.mrf.mxu0
  %v397 = vadd.f32 0.0, %v396
  %398 = vmatmul.f32.gmra.mxu0 %v287
  %v399 = vpop.f32.mrf.mxu0
  %v400 = vadd.f32 0.0, %v399
  %401 = vmatmul.f32.gmra.mxu0 %v290
  %v402 = vpop.f32.mrf.mxu0
  %v403 = vadd.f32 0.0, %v402
  %404 = vmatmul.f32.gmra.mxu0 %v293
  %v405 = vpop.f32.mrf.mxu0
  %v406 = vadd.f32 0.0, %v405
  %407 = vmatmul.f32.gmra.mxu0 %v296
  %v408 = vpop.f32.mrf.mxu0
  %v409 = vadd.f32 0.0, %v408
  %410 = vmatmul.f32.gmra.mxu0 %v299
  %v411 = vpop.f32.mrf.mxu0
  %v412 = vadd.f32 0.0, %v411
  %413 = vmatmul.f32.gmra.mxu0 %v302
  %v414 = vpop.f32.mrf.mxu0
  %v415 = vadd.f32 0.0, %v414
  %416 = vmatmul.f32.gmra.mxu0 %v305
  %v417 = vpop.f32.mrf.mxu0
  %v418 = vadd.f32 0.0, %v417
  %419 = vmatmul.f32.gmra.mxu0 %v308
  %v420 = vpop.f32.mrf.mxu0
  %v421 = vadd.f32 0.0, %v420
  %422 = vmatmul.f32.gmra.mxu0 %v311
  %v423 = vpop.f32.mrf.mxu0
  %v424 = vadd.f32 0.0, %v423
  %425 = vmatmul.f32.gmra.mxu0 %v314
  %v426 = vpop.f32.mrf.mxu0
  %v427 = vadd.f32 0.0, %v426
  %428 = vmatmul.f32.gmra.mxu0 %v317
  %v429 = vpop.f32.mrf.mxu0
  %v430 = vadd.f32 0.0, %v429
  %431 = vmatmul.f32.gmra.mxu0 %v320
  %v432 = vpop.f32.mrf.mxu0
  %v433 = vadd.f32 0.0, %v432
  %434 = vmatmul.f32.gmra.mxu0 %v323
  %v435 = vpop.f32.mrf.mxu0
  %v436 = vadd.f32 0.0, %v435
  %437 = vmatmul.f32.gmra.mxu0 %v326
  %v438 = vpop.f32.mrf.mxu0
  %v439 = vadd.f32 0.0, %v438
  %440 = vmatmul.f32.gmra.mxu0 %v329
  %v441 = vpop.f32.mrf.mxu0
  %v442 = vadd.f32 0.0, %v441
  %443 = vmatmul.f32.gmra.mxu0 %v332
  %v444 = vpop.f32.mrf.mxu0
  %v445 = vadd.f32 0.0, %v444
  %446 = vmatmul.f32.gmra.mxu0 %v335
  %v447 = vpop.f32.mrf.mxu0
  %v448 = vadd.f32 0.0, %v447
  %449 = vmatmul.f32.gmra.mxu0 %v338
  %v450 = vpop.f32.mrf.mxu0
  %v451 = vadd.f32 0.0, %v450
  %452 = vmatmul.f32.gmra.mxu0 %v341
  %v453 = vpop.f32.mrf.mxu0
  %v454 = vadd.f32 0.0, %v453
  %455 = vmatmul.f32.gmra.mxu0 %v344
  %v456 = vpop.f32.mrf.mxu0
  %v457 = vadd.f32 0.0, %v456
  %458 = vmatmul.f32.gmra.mxu0 %v347
  %v459 = vpop.f32.mrf.mxu0
  %v460 = vadd.f32 0.0, %v459
  %461 = vmatmul.f32.gmra.mxu0 %v350
  %v462 = vpop.f32.mrf.mxu0
  %v463 = vadd.f32 0.0, %v462
  %464 = vdwg.mxu0
  %v465 = vld [vmem:[%s10] sm:$0xff]
  %v466 = vld [vmem:[%s10 + $0x8] sm:$0xff]
  %v467 = vld [vmem:[%s10 + $0x10] sm:$0xff]
  %v468 = vld [vmem:[%s10 + $0x18] sm:$0xff]
  %v469 = vld [vmem:[%s10 + $0x20] sm:$0xff]
  %v470 = vld [vmem:[%s10 + $0x28] sm:$0xff]
  %v471 = vld [vmem:[%s10 + $0x30] sm:$0xff]
  %v472 = vld [vmem:[%s10 + $0x38] sm:$0xff]
  %v473 = vld [vmem:[%s10 + $0x40] sm:$0xff]
  %v474 = vld [vmem:[%s10 + $0x48] sm:$0xff]
  %v475 = vld [vmem:[%s10 + $0x50] sm:$0xff]
  %v476 = vld [vmem:[%s10 + $0x58] sm:$0xff]
  %v477 = vld [vmem:[%s10 + $0x60] sm:$0xff]
  %v478 = vld [vmem:[%s10 + $0x68] sm:$0xff]
  %v479 = vld [vmem:[%s10 + $0x70] sm:$0xff]
  %v480 = vld [vmem:[%s10 + $0x78] sm:$0xff]
  %v481 = vld [vmem:[%s10 + $0x80] sm:$0xff]
  %v482 = vld [vmem:[%s10 + $0x88] sm:$0xff]
  %v483 = vld [vmem:[%s10 + $0x90] sm:$0xff]
  %v484 = vld [vmem:[%s10 + $0x98] sm:$0xff]
  %v485 = vld [vmem:[%s10 + $0xa0] sm:$0xff]
  %v486 = vld [vmem:[%s10 + $0xa8] sm:$0xff]
  %v487 = vld [vmem:[%s10 + $0xb0] sm:$0xff]
  %v488 = vld [vmem:[%s10 + $0xb8] sm:$0xff]
  %v489 = vld [vmem:[%s10 + $0xc0] sm:$0xff]
  %v490 = vld [vmem:[%s10 + $0xc8] sm:$0xff]
  %v491 = vld [vmem:[%s10 + $0xd0] sm:$0xff]
  %v492 = vld [vmem:[%s10 + $0xd8] sm:$0xff]
  %v493 = vld [vmem:[%s10 + $0xe0] sm:$0xff]
  %v494 = vld [vmem:[%s10 + $0xe8] sm:$0xff]
  %v495 = vld [vmem:[%s10 + $0xf0] sm:$0xff]
  %v496 = vld [vmem:[%s10 + $0xf8] sm:$0xff]
  %v498 = vsel %vm255, %v465, 0
  %v501 = vsel %vm255, %v466, 0
  %v504 = vsel %vm255, %v467, 0
  %v507 = vsel %vm255, %v468, 0
  %v510 = vsel %vm255, %v469, 0
  %v513 = vsel %vm255, %v470, 0
  %v516 = vsel %vm255, %v471, 0
  %v519 = vsel %vm255, %v472, 0
  %v522 = vsel %vm255, %v473, 0
  %v525 = vsel %vm255, %v474, 0
  %v528 = vsel %vm255, %v475, 0
  %v531 = vsel %vm255, %v476, 0
  %v534 = vsel %vm255, %v477, 0
  %v537 = vsel %vm255, %v478, 0
  %v540 = vsel %vm255, %v479, 0
  %v543 = vsel %vm255, %v480, 0
  %v546 = vsel %vm255, %v481, 0
  %v549 = vsel %vm255, %v482, 0
  %v552 = vsel %vm255, %v483, 0
  %v555 = vsel %vm255, %v484, 0
  %v558 = vsel %vm255, %v485, 0
  %v561 = vsel %vm255, %v486, 0
  %v564 = vsel %vm255, %v487, 0
  %v567 = vsel %vm255, %v488, 0
  %v570 = vsel %vm255, %v489, 0
  %v573 = vsel %vm255, %v490, 0
  %v576 = vsel %vm255, %v491, 0
  %v579 = vsel %vm255, %v492, 0
  %v582 = vsel %vm255, %v493, 0
  %v585 = vsel %vm255, %v494, 0
  %v588 = vsel %vm255, %v495, 0
  %v591 = vsel %vm255, %v496, 0
  %593 = vmatpush.msra.mxu0 0.0
  %594 = vmatpush.msra.mxu0 0.0
  %595 = vmatpush.msra.mxu0 0.0
  %596 = vmatpush.msra.mxu0 0.0
  %597 = vmatpush.msra.mxu0 0.0
  %598 = vmatpush.msra.mxu0 0.0
  %599 = vmatpush.msra.mxu0 0.0
  %600 = vmatpush.msra.mxu0 0.0
  %601 = vmatpush.msra.mxu0 0.0
  %602 = vmatpush.msra.mxu0 0.0
  %603 = vmatpush.msra.mxu0 0.0
  %604 = vmatpush.msra.mxu0 0.0
  %605 = vmatpush.msra.mxu0 0.0
  %606 = vmatpush.msra.mxu0 0.0
  %607 = vmatpush.msra.mxu0 %v175
  %608 = vmatpush.msra.mxu0 %v174
  %609 = vmatmul.f32.gmra.mxu0 %v498
  %v610 = vpop.f32.mrf.mxu0
  %v611 = vadd.f32 0.0, %v610
  %612 = vmatmul.f32.gmra.mxu0 %v501
  %v613 = vpop.f32.mrf.mxu0
  %v614 = vadd.f32 0.0, %v613
  %615 = vmatmul.f32.gmra.mxu0 %v504
  %v616 = vpop.f32.mrf.mxu0
  %v617 = vadd.f32 0.0, %v616
  %618 = vmatmul.f32.gmra.mxu0 %v507
  %v619 = vpop.f32.mrf.mxu0
  %v620 = vadd.f32 0.0, %v619
  %621 = vmatmul.f32.gmra.mxu0 %v510
  %v622 = vpop.f32.mrf.mxu0
  %v623 = vadd.f32 0.0, %v622
  %624 = vmatmul.f32.gmra.mxu0 %v513
  %v625 = vpop.f32.mrf.mxu0
  %v626 = vadd.f32 0.0, %v625
  %627 = vmatmul.f32.gmra.mxu0 %v516
  %v628 = vpop.f32.mrf.mxu0
  %v629 = vadd.f32 0.0, %v628
  %630 = vmatmul.f32.gmra.mxu0 %v519
  %v631 = vpop.f32.mrf.mxu0
  %v632 = vadd.f32 0.0, %v631
  %633 = vmatmul.f32.gmra.mxu0 %v522
  %v634 = vpop.f32.mrf.mxu0
  %v635 = vadd.f32 0.0, %v634
  %636 = vmatmul.f32.gmra.mxu0 %v525
  %v637 = vpop.f32.mrf.mxu0
  %v638 = vadd.f32 0.0, %v637
  %639 = vmatmul.f32.gmra.mxu0 %v528
  %v640 = vpop.f32.mrf.mxu0
  %v641 = vadd.f32 0.0, %v640
  %642 = vmatmul.f32.gmra.mxu0 %v531
  %v643 = vpop.f32.mrf.mxu0
  %v644 = vadd.f32 0.0, %v643
  %645 = vmatmul.f32.gmra.mxu0 %v534
  %v646 = vpop.f32.mrf.mxu0
  %v647 = vadd.f32 0.0, %v646
  %648 = vmatmul.f32.gmra.mxu0 %v537
  %v649 = vpop.f32.mrf.mxu0
  %v650 = vadd.f32 0.0, %v649
  %651 = vmatmul.f32.gmra.mxu0 %v540
  %v652 = vpop.f32.mrf.mxu0
  %v653 = vadd.f32 0.0, %v652
  %654 = vmatmul.f32.gmra.mxu0 %v543
  %v655 = vpop.f32.mrf.mxu0
  %v656 = vadd.f32 0.0, %v655
  %657 = vmatmul.f32.gmra.mxu0 %v546
  %v658 = vpop.f32.mrf.mxu0
  %v659 = vadd.f32 0.0, %v658
  %660 = vmatmul.f32.gmra.mxu0 %v549
  %v661 = vpop.f32.mrf.mxu0
  %v662 = vadd.f32 0.0, %v661
  %663 = vmatmul.f32.gmra.mxu0 %v552
  %v664 = vpop.f32.mrf.mxu0
  %v665 = vadd.f32 0.0, %v664
  %666 = vmatmul.f32.gmra.mxu0 %v555
  %v667 = vpop.f32.mrf.mxu0
  %v668 = vadd.f32 0.0, %v667
  %669 = vmatmul.f32.gmra.mxu0 %v558
  %v670 = vpop.f32.mrf.mxu0
  %v671 = vadd.f32 0.0, %v670
  %672 = vmatmul.f32.gmra.mxu0 %v561
  %v673 = vpop.f32.mrf.mxu0
  %v674 = vadd.f32 0.0, %v673
  %675 = vmatmul.f32.gmra.mxu0 %v564
  %v676 = vpop.f32.mrf.mxu0
  %v677 = vadd.f32 0.0, %v676
  %678 = vmatmul.f32.gmra.mxu0 %v567
  %v679 = vpop.f32.mrf.mxu0
  %v680 = vadd.f32 0.0, %v679
  %681 = vmatmul.f32.gmra.mxu0 %v570
  %v682 = vpop.f32.mrf.mxu0
  %v683 = vadd.f32 0.0, %v682
  %684 = vmatmul.f32.gmra.mxu0 %v573
  %v685 = vpop.f32.mrf.mxu0
  %v686 = vadd.f32 0.0, %v685
  %687 = vmatmul.f32.gmra.mxu0 %v576
  %v688 = vpop.f32.mrf.mxu0
  %v689 = vadd.f32 0.0, %v688
  %690 = vmatmul.f32.gmra.mxu0 %v579
  %v691 = vpop.f32.mrf.mxu0
  %v692 = vadd.f32 0.0, %v691
  %693 = vmatmul.f32.gmra.mxu0 %v582
  %v694 = vpop.f32.mrf.mxu0
  %v695 = vadd.f32 0.0, %v694
  %696 = vmatmul.f32.gmra.mxu0 %v585
  %v697 = vpop.f32.mrf.mxu0
  %v698 = vadd.f32 0.0, %v697
  %699 = vmatmul.f32.gmra.mxu0 %v588
  %v700 = vpop.f32.mrf.mxu0
  %v701 = vadd.f32 0.0, %v700
  %702 = vmatmul.f32.gmra.mxu0 %v591
  %v703 = vpop.f32.mrf.mxu0
  %v704 = vadd.f32 0.0, %v703
  %705 = vdwg.mxu0
  %v706 = vld [vmem:[%s11] sm:$0xff]
  %v707 = vld [vmem:[%s11 + $0x8] sm:$0xff]
  %v708 = vld [vmem:[%s11 + $0x10] sm:$0xff]
  %v709 = vld [vmem:[%s11 + $0x18] sm:$0xff]
  %v710 = vmul.f32 %v370, %v611
  %v711 = vmul.f32 %v373, %v614
  %v712 = vmul.f32 %v376, %v617
  %v713 = vmul.f32 %v379, %v620
  %v714 = vmul.f32 %v382, %v623
  %v715 = vmul.f32 %v385, %v626
  %v716 = vmul.f32 %v388, %v629
  %v717 = vmul.f32 %v391, %v632
  %v718 = vmul.f32 %v394, %v635
  %v719 = vmul.f32 %v397, %v638
  %v720 = vmul.f32 %v400, %v641
  %v721 = vmul.f32 %v403, %v644
  %v722 = vmul.f32 %v406, %v647
  %v723 = vmul.f32 %v409, %v650
  %v724 = vmul.f32 %v412, %v653
  %v725 = vmul.f32 %v415, %v656
  %v726 = vmul.f32 %v418, %v659
  %v727 = vmul.f32 %v421, %v662
  %v728 = vmul.f32 %v424, %v665
  %v729 = vmul.f32 %v427, %v668
  %v730 = vmul.f32 %v430, %v671
  %v731 = vmul.f32 %v433, %v674
  %v732 = vmul.f32 %v436, %v677
  %v733 = vmul.f32 %v439, %v680
  %v734 = vmul.f32 %v442, %v683
  %v735 = vmul.f32 %v445, %v686
  %v736 = vmul.f32 %v448, %v689
  %v737 = vmul.f32 %v451, %v692
  %v738 = vmul.f32 %v454, %v695
  %v739 = vmul.f32 %v457, %v698
  %v740 = vmul.f32 %v460, %v701
  %v741 = vmul.f32 %v463, %v704
  %742 = vmatpush.msra.mxu0 %v725
  %743 = vmatpush.msra.mxu0 %v724
  %744 = vmatpush.msra.mxu0 %v723
  %745 = vmatpush.msra.mxu0 %v722
  %746 = vmatpush.msra.mxu0 %v721
  %747 = vmatpush.msra.mxu0 %v720
  %748 = vmatpush.msra.mxu0 %v719
  %749 = vmatpush.msra.mxu0 %v718
  %750 = vmatpush.msra.mxu0 %v717
  %751 = vmatpush.msra.mxu0 %v716
  %752 = vmatpush.msra.mxu0 %v715
  %753 = vmatpush.msra.mxu0 %v714
  %754 = vmatpush.msra.mxu0 %v713
  %755 = vmatpush.msra.mxu0 %v712
  %756 = vmatpush.msra.mxu0 %v711
  %757 = vmatpush.msra.mxu0 %v710
  %758 = vmatmul.f32.gmra.mxu0 %v706
  %v759 = vpop.f32.mrf.mxu0
  %v760 = vadd.f32 0.0, %v759
  %761 = vmatmul.f32.gmra.mxu0 %v708
  %v762 = vpop.f32.mrf.mxu0
  %v763 = vadd.f32 0.0, %v762
  %764 = vdwg.mxu0
  %765 = vmatpush.msra.mxu0 %v741
  %766 = vmatpush.msra.mxu0 %v740
  %767 = vmatpush.msra.mxu0 %v739
  %768 = vmatpush.msra.mxu0 %v738
  %769 = vmatpush.msra.mxu0 %v737
  %770 = vmatpush.msra.mxu0 %v736
  %771 = vmatpush.msra.mxu0 %v735
  %772 = vmatpush.msra.mxu0 %v734
  %773 = vmatpush.msra.mxu0 %v733
  %774 = vmatpush.msra.mxu0 %v732
  %775 = vmatpush.msra.mxu0 %v731
  %776 = vmatpush.msra.mxu0 %v730
  %777 = vmatpush.msra.mxu0 %v729
  %778 = vmatpush.msra.mxu0 %v728
  %779 = vmatpush.msra.mxu0 %v727
  %780 = vmatpush.msra.mxu0 %v726
  %781 = vmatmul.f32.gmra.mxu0 %v707
  %v782 = vpop.f32.mrf.mxu0
  %v783 = vadd.f32 %v760, %v782
  %784 = vmatmul.f32.gmra.mxu0 %v709
  %v785 = vpop.f32.mrf.mxu0
  %v786 = vadd.f32 %v763, %v785
  %787 = vdwg.mxu0
  %v788 = vsel %vm59, %v783, 0.0
  %789 = vadd.xlane.f32.xlu0 %v788
  %v790 = vpop.xlane.xlu0 %789
  %v791 = vsel %vm59, %v786, 0.0
  %792 = vadd.xlane.f32.xlu0 %v791
  %v793 = vpop.xlane.xlu0 %792
  %v794 = vmul.f32 %v790, 0.03125
  %v795 = vmul.f32 %v793, 0.03125
  %vm796 = vcmask 7168
  %797 = vst.msk [vmem:[%s13] sm:$0xff] %vm796, %v794
  %798 = vst.msk [vmem:[%s13 + $0x8] sm:$0xff] %vm796, %v795
  %v799 = vld [vmem:[%s9] sm:$0xff]
  %v800 = vld [vmem:[%s9 + $0x8] sm:$0xff]
  %v801 = vld [vmem:[%s9 + $0x10] sm:$0xff]
  %v802 = vld [vmem:[%s9 + $0x18] sm:$0xff]
  %v803 = vld [vmem:[%s9 + $0x20] sm:$0xff]
  %v804 = vld [vmem:[%s9 + $0x28] sm:$0xff]
  %v805 = vld [vmem:[%s9 + $0x30] sm:$0xff]
  %v806 = vld [vmem:[%s9 + $0x38] sm:$0xff]
  %v807 = vld [vmem:[%s9 + $0x40] sm:$0xff]
  %v808 = vld [vmem:[%s9 + $0x48] sm:$0xff]
  %v809 = vld [vmem:[%s9 + $0x50] sm:$0xff]
  %v810 = vld [vmem:[%s9 + $0x58] sm:$0xff]
  %v811 = vld [vmem:[%s9 + $0x60] sm:$0xff]
  %v812 = vld [vmem:[%s9 + $0x68] sm:$0xff]
  %v813 = vld [vmem:[%s9 + $0x70] sm:$0xff]
  %v814 = vld [vmem:[%s9 + $0x78] sm:$0xff]
  %v815 = vld [vmem:[%s9 + $0x80] sm:$0xff]
  %v816 = vld [vmem:[%s9 + $0x88] sm:$0xff]
  %v817 = vld [vmem:[%s9 + $0x90] sm:$0xff]
  %v818 = vld [vmem:[%s9 + $0x98] sm:$0xff]
  %v819 = vld [vmem:[%s9 + $0xa0] sm:$0xff]
  %v820 = vld [vmem:[%s9 + $0xa8] sm:$0xff]
  %v821 = vld [vmem:[%s9 + $0xb0] sm:$0xff]
  %v822 = vld [vmem:[%s9 + $0xb8] sm:$0xff]
  %v823 = vld [vmem:[%s9 + $0xc0] sm:$0xff]
  %v824 = vld [vmem:[%s9 + $0xc8] sm:$0xff]
  %v825 = vld [vmem:[%s9 + $0xd0] sm:$0xff]
  %v826 = vld [vmem:[%s9 + $0xd8] sm:$0xff]
  %v827 = vld [vmem:[%s9 + $0xe0] sm:$0xff]
  %v828 = vld [vmem:[%s9 + $0xe8] sm:$0xff]
  %v829 = vld [vmem:[%s9 + $0xf0] sm:$0xff]
  %v830 = vld [vmem:[%s9 + $0xf8] sm:$0xff]
  %v832 = vsel %vm255, %v799, 0
  %v835 = vsel %vm255, %v800, 0
  %v838 = vsel %vm255, %v801, 0
  %v841 = vsel %vm255, %v802, 0
  %v844 = vsel %vm255, %v803, 0
  %v847 = vsel %vm255, %v804, 0
  %v850 = vsel %vm255, %v805, 0
  %v853 = vsel %vm255, %v806, 0
  %v856 = vsel %vm255, %v807, 0
  %v859 = vsel %vm255, %v808, 0
  %v862 = vsel %vm255, %v809, 0
  %v865 = vsel %vm255, %v810, 0
  %v868 = vsel %vm255, %v811, 0
  %v871 = vsel %vm255, %v812, 0
  %v874 = vsel %vm255, %v813, 0
  %v877 = vsel %vm255, %v814, 0
  %v880 = vsel %vm255, %v815, 0
  %v883 = vsel %vm255, %v816, 0
  %v886 = vsel %vm255, %v817, 0
  %v889 = vsel %vm255, %v818, 0
  %v892 = vsel %vm255, %v819, 0
  %v895 = vsel %vm255, %v820, 0
  %v898 = vsel %vm255, %v821, 0
  %v901 = vsel %vm255, %v822, 0
  %v904 = vsel %vm255, %v823, 0
  %v907 = vsel %vm255, %v824, 0
  %v910 = vsel %vm255, %v825, 0
  %v913 = vsel %vm255, %v826, 0
  %v916 = vsel %vm255, %v827, 0
  %v919 = vsel %vm255, %v828, 0
  %v922 = vsel %vm255, %v829, 0
  %v925 = vsel %vm255, %v830, 0
  %927 = vmatpush.msra.mxu0 0.0
  %928 = vmatpush.msra.mxu0 0.0
  %929 = vmatpush.msra.mxu0 0.0
  %930 = vmatpush.msra.mxu0 0.0
  %931 = vmatpush.msra.mxu0 0.0
  %932 = vmatpush.msra.mxu0 0.0
  %933 = vmatpush.msra.mxu0 0.0
  %934 = vmatpush.msra.mxu0 0.0
  %935 = vmatpush.msra.mxu0 0.0
  %936 = vmatpush.msra.mxu0 0.0
  %937 = vmatpush.msra.mxu0 0.0
  %938 = vmatpush.msra.mxu0 0.0
  %939 = vmatpush.msra.mxu0 0.0
  %940 = vmatpush.msra.mxu0 0.0
  %941 = vmatpush.msra.mxu0 %v99
  %942 = vmatpush.msra.mxu0 %v96
  %943 = vmatmul.f32.gmra.mxu0 %v832
  %v944 = vpop.f32.mrf.mxu0
  %v945 = vadd.f32 0.0, %v944
  %946 = vmatmul.f32.gmra.mxu0 %v835
  %v947 = vpop.f32.mrf.mxu0
  %v948 = vadd.f32 0.0, %v947
  %949 = vmatmul.f32.gmra.mxu0 %v838
  %v950 = vpop.f32.mrf.mxu0
  %v951 = vadd.f32 0.0, %v950
  %952 = vmatmul.f32.gmra.mxu0 %v841
  %v953 = vpop.f32.mrf.mxu0
  %v954 = vadd.f32 0.0, %v953
  %955 = vmatmul.f32.gmra.mxu0 %v844
  %v956 = vpop.f32.mrf.mxu0
  %v957 = vadd.f32 0.0, %v956
  %958 = vmatmul.f32.gmra.mxu0 %v847
  %v959 = vpop.f32.mrf.mxu0
  %v960 = vadd.f32 0.0, %v959
  %961 = vmatmul.f32.gmra.mxu0 %v850
  %v962 = vpop.f32.mrf.mxu0
  %v963 = vadd.f32 0.0, %v962
  %964 = vmatmul.f32.gmra.mxu0 %v853
  %v965 = vpop.f32.mrf.mxu0
  %v966 = vadd.f32 0.0, %v965
  %967 = vmatmul.f32.gmra.mxu0 %v856
  %v968 = vpop.f32.mrf.mxu0
  %v969 = vadd.f32 0.0, %v968
  %970 = vmatmul.f32.gmra.mxu0 %v859
  %v971 = vpop.f32.mrf.mxu0
  %v972 = vadd.f32 0.0, %v971
  %973 = vmatmul.f32.gmra.mxu0 %v862
  %v974 = vpop.f32.mrf.mxu0
  %v975 = vadd.f32 0.0, %v974
  %976 = vmatmul.f32.gmra.mxu0 %v865
  %v977 = vpop.f32.mrf.mxu0
  %v978 = vadd.f32 0.0, %v977
  %979 = vmatmul.f32.gmra.mxu0 %v868
  %v980 = vpop.f32.mrf.mxu0
  %v981 = vadd.f32 0.0, %v980
  %982 = vmatmul.f32.gmra.mxu0 %v871
  %v983 = vpop.f32.mrf.mxu0
  %v984 = vadd.f32 0.0, %v983
  %985 = vmatmul.f32.gmra.mxu0 %v874
  %v986 = vpop.f32.mrf.mxu0
  %v987 = vadd.f32 0.0, %v986
  %988 = vmatmul.f32.gmra.mxu0 %v877
  %v989 = vpop.f32.mrf.mxu0
  %v990 = vadd.f32 0.0, %v989
  %991 = vmatmul.f32.gmra.mxu0 %v880
  %v992 = vpop.f32.mrf.mxu0
  %v993 = vadd.f32 0.0, %v992
  %994 = vmatmul.f32.gmra.mxu0 %v883
  %v995 = vpop.f32.mrf.mxu0
  %v996 = vadd.f32 0.0, %v995
  %997 = vmatmul.f32.gmra.mxu0 %v886
  %v998 = vpop.f32.mrf.mxu0
  %v999 = vadd.f32 0.0, %v998
  %1000 = vmatmul.f32.gmra.mxu0 %v889
  %v1001 = vpop.f32.mrf.mxu0
  %v1002 = vadd.f32 0.0, %v1001
  %1003 = vmatmul.f32.gmra.mxu0 %v892
  %v1004 = vpop.f32.mrf.mxu0
  %v1005 = vadd.f32 0.0, %v1004
  %1006 = vmatmul.f32.gmra.mxu0 %v895
  %v1007 = vpop.f32.mrf.mxu0
  %v1008 = vadd.f32 0.0, %v1007
  %1009 = vmatmul.f32.gmra.mxu0 %v898
  %v1010 = vpop.f32.mrf.mxu0
  %v1011 = vadd.f32 0.0, %v1010
  %1012 = vmatmul.f32.gmra.mxu0 %v901
  %v1013 = vpop.f32.mrf.mxu0
  %v1014 = vadd.f32 0.0, %v1013
  %1015 = vmatmul.f32.gmra.mxu0 %v904
  %v1016 = vpop.f32.mrf.mxu0
  %v1017 = vadd.f32 0.0, %v1016
  %1018 = vmatmul.f32.gmra.mxu0 %v907
  %v1019 = vpop.f32.mrf.mxu0
  %v1020 = vadd.f32 0.0, %v1019
  %1021 = vmatmul.f32.gmra.mxu0 %v910
  %v1022 = vpop.f32.mrf.mxu0
  %v1023 = vadd.f32 0.0, %v1022
  %1024 = vmatmul.f32.gmra.mxu0 %v913
  %v1025 = vpop.f32.mrf.mxu0
  %v1026 = vadd.f32 0.0, %v1025
  %1027 = vmatmul.f32.gmra.mxu0 %v916
  %v1028 = vpop.f32.mrf.mxu0
  %v1029 = vadd.f32 0.0, %v1028
  %1030 = vmatmul.f32.gmra.mxu0 %v919
  %v1031 = vpop.f32.mrf.mxu0
  %v1032 = vadd.f32 0.0, %v1031
  %1033 = vmatmul.f32.gmra.mxu0 %v922
  %v1034 = vpop.f32.mrf.mxu0
  %v1035 = vadd.f32 0.0, %v1034
  %1036 = vmatmul.f32.gmra.mxu0 %v925
  %v1037 = vpop.f32.mrf.mxu0
  %v1038 = vadd.f32 0.0, %v1037
  %1039 = vdwg.mxu0
  %v1040 = vld [vmem:[%s10] sm:$0xff]
  %v1041 = vld [vmem:[%s10 + $0x8] sm:$0xff]
  %v1042 = vld [vmem:[%s10 + $0x10] sm:$0xff]
  %v1043 = vld [vmem:[%s10 + $0x18] sm:$0xff]
  %v1044 = vld [vmem:[%s10 + $0x20] sm:$0xff]
  %v1045 = vld [vmem:[%s10 + $0x28] sm:$0xff]
  %v1046 = vld [vmem:[%s10 + $0x30] sm:$0xff]
  %v1047 = vld [vmem:[%s10 + $0x38] sm:$0xff]
  %v1048 = vld [vmem:[%s10 + $0x40] sm:$0xff]
  %v1049 = vld [vmem:[%s10 + $0x48] sm:$0xff]
  %v1050 = vld [vmem:[%s10 + $0x50] sm:$0xff]
  %v1051 = vld [vmem:[%s10 + $0x58] sm:$0xff]
  %v1052 = vld [vmem:[%s10 + $0x60] sm:$0xff]
  %v1053 = vld [vmem:[%s10 + $0x68] sm:$0xff]
  %v1054 = vld [vmem:[%s10 + $0x70] sm:$0xff]
  %v1055 = vld [vmem:[%s10 + $0x78] sm:$0xff]
  %v1056 = vld [vmem:[%s10 + $0x80] sm:$0xff]
  %v1057 = vld [vmem:[%s10 + $0x88] sm:$0xff]
  %v1058 = vld [vmem:[%s10 + $0x90] sm:$0xff]
  %v1059 = vld [vmem:[%s10 + $0x98] sm:$0xff]
  %v1060 = vld [vmem:[%s10 + $0xa0] sm:$0xff]
  %v1061 = vld [vmem:[%s10 + $0xa8] sm:$0xff]
  %v1062 = vld [vmem:[%s10 + $0xb0] sm:$0xff]
  %v1063 = vld [vmem:[%s10 + $0xb8] sm:$0xff]
  %v1064 = vld [vmem:[%s10 + $0xc0] sm:$0xff]
  %v1065 = vld [vmem:[%s10 + $0xc8] sm:$0xff]
  %v1066 = vld [vmem:[%s10 + $0xd0] sm:$0xff]
  %v1067 = vld [vmem:[%s10 + $0xd8] sm:$0xff]
  %v1068 = vld [vmem:[%s10 + $0xe0] sm:$0xff]
  %v1069 = vld [vmem:[%s10 + $0xe8] sm:$0xff]
  %v1070 = vld [vmem:[%s10 + $0xf0] sm:$0xff]
  %v1071 = vld [vmem:[%s10 + $0xf8] sm:$0xff]
  %v1073 = vsel %vm255, %v1040, 0
  %v1076 = vsel %vm255, %v1041, 0
  %v1079 = vsel %vm255, %v1042, 0
  %v1082 = vsel %vm255, %v1043, 0
  %v1085 = vsel %vm255, %v1044, 0
  %v1088 = vsel %vm255, %v1045, 0
  %v1091 = vsel %vm255, %v1046, 0
  %v1094 = vsel %vm255, %v1047, 0
  %v1097 = vsel %vm255, %v1048, 0
  %v1100 = vsel %vm255, %v1049, 0
  %v1103 = vsel %vm255, %v1050, 0
  %v1106 = vsel %vm255, %v1051, 0
  %v1109 = vsel %vm255, %v1052, 0
  %v1112 = vsel %vm255, %v1053, 0
  %v1115 = vsel %vm255, %v1054, 0
  %v1118 = vsel %vm255, %v1055, 0
  %v1121 = vsel %vm255, %v1056, 0
  %v1124 = vsel %vm255, %v1057, 0
  %v1127 = vsel %vm255, %v1058, 0
  %v1130 = vsel %vm255, %v1059, 0
  %v1133 = vsel %vm255, %v1060, 0
  %v1136 = vsel %vm255, %v1061, 0
  %v1139 = vsel %vm255, %v1062, 0
  %v1142 = vsel %vm255, %v1063, 0
  %v1145 = vsel %vm255, %v1064, 0
  %v1148 = vsel %vm255, %v1065, 0
  %v1151 = vsel %vm255, %v1066, 0
  %v1154 = vsel %vm255, %v1067, 0
  %v1157 = vsel %vm255, %v1068, 0
  %v1160 = vsel %vm255, %v1069, 0
  %v1163 = vsel %vm255, %v1070, 0
  %v1166 = vsel %vm255, %v1071, 0
  %1168 = vmatpush.msra.mxu0 0.0
  %1169 = vmatpush.msra.mxu0 0.0
  %1170 = vmatpush.msra.mxu0 0.0
  %1171 = vmatpush.msra.mxu0 0.0
  %1172 = vmatpush.msra.mxu0 0.0
  %1173 = vmatpush.msra.mxu0 0.0
  %1174 = vmatpush.msra.mxu0 0.0
  %1175 = vmatpush.msra.mxu0 0.0
  %1176 = vmatpush.msra.mxu0 0.0
  %1177 = vmatpush.msra.mxu0 0.0
  %1178 = vmatpush.msra.mxu0 0.0
  %1179 = vmatpush.msra.mxu0 0.0
  %1180 = vmatpush.msra.mxu0 0.0
  %1181 = vmatpush.msra.mxu0 0.0
  %1182 = vmatpush.msra.mxu0 %v177
  %1183 = vmatpush.msra.mxu0 %v176
  %1184 = vmatmul.f32.gmra.mxu0 %v1073
  %v1185 = vpop.f32.mrf.mxu0
  %v1186 = vadd.f32 0.0, %v1185
  %1187 = vmatmul.f32.gmra.mxu0 %v1076
  %v1188 = vpop.f32.mrf.mxu0
  %v1189 = vadd.f32 0.0, %v1188
  %1190 = vmatmul.f32.gmra.mxu0 %v1079
  %v1191 = vpop.f32.mrf.mxu0
  %v1192 = vadd.f32 0.0, %v1191
  %1193 = vmatmul.f32.gmra.mxu0 %v1082
  %v1194 = vpop.f32.mrf.mxu0
  %v1195 = vadd.f32 0.0, %v1194
  %1196 = vmatmul.f32.gmra.mxu0 %v1085
  %v1197 = vpop.f32.mrf.mxu0
  %v1198 = vadd.f32 0.0, %v1197
  %1199 = vmatmul.f32.gmra.mxu0 %v1088
  %v1200 = vpop.f32.mrf.mxu0
  %v1201 = vadd.f32 0.0, %v1200
  %1202 = vmatmul.f32.gmra.mxu0 %v1091
  %v1203 = vpop.f32.mrf.mxu0
  %v1204 = vadd.f32 0.0, %v1203
  %1205 = vmatmul.f32.gmra.mxu0 %v1094
  %v1206 = vpop.f32.mrf.mxu0
  %v1207 = vadd.f32 0.0, %v1206
  %1208 = vmatmul.f32.gmra.mxu0 %v1097
  %v1209 = vpop.f32.mrf.mxu0
  %v1210 = vadd.f32 0.0, %v1209
  %1211 = vmatmul.f32.gmra.mxu0 %v1100
  %v1212 = vpop.f32.mrf.mxu0
  %v1213 = vadd.f32 0.0, %v1212
  %1214 = vmatmul.f32.gmra.mxu0 %v1103
  %v1215 = vpop.f32.mrf.mxu0
  %v1216 = vadd.f32 0.0, %v1215
  %1217 = vmatmul.f32.gmra.mxu0 %v1106
  %v1218 = vpop.f32.mrf.mxu0
  %v1219 = vadd.f32 0.0, %v1218
  %1220 = vmatmul.f32.gmra.mxu0 %v1109
  %v1221 = vpop.f32.mrf.mxu0
  %v1222 = vadd.f32 0.0, %v1221
  %1223 = vmatmul.f32.gmra.mxu0 %v1112
  %v1224 = vpop.f32.mrf.mxu0
  %v1225 = vadd.f32 0.0, %v1224
  %1226 = vmatmul.f32.gmra.mxu0 %v1115
  %v1227 = vpop.f32.mrf.mxu0
  %v1228 = vadd.f32 0.0, %v1227
  %1229 = vmatmul.f32.gmra.mxu0 %v1118
  %v1230 = vpop.f32.mrf.mxu0
  %v1231 = vadd.f32 0.0, %v1230
  %1232 = vmatmul.f32.gmra.mxu0 %v1121
  %v1233 = vpop.f32.mrf.mxu0
  %v1234 = vadd.f32 0.0, %v1233
  %1235 = vmatmul.f32.gmra.mxu0 %v1124
  %v1236 = vpop.f32.mrf.mxu0
  %v1237 = vadd.f32 0.0, %v1236
  %1238 = vmatmul.f32.gmra.mxu0 %v1127
  %v1239 = vpop.f32.mrf.mxu0
  %v1240 = vadd.f32 0.0, %v1239
  %1241 = vmatmul.f32.gmra.mxu0 %v1130
  %v1242 = vpop.f32.mrf.mxu0
  %v1243 = vadd.f32 0.0, %v1242
  %1244 = vmatmul.f32.gmra.mxu0 %v1133
  %v1245 = vpop.f32.mrf.mxu0
  %v1246 = vadd.f32 0.0, %v1245
  %1247 = vmatmul.f32.gmra.mxu0 %v1136
  %v1248 = vpop.f32.mrf.mxu0
  %v1249 = vadd.f32 0.0, %v1248
  %1250 = vmatmul.f32.gmra.mxu0 %v1139
  %v1251 = vpop.f32.mrf.mxu0
  %v1252 = vadd.f32 0.0, %v1251
  %1253 = vmatmul.f32.gmra.mxu0 %v1142
  %v1254 = vpop.f32.mrf.mxu0
  %v1255 = vadd.f32 0.0, %v1254
  %1256 = vmatmul.f32.gmra.mxu0 %v1145
  %v1257 = vpop.f32.mrf.mxu0
  %v1258 = vadd.f32 0.0, %v1257
  %1259 = vmatmul.f32.gmra.mxu0 %v1148
  %v1260 = vpop.f32.mrf.mxu0
  %v1261 = vadd.f32 0.0, %v1260
  %1262 = vmatmul.f32.gmra.mxu0 %v1151
  %v1263 = vpop.f32.mrf.mxu0
  %v1264 = vadd.f32 0.0, %v1263
  %1265 = vmatmul.f32.gmra.mxu0 %v1154
  %v1266 = vpop.f32.mrf.mxu0
  %v1267 = vadd.f32 0.0, %v1266
  %1268 = vmatmul.f32.gmra.mxu0 %v1157
  %v1269 = vpop.f32.mrf.mxu0
  %v1270 = vadd.f32 0.0, %v1269
  %1271 = vmatmul.f32.gmra.mxu0 %v1160
  %v1272 = vpop.f32.mrf.mxu0
  %v1273 = vadd.f32 0.0, %v1272
  %1274 = vmatmul.f32.gmra.mxu0 %v1163
  %v1275 = vpop.f32.mrf.mxu0
  %v1276 = vadd.f32 0.0, %v1275
  %1277 = vmatmul.f32.gmra.mxu0 %v1166
  %v1278 = vpop.f32.mrf.mxu0
  %v1279 = vadd.f32 0.0, %v1278
  %1280 = vdwg.mxu0
  %v1281 = vld [vmem:[%s11] sm:$0xff]
  %v1282 = vld [vmem:[%s11 + $0x8] sm:$0xff]
  %v1283 = vld [vmem:[%s11 + $0x10] sm:$0xff]
  %v1284 = vld [vmem:[%s11 + $0x18] sm:$0xff]
  %v1285 = vmul.f32 %v945, %v1186
  %v1286 = vmul.f32 %v948, %v1189
  %v1287 = vmul.f32 %v951, %v1192
  %v1288 = vmul.f32 %v954, %v1195
  %v1289 = vmul.f32 %v957, %v1198
  %v1290 = vmul.f32 %v960, %v1201
  %v1291 = vmul.f32 %v963, %v1204
  %v1292 = vmul.f32 %v966, %v1207
  %v1293 = vmul.f32 %v969, %v1210
  %v1294 = vmul.f32 %v972, %v1213
  %v1295 = vmul.f32 %v975, %v1216
  %v1296 = vmul.f32 %v978, %v1219
  %v1297 = vmul.f32 %v981, %v1222
  %v1298 = vmul.f32 %v984, %v1225
  %v1299 = vmul.f32 %v987, %v1228
  %v1300 = vmul.f32 %v990, %v1231
  %v1301 = vmul.f32 %v993, %v1234
  %v1302 = vmul.f32 %v996, %v1237
  %v1303 = vmul.f32 %v999, %v1240
  %v1304 = vmul.f32 %v1002, %v1243
  %v1305 = vmul.f32 %v1005, %v1246
  %v1306 = vmul.f32 %v1008, %v1249
  %v1307 = vmul.f32 %v1011, %v1252
  %v1308 = vmul.f32 %v1014, %v1255
  %v1309 = vmul.f32 %v1017, %v1258
  %v1310 = vmul.f32 %v1020, %v1261
  %v1311 = vmul.f32 %v1023, %v1264
  %v1312 = vmul.f32 %v1026, %v1267
  %v1313 = vmul.f32 %v1029, %v1270
  %v1314 = vmul.f32 %v1032, %v1273
  %v1315 = vmul.f32 %v1035, %v1276
  %v1316 = vmul.f32 %v1038, %v1279
  %1317 = vmatpush.msra.mxu0 %v1300
  %1318 = vmatpush.msra.mxu0 %v1299
  %1319 = vmatpush.msra.mxu0 %v1298
  %1320 = vmatpush.msra.mxu0 %v1297
  %1321 = vmatpush.msra.mxu0 %v1296
  %1322 = vmatpush.msra.mxu0 %v1295
  %1323 = vmatpush.msra.mxu0 %v1294
  %1324 = vmatpush.msra.mxu0 %v1293
  %1325 = vmatpush.msra.mxu0 %v1292
  %1326 = vmatpush.msra.mxu0 %v1291
  %1327 = vmatpush.msra.mxu0 %v1290
  %1328 = vmatpush.msra.mxu0 %v1289
  %1329 = vmatpush.msra.mxu0 %v1288
  %1330 = vmatpush.msra.mxu0 %v1287
  %1331 = vmatpush.msra.mxu0 %v1286
  %1332 = vmatpush.msra.mxu0 %v1285
  %1333 = vmatmul.f32.gmra.mxu0 %v1281
  %v1334 = vpop.f32.mrf.mxu0
  %v1335 = vadd.f32 0.0, %v1334
  %1336 = vmatmul.f32.gmra.mxu0 %v1283
  %v1337 = vpop.f32.mrf.mxu0
  %v1338 = vadd.f32 0.0, %v1337
  %1339 = vdwg.mxu0
  %1340 = vmatpush.msra.mxu0 %v1316
  %1341 = vmatpush.msra.mxu0 %v1315
  %1342 = vmatpush.msra.mxu0 %v1314
  %1343 = vmatpush.msra.mxu0 %v1313
  %1344 = vmatpush.msra.mxu0 %v1312
  %1345 = vmatpush.msra.mxu0 %v1311
  %1346 = vmatpush.msra.mxu0 %v1310
  %1347 = vmatpush.msra.mxu0 %v1309
  %1348 = vmatpush.msra.mxu0 %v1308
  %1349 = vmatpush.msra.mxu0 %v1307
  %1350 = vmatpush.msra.mxu0 %v1306
  %1351 = vmatpush.msra.mxu0 %v1305
  %1352 = vmatpush.msra.mxu0 %v1304
  %1353 = vmatpush.msra.mxu0 %v1303
  %1354 = vmatpush.msra.mxu0 %v1302
  %1355 = vmatpush.msra.mxu0 %v1301
  %1356 = vmatmul.f32.gmra.mxu0 %v1282
  %v1357 = vpop.f32.mrf.mxu0
  %v1358 = vadd.f32 %v1335, %v1357
  %1359 = vmatmul.f32.gmra.mxu0 %v1284
  %v1360 = vpop.f32.mrf.mxu0
  %v1361 = vadd.f32 %v1338, %v1360
  %1362 = vdwg.mxu0
  %v1363 = vsel %vm59, %v1358, 0.0
  %1364 = vadd.xlane.f32.xlu0 %v1363
  %v1365 = vpop.xlane.xlu0 %1364
  %v1366 = vsel %vm59, %v1361, 0.0
  %1367 = vadd.xlane.f32.xlu0 %v1366
  %v1368 = vpop.xlane.xlu0 %1367
  %v1369 = vmul.f32 %v1365, 0.03125
  %v1370 = vmul.f32 %v1368, 0.03125
  %1371 = vst.msk [vmem:[%s13 + $0x10] sm:$0xff] %vm796, %v1369
  %1372 = vst.msk [vmem:[%s13 + $0x18] sm:$0xff] %vm796, %v1370
  // Predicated region
  $region50: #{_lambda_.11} parent=0 // pred_check
    _
  $region51: #{_lambda_.11} parent=0 // pred_check_branch
    %1374 = sbr.rel (0) target = $region53
  $region52: #{_lambda_.11} parent=0 // pred_region
    _
  $region53: #{_lambda_.11} parent=0 // pred_fallthru
    _
  // Predicated region
  $region54: #{_lambda_.11} parent=0 // pred_check
    _
  $region55: #{_lambda_.11} parent=0 // pred_check_branch
    %1376 = sbr.rel (0) target = $region57
  $region56: #{_lambda_.11} parent=0 // pred_region
    _
  $region57: #{_lambda_.11} parent=0 // pred_fallthru
    _
  // Predicated region
  $region58: #{_lambda_.11} parent=0 // pred_check
    _
  $region59: #{_lambda_.11} parent=0 // pred_check_branch
    %1378 = sbr.rel (0) target = $region61
  $region60: #{_lambda_.11} parent=0 // pred_region
    _
  $region61: #{_lambda_.11} parent=0 // pred_fallthru
    _
  // Predicated region
  $region62: #{_lambda_.11} parent=0 // pred_check
    _
  $region63: #{_lambda_.11} parent=0 // pred_check_branch
    %1380 = sbr.rel (0) target = $region65
  $region64: #{_lambda_.11} parent=0 // pred_region
    _
  $region65: #{_lambda_.11} parent=0 // pred_fallthru
    _

// kernel: _lambda_.12
$region0: #{_lambda_.12}
  #allocation0 [shape = 'u32[]', space=smem, size = 0x4, offset = 0x4, fixed_abs, tag = 'smem constant byte address 0x4 - core index']
  #allocation1 [shape = 'u32[72,128]{1,0:T(1,128)}', space=vmem, size = 0x9000, scoped, tag = 'internal scratch']
  %s0 = inlined_call_operand.vmem [shape: s32[2,2], index: 0, kind: input, shape index: {}]
  %s1 = inlined_call_operand.vmem [shape: f32[2,2], index: 1, kind: input, shape index: {}]
  %s2 = inlined_call_operand.vmem [shape: f32[32,32], index: 2, kind: input, shape index: {}]
  %s3 = inlined_call_operand.vmem [shape: f32[32,32], index: 3, kind: input, shape index: {}]
  %s4 = inlined_call_operand.vmem [shape: f32[32,32], index: 4, kind: input, shape index: {}]
  %s5 = inlined_call_operand.vmem [shape: f32[1,32], index: 5, kind: input, shape index: {}]
  %s6 = inlined_call_operand.vmem [shape: f32[16,16], index: 6, kind: input, shape index: {}]
  %s7 = inlined_call_operand.vmem [shape: f32[32,64], index: 7, kind: input, shape index: {}]
  %s8 = inlined_call_operand.vmem [shape: f32[64,32], index: 8, kind: input, shape index: {}]
  %s9 = inlined_call_operand.vmem [shape: f32[32,32], index: 9, kind: output, shape index: {}]
  %s10 = sld [smem:[#allocation0]]
  $region54: #{_lambda_.12} parent=0
    _
  %s12 = ssub.s32 1, %s10
  %s13 = scalar_select 0, %s12, %s10
  $region1: #{_lambda_.12} parent=0
    #allocation2 [shape = 'u8[1024]{0}', space=smem, size = 0x400, scoped, tag = 'input window, operand 0, single buffered']
    #allocation3 [shape = 's32[1]{0}', space=sflag, size = 0x4, scoped, tag = 'scoped memory for _lambda_.12']
    #allocation4 [shape = 'u8[1024]{0}', space=smem, size = 0x400, scoped, tag = 'input window, operand 1, single buffered']
    #allocation5 [shape = 's32[1]{0}', space=sflag, size = 0x4, scoped, tag = 'scoped memory for _lambda_.12']
    %14 = vsyncpa [#allocation3], 0
    %15 = vsyncpa [#allocation5], 0
    // Predicated region
    $region2: #{_lambda_.12} parent=1 // pred_check
      _
    $region3: #{_lambda_.12} parent=1 // pred_check_branch
      %17 = sbr.rel (0) target = $region5
    $region4: #{_lambda_.12} parent=1 // pred_region
      %19 = vsyncadd [#allocation3], 0
      %s21 = sshll.u32 %s0, 4
      %s22 = int_to_ptr.vmem [resolvable:$true] %s21
      %24 = dma.vmem_to_smem %s22, 32, [#allocation2], [#allocation3]
    $region5: #{_lambda_.12} parent=1 // pred_fallthru
      _
    // Predicated region
    $region6: #{_lambda_.12} parent=1 // pred_check
      _
    $region7: #{_lambda_.12} parent=1 // pred_check_branch
      %26 = sbr.rel (0) target = $region9
    $region8: #{_lambda_.12} parent=1 // pred_region
      %28 = vsyncadd [#allocation5], 0
      %s30 = sshll.u32 %s1, 4
      %s31 = int_to_ptr.vmem [resolvable:$true] %s30
      %33 = dma.vmem_to_smem %s31, 32, [#allocation4], [#allocation5]
    $region9: #{_lambda_.12} parent=1 // pred_fallthru
      _
    // Predicated region
    $region10: #{_lambda_.12} parent=1 // pred_check
      _
    $region11: #{_lambda_.12} parent=1 // pred_check_branch
      %35 = sbr.rel (0) target = $region13
    $region12: #{_lambda_.12} parent=1 // pred_region
      _
    $region13: #{_lambda_.12} parent=1 // pred_fallthru
      _
    // Predicated region
    $region14: #{_lambda_.12} parent=1 // pred_check
      _
    $region15: #{_lambda_.12} parent=1 // pred_check_branch
      %37 = sbr.rel (0) target = $region17
    $region16: #{_lambda_.12} parent=1 // pred_region
      _
    $region17: #{_lambda_.12} parent=1 // pred_fallthru
      _
    // Predicated region
    $region18: #{_lambda_.12} parent=1 // pred_check
      _
    $region19: #{_lambda_.12} parent=1 // pred_check_branch
      %39 = sbr.rel (0) target = $region21
    $region20: #{_lambda_.12} parent=1 // pred_region
      _
    $region21: #{_lambda_.12} parent=1 // pred_fallthru
      _
    // Predicated region
    $region22: #{_lambda_.12} parent=1 // pred_check
      _
    $region23: #{_lambda_.12} parent=1 // pred_check_branch
      %41 = sbr.rel (0) target = $region25
    $region24: #{_lambda_.12} parent=1 // pred_region
      _
    $region25: #{_lambda_.12} parent=1 // pred_fallthru
      _
    // Predicated region
    $region26: #{_lambda_.12} parent=1 // pred_check
      _
    $region27: #{_lambda_.12} parent=1 // pred_check_branch
      %43 = sbr.rel (0) target = $region29
    $region28: #{_lambda_.12} parent=1 // pred_region
      _
    $region29: #{_lambda_.12} parent=1 // pred_fallthru
      _
    // Predicated region
    $region30: #{_lambda_.12} parent=1 // pred_check
      _
    $region31: #{_lambda_.12} parent=1 // pred_check_branch
      %45 = sbr.rel (0) target = $region33
    $region32: #{_lambda_.12} parent=1 // pred_region
      _
    $region33: #{_lambda_.12} parent=1 // pred_fallthru
      _
    // Predicated region
    $region34: #{_lambda_.12} parent=1 // pred_check
      _
    $region35: #{_lambda_.12} parent=1 // pred_check_branch
      %47 = sbr.rel (0) target = $region37
    $region36: #{_lambda_.12} parent=1 // pred_region
      _
    $region37: #{_lambda_.12} parent=1 // pred_fallthru
      _
    // Predicated region
    $region38: #{_lambda_.12} parent=1 // pred_check
      _
    $region39: #{_lambda_.12} parent=1 // pred_check_branch
      %49 = sbr.rel (0) target = $region41
    $region40: #{_lambda_.12} parent=1 // pred_region
      %51 = dma.done [#allocation3], 32
    $region41: #{_lambda_.12} parent=1 // pred_fallthru
      _
    // Predicated region
    $region42: #{_lambda_.12} parent=1 // pred_check
      _
    $region43: #{_lambda_.12} parent=1 // pred_check_branch
      %53 = sbr.rel (0) target = $region45
    $region44: #{_lambda_.12} parent=1 // pred_region
      %55 = dma.done [#allocation5], 32
    $region45: #{_lambda_.12} parent=1 // pred_fallthru
      _
    %56 = sfence
    %v57 = vlaneseq
    %v58 = vshrl.u32 %v57, 7
    %v59 = vadd.s32 %v58, 8
    %v60 = vlaneseq
    %v61 = vand.u32 %v60, 127
    %v62 = vsub.s32 %v61, %v58
    %v63 = vsub.s32 %v61, %v59
    %v64 = vld [vmem:[%s2] sm:$0xff]
    %v65 = vld [vmem:[%s2 + $0x8] sm:$0xff]
    %v66 = vld [vmem:[%s2 + $0x10] sm:$0xff]
    %v67 = vld [vmem:[%s2 + $0x18] sm:$0xff]
    %v68 = vld [vmem:[%s3] sm:$0xff]
    %v69 = vld [vmem:[%s3 + $0x8] sm:$0xff]
    %v70 = vld [vmem:[%s3 + $0x10] sm:$0xff]
    %v71 = vld [vmem:[%s3 + $0x18] sm:$0xff]
    %v72 = vld [vmem:[%s6] sm:$0xff]
    %v73 = vld [vmem:[%s6 + $0x8] sm:$0xff]
    %s74 = sld [smem:[#allocation2]]
    %s75 = sld [smem:[#allocation4]]
    %v76 = vstv %s74
    %vm77 = vcmp.eq.s32.totalorder %v62, %v76
    %vm78 = vcmp.eq.s32.totalorder %v63, %v76
    %s79 = ssub.s32 %s74, 16
    %v80 = vstv %s79
    %vm81 = vcmp.eq.s32.totalorder %v62, %v80
    %vm82 = vcmp.eq.s32.totalorder %v63, %v80
    %vm83 = vmor %vm77, %vm81
    %vm84 = vmor %vm78, %vm82
    %v85 = vstv %s75
    %v86 = vsel %vm83, %v85, 0.0
    %v87 = vsel %vm84, %v85, 0.0
    %v88 = vadd.f32 %v86, 0.0
    %v89 = vadd.f32 %v87, 0.0
    %s90 = sld [smem:[#allocation2 + $0x1]]
    %s91 = sld [smem:[#allocation4 + $0x1]]
    %v92 = vstv %s90
    %vm93 = vcmp.eq.s32.totalorder %v62, %v92
    %vm94 = vcmp.eq.s32.totalorder %v63, %v92
    %s95 = ssub.s32 %s90, 16
    %v96 = vstv %s95
    %vm97 = vcmp.eq.s32.totalorder %v62, %v96
    %vm98 = vcmp.eq.s32.totalorder %v63, %v96
    %vm99 = vmor %vm93, %vm97
    %vm100 = vmor %vm94, %vm98
    %v101 = vstv %s91
    %v102 = vsel %vm99, %v101, 0.0
    %v103 = vsel %vm100, %v101, 0.0
    %v104 = vadd.f32 %v88, %v102
    %v105 = vadd.f32 %v89, %v103
    %vm106 = vcmask 130048
    %v108 = vsel %vm106, %v104, 0
    %v111 = vsel %vm106, %v105, 0
    %113 = vmatpush.msra.mxu0 0.0
    %114 = vmatpush.msra.mxu0 0.0
    %115 = vmatpush.msra.mxu0 0.0
    %116 = vmatpush.msra.mxu0 0.0
    %117 = vmatpush.msra.mxu0 0.0
    %118 = vmatpush.msra.mxu0 0.0
    %119 = vmatpush.msra.mxu0 0.0
    %120 = vmatpush.msra.mxu0 0.0
    %121 = vmatpush.msra.mxu0 0.0
    %122 = vmatpush.msra.mxu0 0.0
    %123 = vmatpush.msra.mxu0 0.0
    %124 = vmatpush.msra.mxu0 0.0
    %125 = vmatpush.msra.mxu0 0.0
    %126 = vmatpush.msra.mxu0 0.0
    %127 = vmatpush.msra.mxu0 %v65
    %128 = vmatpush.msra.mxu0 %v64
    %129 = vmatmul.f32.gmra.mxu0 %v108
    %v130 = vpop.f32.mrf.mxu0
    %v131 = vadd.f32 0.0, %v130
    %132 = vmatmul.f32.gmra.mxu0 %v111
    %v133 = vpop.f32.mrf.mxu0
    %v134 = vadd.f32 0.0, %v133
    %135 = vdwg.mxu0
    %v136 = vld [vmem:[%s4] sm:$0xff]
    %v137 = vld [vmem:[%s4 + $0x8] sm:$0xff]
    %v138 = vld [vmem:[%s4 + $0x10] sm:$0xff]
    %v139 = vld [vmem:[%s4 + $0x18] sm:$0xff]
    %v140 = vld [vmem:[%s5] sm:$0x1]
    %v142 = vperm.slane %v140, 0
    %vm144 = vcmask 261120
    %v146 = vsel %vm144, %v131, 0
    %v149 = vsel %vm144, %v134, 0
    %151 = vmatpush.msra.mxu0 0.0
    %152 = vmatpush.msra.mxu0 0.0
    %153 = vmatpush.msra.mxu0 0.0
    %154 = vmatpush.msra.mxu0 0.0
    %155 = vmatpush.msra.mxu0 0.0
    %156 = vmatpush.msra.mxu0 0.0
    %157 = vmatpush.msra.mxu0 0.0
    %158 = vmatpush.msra.mxu0 0.0
    %159 = vmatpush.msra.mxu0 0.0
    %160 = vmatpush.msra.mxu0 0.0
    %161 = vmatpush.msra.mxu0 0.0
    %162 = vmatpush.msra.mxu0 0.0
    %163 = vmatpush.msra.mxu0 %v139
    %164 = vmatpush.msra.mxu0 %v138
    %165 = vmatpush.msra.mxu0 %v137
    %166 = vmatpush.msra.mxu0 %v136
    %167 = vmatmul.f32.gmra.mxu0 %v146
    %v168 = vpop.f32.mrf.mxu0
    %v169 = vadd.f32 %v142, %v168
    %170 = vmatmul.f32.gmra.mxu0 %v149
    %v171 = vpop.f32.mrf.mxu0
    %v172 = vadd.f32 %v142, %v171
    %173 = vdwg.mxu0
    %v174 = vadd.f32 %v68, %v169
    %v175 = vadd.f32 %v69, %v172
    %v177 = vsel %vm106, %v72, 0
    %v180 = vsel %vm106, %v73, 0
    %182 = vmatpush.msra.mxu0 0.0
    %183 = vmatpush.msra.mxu0 0.0
    %184 = vmatpush.msra.mxu0 0.0
    %185 = vmatpush.msra.mxu0 0.0
    %186 = vmatpush.msra.mxu0 0.0
    %187 = vmatpush.msra.mxu0 0.0
    %188 = vmatpush.msra.mxu0 0.0
    %189 = vmatpush.msra.mxu0 0.0
    %190 = vmatpush.msra.mxu0 0.0
    %191 = vmatpush.msra.mxu0 0.0
    %192 = vmatpush.msra.mxu0 0.0
    %193 = vmatpush.msra.mxu0 0.0
    %194 = vmatpush.msra.mxu0 0.0
    %195 = vmatpush.msra.mxu0 0.0
    %196 = vmatpush.msra.mxu0 %v175
    %197 = vmatpush.msra.mxu0 %v174
    %198 = vmatmul.f32.gmra.mxu0 %v177
    %v199 = vpop.f32.mrf.mxu0
    %v200 = vadd.f32 0.0, %v199
    %201 = vmatmul.f32.gmra.mxu0 %v180
    %v202 = vpop.f32.mrf.mxu0
    %v203 = vadd.f32 0.0, %v202
    %204 = vdwg.mxu0
    %v205 = vsub.f32 %v174, %v200
    %v206 = vsub.f32 %v175, %v203
    %v207 = vld [vmem:[%s7] sm:$0xff]
    %v208 = vld [vmem:[%s7 + $0x8] sm:$0xff]
    %v209 = vld [vmem:[%s7 + $0x10] sm:$0xff]
    %v210 = vld [vmem:[%s7 + $0x18] sm:$0xff]
    %v212 = vsel %vm144, %v205, 0
    %v215 = vsel %vm144, %v206, 0
    %217 = vmatpush.msra.mxu0 0.0
    %218 = vmatpush.msra.mxu0 0.0
    %219 = vmatpush.msra.mxu0 0.0
    %220 = vmatpush.msra.mxu0 0.0
    %221 = vmatpush.msra.mxu0 0.0
    %222 = vmatpush.msra.mxu0 0.0
    %223 = vmatpush.msra.mxu0 0.0
    %224 = vmatpush.msra.mxu0 0.0
    %225 = vmatpush.msra.mxu0 0.0
    %226 = vmatpush.msra.mxu0 0.0
    %227 = vmatpush.msra.mxu0 0.0
    %228 = vmatpush.msra.mxu0 0.0
    %229 = vmatpush.msra.mxu0 %v210
    %230 = vmatpush.msra.mxu0 %v209
    %231 = vmatpush.msra.mxu0 %v208
    %232 = vmatpush.msra.mxu0 %v207
    %233 = vmatmul.f32.gmra.mxu0 %v212
    %v234 = vpop.f32.mrf.mxu0
    %v235 = vadd.f32 0.0, %v234
    %236 = vmatmul.f32.gmra.mxu0 %v215
    %v237 = vpop.f32.mrf.mxu0
    %v238 = vadd.f32 0.0, %v237
    %239 = vdwg.mxu0
    %v240 = vmul.f32 %v235, 0.5
    %v241 = vmul.f32 %v238, 0.5
    %v242 = vmul.f32 %v235, 0.70710677
    %v243 = vmul.f32 %v238, 0.70710677
    %v244 = vmax.f32 %v242, -3.832507
    %v245 = vmax.f32 %v243, -3.832507
    %v246 = vmin.f32 %v244, 3.832507
    %v247 = vmin.f32 %v245, 3.832507
    %v248 = vmul.f32 %v246, %v246
    %v249 = vmul.f32 %v247, %v247
    %v250 = vmul.f32 %v248, 0.00022905065
    %v251 = vmul.f32 %v249, 0.00022905065
    %v252 = vadd.f32 %v250, 0.003408291
    %v253 = vadd.f32 %v251, 0.003408291
    %v254 = vmul.f32 %v252, %v248
    %v255 = vmul.f32 %v253, %v249
    %v256 = vadd.f32 %v254, 0.050955694
    %v257 = vadd.f32 %v255, 0.050955694
    %v258 = vmul.f32 %v256, %v248
    %v259 = vmul.f32 %v257, %v249
    %v260 = vadd.f32 %v258, 0.18520832
    %v261 = vadd.f32 %v259, 0.18520832
    %v262 = vmul.f32 %v260, %v248
    %v263 = vmul.f32 %v261, %v249
    %v264 = vadd.f32 %v262, 1.1283791
    %v265 = vadd.f32 %v263, 1.1283791
    %v266 = vmul.f32 %v248, -1.1791603e-07
    %v267 = vmul.f32 %v249, -1.1791603e-07
    %v268 = vadd.f32 %v266, 2.3547966e-05
    %v269 = vadd.f32 %v267, 2.3547966e-05
    %v270 = vmul.f32 %v268, %v248
    %v271 = vmul.f32 %v269, %v249
    %v272 = vadd.f32 %v270, 0.0010179626
    %v273 = vadd.f32 %v271, 0.0010179626
    %v274 = vmul.f32 %v272, %v248
    %v275 = vmul.f32 %v273, %v249
    %v276 = vadd.f32 %v274, 0.01407047
    %v277 = vadd.f32 %v275, 0.01407047
    %v278 = vmul.f32 %v276, %v248
    %v279 = vmul.f32 %v277, %v249
    %v280 = vadd.f32 %v278, 0.11098505
    %v281 = vadd.f32 %v279, 0.11098505
    %v282 = vmul.f32 %v280, %v248
    %v283 = vmul.f32 %v281, %v249
    %v284 = vadd.f32 %v282, 0.49746925
    %v285 = vadd.f32 %v283, 0.49746925
    %v286 = vmul.f32 %v284, %v248
    %v287 = vmul.f32 %v285, %v249
    %v288 = vadd.f32 %v286, 1.0
    %v289 = vadd.f32 %v287, 1.0
    %v290 = vmul.f32 %v246, %v264
    %v291 = vmul.f32 %v247, %v265
    %v292 = vrcp.pop %v288
    %v293 = vmul.f32 %v288, %v292
    %v294 = vsub.f32 1.0, %v293
    %v295 = vmul.f32 %v292, %v294
    %v296 = vadd.f32 %v292, %v295
    %vm297 = vweird.f32 %v288
    %vm298 = vweird.f32 %v292
    %vm299 = vmor %vm297, %vm298
    %v300 = vsel %vm299, %v292, %v296
    %v301 = vand.u32 2147483647, %v288
    %vm302 = vcmp.eq.f32.partialorder %v301, 8.507059e+37
    %v303 = vand.u32 %v288, 2147483648
    %v304 = vor.u32 1.1754944e-38, %v303
    %v305 = vsel %vm302, %v304, %v300
    %v306 = vmul.f32 %v290, %v305
    %v307 = vrcp.pop %v289
    %v308 = vmul.f32 %v289, %v307
    %v309 = vsub.f32 1.0, %v308
    %v310 = vmul.f32 %v307, %v309
    %v311 = vadd.f32 %v307, %v310
    %vm312 = vweird.f32 %v289
    %vm313 = vweird.f32 %v307
    %vm314 = vmor %vm312, %vm313
    %v315 = vsel %vm314, %v307, %v311
    %v316 = vand.u32 2147483647, %v289
    %vm317 = vcmp.eq.f32.partialorder %v316, 8.507059e+37
    %v318 = vand.u32 %v289, 2147483648
    %v319 = vor.u32 1.1754944e-38, %v318
    %v320 = vsel %vm317, %v319, %v315
    %v321 = vmul.f32 %v291, %v320
    %v322 = vadd.f32 %v306, 1.0
    %v323 = vadd.f32 %v321, 1.0
    %v324 = vmul.f32 %v240, %v322
    %v325 = vmul.f32 %v241, %v323
    %v326 = vld [vmem:[%s8] sm:$0xff]
    %v327 = vld [vmem:[%s8 + $0x8] sm:$0xff]
    %v328 = vld [vmem:[%s8 + $0x10] sm:$0xff]
    %v329 = vld [vmem:[%s8 + $0x18] sm:$0xff]
    %v330 = vld [vmem:[%s8 + $0x20] sm:$0xff]
    %v331 = vld [vmem:[%s8 + $0x28] sm:$0xff]
    %v332 = vld [vmem:[%s8 + $0x30] sm:$0xff]
    %v333 = vld [vmem:[%s8 + $0x38] sm:$0xff]
    %vm334 = vcmask 523264
    %v336 = vsel %vm334, %v324, 0
    %v339 = vsel %vm334, %v325, 0
    %341 = vmatpush.msra.mxu0 0.0
    %342 = vmatpush.msra.mxu0 0.0
    %343 = vmatpush.msra.mxu0 0.0
    %344 = vmatpush.msra.mxu0 0.0
    %345 = vmatpush.msra.mxu0 0.0
    %346 = vmatpush.msra.mxu0 0.0
    %347 = vmatpush.msra.mxu0 0.0
    %348 = vmatpush.msra.mxu0 0.0
    %349 = vmatpush.msra.mxu0 %v333
    %350 = vmatpush.msra.mxu0 %v332
    %351 = vmatpush.msra.mxu0 %v331
    %352 = vmatpush.msra.mxu0 %v330
    %353 = vmatpush.msra.mxu0 %v329
    %354 = vmatpush.msra.mxu0 %v328
    %355 = vmatpush.msra.mxu0 %v327
    %356 = vmatpush.msra.mxu0 %v326
    %357 = vmatmul.f32.gmra.mxu0 %v336
    %v358 = vpop.f32.mrf.mxu0
    %v359 = vadd.f32 0.0, %v358
    %360 = vmatmul.f32.gmra.mxu0 %v339
    %v361 = vpop.f32.mrf.mxu0
    %v362 = vadd.f32 0.0, %v361
    %363 = vdwg.mxu0
    %v364 = vadd.f32 %v205, %v359
    %v365 = vadd.f32 %v206, %v362
    %366 = vmatpush.msra.mxu0 0.0
    %367 = vmatpush.msra.mxu0 0.0
    %368 = vmatpush.msra.mxu0 0.0
    %369 = vmatpush.msra.mxu0 0.0
    %370 = vmatpush.msra.mxu0 0.0
    %371 = vmatpush.msra.mxu0 0.0
    %372 = vmatpush.msra.mxu0 0.0
    %373 = vmatpush.msra.mxu0 0.0
    %374 = vmatpush.msra.mxu0 0.0
    %375 = vmatpush.msra.mxu0 0.0
    %376 = vmatpush.msra.mxu0 0.0
    %377 = vmatpush.msra.mxu0 0.0
    %378 = vmatpush.msra.mxu0 0.0
    %379 = vmatpush.msra.mxu0 0.0
    %380 = vmatpush.msra.mxu0 %v365
    %381 = vmatpush.msra.mxu0 %v364
    %382 = vmatmul.f32.gmra.mxu0 %v177
    %v383 = vpop.f32.mrf.mxu0
    %v384 = vadd.f32 0.0, %v383
    %385 = vmatmul.f32.gmra.mxu0 %v180
    %v386 = vpop.f32.mrf.mxu0
    %v387 = vadd.f32 0.0, %v386
    %388 = vdwg.mxu0
    %v389 = vsub.f32 %v364, %v384
    %v390 = vsub.f32 %v365, %v387
    %391 = vst.msk [vmem:[%s9] sm:$0xff] %vm144, %v389
    %392 = vst.msk [vmem:[%s9 + $0x8] sm:$0xff] %vm144, %v390
    %s393 = sld [smem:[#allocation2 + $0x80]]
    %s394 = sld [smem:[#allocation4 + $0x80]]
    %v395 = vstv %s393
    %vm396 = vcmp.eq.s32.totalorder %v62, %v395
    %vm397 = vcmp.eq.s32.totalorder %v63, %v395
    %s398 = ssub.s32 %s393, 16
    %v399 = vstv %s398
    %vm400 = vcmp.eq.s32.totalorder %v62, %v399
    %vm401 = vcmp.eq.s32.totalorder %v63, %v399
    %vm402 = vmor %vm396, %vm400
    %vm403 = vmor %vm397, %vm401
    %v404 = vstv %s394
    %v405 = vsel %vm402, %v404, 0.0
    %v406 = vsel %vm403, %v404, 0.0
    %v407 = vadd.f32 %v405, 0.0
    %v408 = vadd.f32 %v406, 0.0
    %s409 = sld [smem:[#allocation2 + $0x81]]
    %s410 = sld [smem:[#allocation4 + $0x81]]
    %v411 = vstv %s409
    %vm412 = vcmp.eq.s32.totalorder %v62, %v411
    %vm413 = vcmp.eq.s32.totalorder %v63, %v411
    %s414 = ssub.s32 %s409, 16
    %v415 = vstv %s414
    %vm416 = vcmp.eq.s32.totalorder %v62, %v415
    %vm417 = vcmp.eq.s32.totalorder %v63, %v415
    %vm418 = vmor %vm412, %vm416
    %vm419 = vmor %vm413, %vm417
    %v420 = vstv %s410
    %v421 = vsel %vm418, %v420, 0.0
    %v422 = vsel %vm419, %v420, 0.0
    %v423 = vadd.f32 %v407, %v421
    %v424 = vadd.f32 %v408, %v422
    %v426 = vsel %vm106, %v423, 0
    %v429 = vsel %vm106, %v424, 0
    %431 = vmatpush.msra.mxu0 0.0
    %432 = vmatpush.msra.mxu0 0.0
    %433 = vmatpush.msra.mxu0 0.0
    %434 = vmatpush.msra.mxu0 0.0
    %435 = vmatpush.msra.mxu0 0.0
    %436 = vmatpush.msra.mxu0 0.0
    %437 = vmatpush.msra.mxu0 0.0
    %438 = vmatpush.msra.mxu0 0.0
    %439 = vmatpush.msra.mxu0 0.0
    %440 = vmatpush.msra.mxu0 0.0
    %441 = vmatpush.msra.mxu0 0.0
    %442 = vmatpush.msra.mxu0 0.0
    %443 = vmatpush.msra.mxu0 0.0
    %444 = vmatpush.msra.mxu0 0.0
    %445 = vmatpush.msra.mxu0 %v67
    %446 = vmatpush.msra.mxu0 %v66
    %447 = vmatmul.f32.gmra.mxu0 %v426
    %v448 = vpop.f32.mrf.mxu0
    %v449 = vadd.f32 0.0, %v448
    %450 = vmatmul.f32.gmra.mxu0 %v429
    %v451 = vpop.f32.mrf.mxu0
    %v452 = vadd.f32 0.0, %v451
    %453 = vdwg.mxu0
    %v454 = vld [vmem:[%s4] sm:$0xff]
    %v455 = vld [vmem:[%s4 + $0x8] sm:$0xff]
    %v456 = vld [vmem:[%s4 + $0x10] sm:$0xff]
    %v457 = vld [vmem:[%s4 + $0x18] sm:$0xff]
    %v458 = vld [vmem:[%s5] sm:$0x1]
    %v460 = vperm.slane %v458, 0
    %v463 = vsel %vm144, %v449, 0
    %v466 = vsel %vm144, %v452, 0
    %468 = vmatpush.msra.mxu0 0.0
    %469 = vmatpush.msra.mxu0 0.0
    %470 = vmatpush.msra.mxu0 0.0
    %471 = vmatpush.msra.mxu0 0.0
    %472 = vmatpush.msra.mxu0 0.0
    %473 = vmatpush.msra.mxu0 0.0
    %474 = vmatpush.msra.mxu0 0.0
    %475 = vmatpush.msra.mxu0 0.0
    %476 = vmatpush.msra.mxu0 0.0
    %477 = vmatpush.msra.mxu0 0.0
    %478 = vmatpush.msra.mxu0 0.0
    %479 = vmatpush.msra.mxu0 0.0
    %480 = vmatpush.msra.mxu0 %v457
    %481 = vmatpush.msra.mxu0 %v456
    %482 = vmatpush.msra.mxu0 %v455
    %483 = vmatpush.msra.mxu0 %v454
    %484 = vmatmul.f32.gmra.mxu0 %v463
    %v485 = vpop.f32.mrf.mxu0
    %v486 = vadd.f32 %v460, %v485
    %487 = vmatmul.f32.gmra.mxu0 %v466
    %v488 = vpop.f32.mrf.mxu0
    %v489 = vadd.f32 %v460, %v488
    %490 = vdwg.mxu0
    %v491 = vadd.f32 %v70, %v486
    %v492 = vadd.f32 %v71, %v489
    %493 = vmatpush.msra.mxu0 0.0
    %494 = vmatpush.msra.mxu0 0.0
    %495 = vmatpush.msra.mxu0 0.0
    %496 = vmatpush.msra.mxu0 0.0
    %497 = vmatpush.msra.mxu0 0.0
    %498 = vmatpush.msra.mxu0 0.0
    %499 = vmatpush.msra.mxu0 0.0
    %500 = vmatpush.msra.mxu0 0.0
    %501 = vmatpush.msra.mxu0 0.0
    %502 = vmatpush.msra.mxu0 0.0
    %503 = vmatpush.msra.mxu0 0.0
    %504 = vmatpush.msra.mxu0 0.0
    %505 = vmatpush.msra.mxu0 0.0
    %506 = vmatpush.msra.mxu0 0.0
    %507 = vmatpush.msra.mxu0 %v492
    %508 = vmatpush.msra.mxu0 %v491
    %509 = vmatmul.f32.gmra.mxu0 %v177
    %v510 = vpop.f32.mrf.mxu0
    %v511 = vadd.f32 0.0, %v510
    %512 = vmatmul.f32.gmra.mxu0 %v180
    %v513 = vpop.f32.mrf.mxu0
    %v514 = vadd.f32 0.0, %v513
    %515 = vdwg.mxu0
    %v516 = vsub.f32 %v491, %v511
    %v517 = vsub.f32 %v492, %v514
    %v518 = vld [vmem:[%s7] sm:$0xff]
    %v519 = vld [vmem:[%s7 + $0x8] sm:$0xff]
    %v520 = vld [vmem:[%s7 + $0x10] sm:$0xff]
    %v521 = vld [vmem:[%s7 + $0x18] sm:$0xff]
    %v523 = vsel %vm144, %v516, 0
    %v526 = vsel %vm144, %v517, 0
    %528 = vmatpush.msra.mxu0 0.0
    %529 = vmatpush.msra.mxu0 0.0
    %530 = vmatpush.msra.mxu0 0.0
    %531 = vmatpush.msra.mxu0 0.0
    %532 = vmatpush.msra.mxu0 0.0
    %533 = vmatpush.msra.mxu0 0.0
    %534 = vmatpush.msra.mxu0 0.0
    %535 = vmatpush.msra.mxu0 0.0
    %536 = vmatpush.msra.mxu0 0.0
    %537 = vmatpush.msra.mxu0 0.0
    %538 = vmatpush.msra.mxu0 0.0
    %539 = vmatpush.msra.mxu0 0.0
    %540 = vmatpush.msra.mxu0 %v521
    %541 = vmatpush.msra.mxu0 %v520
    %542 = vmatpush.msra.mxu0 %v519
    %543 = vmatpush.msra.mxu0 %v518
    %544 = vmatmul.f32.gmra.mxu0 %v523
    %v545 = vpop.f32.mrf.mxu0
    %v546 = vadd.f32 0.0, %v545
    %547 = vmatmul.f32.gmra.mxu0 %v526
    %v548 = vpop.f32.mrf.mxu0
    %v549 = vadd.f32 0.0, %v548
    %550 = vdwg.mxu0
    %v551 = vmul.f32 %v546, 0.5
    %v552 = vmul.f32 %v549, 0.5
    %v553 = vmul.f32 %v546, 0.70710677
    %v554 = vmul.f32 %v549, 0.70710677
    %v555 = vmax.f32 %v553, -3.832507
    %v556 = vmax.f32 %v554, -3.832507
    %v557 = vmin.f32 %v555, 3.832507
    %v558 = vmin.f32 %v556, 3.832507
    %v559 = vmul.f32 %v557, %v557
    %v560 = vmul.f32 %v558, %v558
    %v561 = vmul.f32 %v559, 0.00022905065
    %v562 = vmul.f32 %v560, 0.00022905065
    %v563 = vadd.f32 %v561, 0.003408291
    %v564 = vadd.f32 %v562, 0.003408291
    %v565 = vmul.f32 %v563, %v559
    %v566 = vmul.f32 %v564, %v560
    %v567 = vadd.f32 %v565, 0.050955694
    %v568 = vadd.f32 %v566, 0.050955694
    %v569 = vmul.f32 %v567, %v559
    %v570 = vmul.f32 %v568, %v560
    %v571 = vadd.f32 %v569, 0.18520832
    %v572 = vadd.f32 %v570, 0.18520832
    %v573 = vmul.f32 %v571, %v559
    %v574 = vmul.f32 %v572, %v560
    %v575 = vadd.f32 %v573, 1.1283791
    %v576 = vadd.f32 %v574, 1.1283791
    %v577 = vmul.f32 %v559, -1.1791603e-07
    %v578 = vmul.f32 %v560, -1.1791603e-07
    %v579 = vadd.f32 %v577, 2.3547966e-05
    %v580 = vadd.f32 %v578, 2.3547966e-05
    %v581 = vmul.f32 %v579, %v559
    %v582 = vmul.f32 %v580, %v560
    %v583 = vadd.f32 %v581, 0.0010179626
    %v584 = vadd.f32 %v582, 0.0010179626
    %v585 = vmul.f32 %v583, %v559
    %v586 = vmul.f32 %v584, %v560
    %v587 = vadd.f32 %v585, 0.01407047
    %v588 = vadd.f32 %v586, 0.01407047
    %v589 = vmul.f32 %v587, %v559
    %v590 = vmul.f32 %v588, %v560
    %v591 = vadd.f32 %v589, 0.11098505
    %v592 = vadd.f32 %v590, 0.11098505
    %v593 = vmul.f32 %v591, %v559
    %v594 = vmul.f32 %v592, %v560
    %v595 = vadd.f32 %v593, 0.49746925
    %v596 = vadd.f32 %v594, 0.49746925
    %v597 = vmul.f32 %v595, %v559
    %v598 = vmul.f32 %v596, %v560
    %v599 = vadd.f32 %v597, 1.0
    %v600 = vadd.f32 %v598, 1.0
    %v601 = vmul.f32 %v557, %v575
    %v602 = vmul.f32 %v558, %v576
    %v603 = vrcp.pop %v599
    %v604 = vmul.f32 %v599, %v603
    %v605 = vsub.f32 1.0, %v604
    %v606 = vmul.f32 %v603, %v605
    %v607 = vadd.f32 %v603, %v606
    %vm608 = vweird.f32 %v599
    %vm609 = vweird.f32 %v603
    %vm610 = vmor %vm608, %vm609
    %v611 = vsel %vm610, %v603, %v607
    %v612 = vand.u32 2147483647, %v599
    %vm613 = vcmp.eq.f32.partialorder %v612, 8.507059e+37
    %v614 = vand.u32 %v599, 2147483648
    %v615 = vor.u32 1.1754944e-38, %v614
    %v616 = vsel %vm613, %v615, %v611
    %v617 = vmul.f32 %v601, %v616
    %v618 = vrcp.pop %v600
    %v619 = vmul.f32 %v600, %v618
    %v620 = vsub.f32 1.0, %v619
    %v621 = vmul.f32 %v618, %v620
    %v622 = vadd.f32 %v618, %v621
    %vm623 = vweird.f32 %v600
    %vm624 = vweird.f32 %v618
    %vm625 = vmor %vm623, %vm624
    %v626 = vsel %vm625, %v618, %v622
    %v627 = vand.u32 2147483647, %v600
    %vm628 = vcmp.eq.f32.partialorder %v627, 8.507059e+37
    %v629 = vand.u32 %v600, 2147483648
    %v630 = vor.u32 1.1754944e-38, %v629
    %v631 = vsel %vm628, %v630, %v626
    %v632 = vmul.f32 %v602, %v631
    %v633 = vadd.f32 %v617, 1.0
    %v634 = vadd.f32 %v632, 1.0
    %v635 = vmul.f32 %v551, %v633
    %v636 = vmul.f32 %v552, %v634
    %v637 = vld [vmem:[%s8] sm:$0xff]
    %v638 = vld [vmem:[%s8 + $0x8] sm:$0xff]
    %v639 = vld [vmem:[%s8 + $0x10] sm:$0xff]
    %v640 = vld [vmem:[%s8 + $0x18] sm:$0xff]
    %v641 = vld [vmem:[%s8 + $0x20] sm:$0xff]
    %v642 = vld [vmem:[%s8 + $0x28] sm:$0xff]
    %v643 = vld [vmem:[%s8 + $0x30] sm:$0xff]
    %v644 = vld [vmem:[%s8 + $0x38] sm:$0xff]
    %v646 = vsel %vm334, %v635, 0
    %v649 = vsel %vm334, %v636, 0
    %651 = vmatpush.msra.mxu0 0.0
    %652 = vmatpush.msra.mxu0 0.0
    %653 = vmatpush.msra.mxu0 0.0
    %654 = vmatpush.msra.mxu0 0.0
    %655 = vmatpush.msra.mxu0 0.0
    %656 = vmatpush.msra.mxu0 0.0
    %657 = vmatpush.msra.mxu0 0.0
    %658 = vmatpush.msra.mxu0 0.0
    %659 = vmatpush.msra.mxu0 %v644
    %660 = vmatpush.msra.mxu0 %v643
    %661 = vmatpush.msra.mxu0 %v642
    %662 = vmatpush.msra.mxu0 %v641
    %663 = vmatpush.msra.mxu0 %v640
    %664 = vmatpush.msra.mxu0 %v639
    %665 = vmatpush.msra.mxu0 %v638
    %666 = vmatpush.msra.mxu0 %v637
    %667 = vmatmul.f32.gmra.mxu0 %v646
    %v668 = vpop.f32.mrf.mxu0
    %v669 = vadd.f32 0.0, %v668
    %670 = vmatmul.f32.gmra.mxu0 %v649
    %v671 = vpop.f32.mrf.mxu0
    %v672 = vadd.f32 0.0, %v671
    %673 = vdwg.mxu0
    %v674 = vadd.f32 %v516, %v669
    %v675 = vadd.f32 %v517, %v672
    %676 = vmatpush.msra.mxu0 0.0
    %677 = vmatpush.msra.mxu0 0.0
    %678 = vmatpush.msra.mxu0 0.0
    %679 = vmatpush.msra.mxu0 0.0
    %680 = vmatpush.msra.mxu0 0.0
    %681 = vmatpush.msra.mxu0 0.0
    %682 = vmatpush.msra.mxu0 0.0
    %683 = vmatpush.msra.mxu0 0.0
    %684 = vmatpush.msra.mxu0 0.0
    %685 = vmatpush.msra.mxu0 0.0
    %686 = vmatpush.msra.mxu0 0.0
    %687 = vmatpush.msra.mxu0 0.0
    %688 = vmatpush.msra.mxu0 0.0
    %689 = vmatpush.msra.mxu0 0.0
    %690 = vmatpush.msra.mxu0 %v675
    %691 = vmatpush.msra.mxu0 %v674
    %692 = vmatmul.f32.gmra.mxu0 %v177
    %v693 = vpop.f32.mrf.mxu0
    %v694 = vadd.f32 0.0, %v693
    %695 = vmatmul.f32.gmra.mxu0 %v180
    %v696 = vpop.f32.mrf.mxu0
    %v697 = vadd.f32 0.0, %v696
    %698 = vdwg.mxu0
    %v699 = vsub.f32 %v674, %v694
    %v700 = vsub.f32 %v675, %v697
    %701 = vst.msk [vmem:[%s9 + $0x10] sm:$0xff] %vm144, %v699
    %702 = vst.msk [vmem:[%s9 + $0x18] sm:$0xff] %vm144, %v700
    // Predicated region
    $region46: #{_lambda_.12} parent=1 // pred_check
      _
    $region47: #{_lambda_.12} parent=1 // pred_check_branch
      %704 = sbr.rel (0) target = $region49
    $region48: #{_lambda_.12} parent=1 // pred_region
      _
    $region49: #{_lambda_.12} parent=1 // pred_fallthru
      _
    // Predicated region
    $region50: #{_lambda_.12} parent=1 // pred_check
      _
    $region51: #{_lambda_.12} parent=1 // pred_check_branch
      %706 = sbr.rel (0) target = $region53
    $region52: #{_lambda_.12} parent=1 // pred_region
      _
    $region53: #{_lambda_.12} parent=1 // pred_fallthru
      _
    %707 = vsyncpa [#allocation3], 1
    %708 = vsyncpa [#allocation5], 1

// kernel: _lambda_.14
$region0: #{_lambda_.14}
  #allocation0 [shape = 'u32[]', space=smem, size = 0x4, offset = 0x4, fixed_abs, tag = 'smem constant byte address 0x4 - core index']
  #allocation1 [shape = 'u32[72,128]{1,0:T(1,128)}', space=vmem, size = 0x9000, scoped, tag = 'internal scratch']
  %s0 = inlined_call_operand.vmem [shape: s32[2,2], index: 0, kind: input, shape index: {}]
  %s1 = inlined_call_operand.vmem [shape: f32[2,2], index: 1, kind: input, shape index: {}]
  %s2 = inlined_call_operand.vmem [shape: f32[32,32], index: 2, kind: input, shape index: {}]
  %s3 = inlined_call_operand.vmem [shape: f32[32,32], index: 3, kind: input, shape index: {}]
  %s4 = inlined_call_operand.vmem [shape: f32[32,32], index: 4, kind: input, shape index: {}]
  %s5 = inlined_call_operand.vmem [shape: f32[1,32], index: 5, kind: input, shape index: {}]
  %s6 = inlined_call_operand.vmem [shape: f32[16,16], index: 6, kind: input, shape index: {}]
  %s7 = inlined_call_operand.vmem [shape: f32[32,64], index: 7, kind: input, shape index: {}]
  %s8 = inlined_call_operand.vmem [shape: f32[64,32], index: 8, kind: input, shape index: {}]
  %s9 = inlined_call_operand.vmem [shape: f32[1,32], index: 9, kind: input, shape index: {}]
  %s10 = inlined_call_operand.vmem [shape: f32[1,32], index: 10, kind: input, shape index: {}]
  %s11 = inlined_call_operand.vmem [shape: f32[32,32], index: 11, kind: output, shape index: {}]
  %s12 = sld [smem:[#allocation0]]
  $region62: #{_lambda_.14} parent=0
    _
  %s14 = ssub.s32 1, %s12
  %s15 = scalar_select 0, %s14, %s12
  $region1: #{_lambda_.14} parent=0
    #allocation2 [shape = 'u8[1024]{0}', space=smem, size = 0x400, scoped, tag = 'input window, operand 0, single buffered']
    #allocation3 [shape = 's32[1]{0}', space=sflag, size = 0x4, scoped, tag = 'scoped memory for _lambda_.14']
    #allocation4 [shape = 'u8[1024]{0}', space=smem, size = 0x400, scoped, tag = 'input window, operand 1, single buffered']
    #allocation5 [shape = 's32[1]{0}', space=sflag, size = 0x4, scoped, tag = 'scoped memory for _lambda_.14']
    %16 = vsyncpa [#allocation3], 0
    %17 = vsyncpa [#allocation5], 0
    // Predicated region
    $region2: #{_lambda_.14} parent=1 // pred_check
      _
    $region3: #{_lambda_.14} parent=1 // pred_check_branch
      %19 = sbr.rel (0) target = $region5
    $region4: #{_lambda_.14} parent=1 // pred_region
      %21 = vsyncadd [#allocation3], 0
      %s23 = sshll.u32 %s0, 4
      %s24 = int_to_ptr.vmem [resolvable:$true] %s23
      %26 = dma.vmem_to_smem %s24, 32, [#allocation2], [#allocation3]
    $region5: #{_lambda_.14} parent=1 // pred_fallthru
      _
    // Predicated region
    $region6: #{_lambda_.14} parent=1 // pred_check
      _
    $region7: #{_lambda_.14} parent=1 // pred_check_branch
      %28 = sbr.rel (0) target = $region9
    $region8: #{_lambda_.14} parent=1 // pred_region
      %30 = vsyncadd [#allocation5], 0
      %s32 = sshll.u32 %s1, 4
      %s33 = int_to_ptr.vmem [resolvable:$true] %s32
      %35 = dma.vmem_to_smem %s33, 32, [#allocation4], [#allocation5]
    $region9: #{_lambda_.14} parent=1 // pred_fallthru
      _
    // Predicated region
    $region10: #{_lambda_.14} parent=1 // pred_check
      _
    $region11: #{_lambda_.14} parent=1 // pred_check_branch
      %37 = sbr.rel (0) target = $region13
    $region12: #{_lambda_.14} parent=1 // pred_region
      _
    $region13: #{_lambda_.14} parent=1 // pred_fallthru
      _
    // Predicated region
    $region14: #{_lambda_.14} parent=1 // pred_check
      _
    $region15: #{_lambda_.14} parent=1 // pred_check_branch
      %39 = sbr.rel (0) target = $region17
    $region16: #{_lambda_.14} parent=1 // pred_region
      _
    $region17: #{_lambda_.14} parent=1 // pred_fallthru
      _
    // Predicated region
    $region18: #{_lambda_.14} parent=1 // pred_check
      _
    $region19: #{_lambda_.14} parent=1 // pred_check_branch
      %41 = sbr.rel (0) target = $region21
    $region20: #{_lambda_.14} parent=1 // pred_region
      _
    $region21: #{_lambda_.14} parent=1 // pred_fallthru
      _
    // Predicated region
    $region22: #{_lambda_.14} parent=1 // pred_check
      _
    $region23: #{_lambda_.14} parent=1 // pred_check_branch
      %43 = sbr.rel (0) target = $region25
    $region24: #{_lambda_.14} parent=1 // pred_region
      _
    $region25: #{_lambda_.14} parent=1 // pred_fallthru
      _
    // Predicated region
    $region26: #{_lambda_.14} parent=1 // pred_check
      _
    $region27: #{_lambda_.14} parent=1 // pred_check_branch
      %45 = sbr.rel (0) target = $region29
    $region28: #{_lambda_.14} parent=1 // pred_region
      _
    $region29: #{_lambda_.14} parent=1 // pred_fallthru
      _
    // Predicated region
    $region30: #{_lambda_.14} parent=1 // pred_check
      _
    $region31: #{_lambda_.14} parent=1 // pred_check_branch
      %47 = sbr.rel (0) target = $region33
    $region32: #{_lambda_.14} parent=1 // pred_region
      _
    $region33: #{_lambda_.14} parent=1 // pred_fallthru
      _
    // Predicated region
    $region34: #{_lambda_.14} parent=1 // pred_check
      _
    $region35: #{_lambda_.14} parent=1 // pred_check_branch
      %49 = sbr.rel (0) target = $region37
    $region36: #{_lambda_.14} parent=1 // pred_region
      _
    $region37: #{_lambda_.14} parent=1 // pred_fallthru
      _
    // Predicated region
    $region38: #{_lambda_.14} parent=1 // pred_check
      _
    $region39: #{_lambda_.14} parent=1 // pred_check_branch
      %51 = sbr.rel (0) target = $region41
    $region40: #{_lambda_.14} parent=1 // pred_region
      _
    $region41: #{_lambda_.14} parent=1 // pred_fallthru
      _
    // Predicated region
    $region42: #{_lambda_.14} parent=1 // pred_check
      _
    $region43: #{_lambda_.14} parent=1 // pred_check_branch
      %53 = sbr.rel (0) target = $region45
    $region44: #{_lambda_.14} parent=1 // pred_region
      _
    $region45: #{_lambda_.14} parent=1 // pred_fallthru
      _
    // Predicated region
    $region46: #{_lambda_.14} parent=1 // pred_check
      _
    $region47: #{_lambda_.14} parent=1 // pred_check_branch
      %55 = sbr.rel (0) target = $region49
    $region48: #{_lambda_.14} parent=1 // pred_region
      %57 = dma.done [#allocation3], 32
    $region49: #{_lambda_.14} parent=1 // pred_fallthru
      _
    // Predicated region
    $region50: #{_lambda_.14} parent=1 // pred_check
      _
    $region51: #{_lambda_.14} parent=1 // pred_check_branch
      %59 = sbr.rel (0) target = $region53
    $region52: #{_lambda_.14} parent=1 // pred_region
      %61 = dma.done [#allocation5], 32
    $region53: #{_lambda_.14} parent=1 // pred_fallthru
      _
    %62 = sfence
    %v63 = vlaneseq
    %v64 = vshrl.u32 %v63, 7
    %v65 = vadd.s32 %v64, 8
    %v66 = vlaneseq
    %v67 = vand.u32 %v66, 127
    %v68 = vsub.s32 %v67, %v64
    %v69 = vsub.s32 %v67, %v65
    %v70 = vld [vmem:[%s2] sm:$0xff]
    %v71 = vld [vmem:[%s2 + $0x8] sm:$0xff]
    %v72 = vld [vmem:[%s2 + $0x10] sm:$0xff]
    %v73 = vld [vmem:[%s2 + $0x18] sm:$0xff]
    %v74 = vld [vmem:[%s3] sm:$0xff]
    %v75 = vld [vmem:[%s3 + $0x8] sm:$0xff]
    %v76 = vld [vmem:[%s3 + $0x10] sm:$0xff]
    %v77 = vld [vmem:[%s3 + $0x18] sm:$0xff]
    %v78 = vld [vmem:[%s6] sm:$0xff]
    %v79 = vld [vmem:[%s6 + $0x8] sm:$0xff]
    %s80 = sld [smem:[#allocation2]]
    %s81 = sld [smem:[#allocation4]]
    %v82 = vstv %s80
    %vm83 = vcmp.eq.s32.totalorder %v68, %v82
    %vm84 = vcmp.eq.s32.totalorder %v69, %v82
    %s85 = ssub.s32 %s80, 16
    %v86 = vstv %s85
    %vm87 = vcmp.eq.s32.totalorder %v68, %v86
    %vm88 = vcmp.eq.s32.totalorder %v69, %v86
    %vm89 = vmor %vm83, %vm87
    %vm90 = vmor %vm84, %vm88
    %v91 = vstv %s81
    %v92 = vsel %vm89, %v91, 0.0
    %v93 = vsel %vm90, %v91, 0.0
    %v94 = vadd.f32 %v92, 0.0
    %v95 = vadd.f32 %v93, 0.0
    %s96 = sld [smem:[#allocation2 + $0x1]]
    %s97 = sld [smem:[#allocation4 + $0x1]]
    %v98 = vstv %s96
    %vm99 = vcmp.eq.s32.totalorder %v68, %v98
    %vm100 = vcmp.eq.s32.totalorder %v69, %v98
    %s101 = ssub.s32 %s96, 16
    %v102 = vstv %s101
    %vm103 = vcmp.eq.s32.totalorder %v68, %v102
    %vm104 = vcmp.eq.s32.totalorder %v69, %v102
    %vm105 = vmor %vm99, %vm103
    %vm106 = vmor %vm100, %vm104
    %v107 = vstv %s97
    %v108 = vsel %vm105, %v107, 0.0
    %v109 = vsel %vm106, %v107, 0.0
    %v110 = vadd.f32 %v94, %v108
    %v111 = vadd.f32 %v95, %v109
    %vm112 = vcmask 130048
    %v114 = vsel %vm112, %v110, 0
    %v117 = vsel %vm112, %v111, 0
    %119 = vmatpush.msra.mxu0 0.0
    %120 = vmatpush.msra.mxu0 0.0
    %121 = vmatpush.msra.mxu0 0.0
    %122 = vmatpush.msra.mxu0 0.0
    %123 = vmatpush.msra.mxu0 0.0
    %124 = vmatpush.msra.mxu0 0.0
    %125 = vmatpush.msra.mxu0 0.0
    %126 = vmatpush.msra.mxu0 0.0
    %127 = vmatpush.msra.mxu0 0.0
    %128 = vmatpush.msra.mxu0 0.0
    %129 = vmatpush.msra.mxu0 0.0
    %130 = vmatpush.msra.mxu0 0.0
    %131 = vmatpush.msra.mxu0 0.0
    %132 = vmatpush.msra.mxu0 0.0
    %133 = vmatpush.msra.mxu0 %v71
    %134 = vmatpush.msra.mxu0 %v70
    %135 = vmatmul.f32.gmra.mxu0 %v114
    %v136 = vpop.f32.mrf.mxu0
    %v137 = vadd.f32 0.0, %v136
    %138 = vmatmul.f32.gmra.mxu0 %v117
    %v139 = vpop.f32.mrf.mxu0
    %v140 = vadd.f32 0.0, %v139
    %141 = vdwg.mxu0
    %v142 = vld [vmem:[%s4] sm:$0xff]
    %v143 = vld [vmem:[%s4 + $0x8] sm:$0xff]
    %v144 = vld [vmem:[%s4 + $0x10] sm:$0xff]
    %v145 = vld [vmem:[%s4 + $0x18] sm:$0xff]
    %v146 = vld [vmem:[%s5] sm:$0x1]
    %v148 = vperm.slane %v146, 0
    %vm150 = vcmask 261120
    %v152 = vsel %vm150, %v137, 0
    %v155 = vsel %vm150, %v140, 0
    %157 = vmatpush.msra.mxu0 0.0
    %158 = vmatpush.msra.mxu0 0.0
    %159 = vmatpush.msra.mxu0 0.0
    %160 = vmatpush.msra.mxu0 0.0
    %161 = vmatpush.msra.mxu0 0.0
    %162 = vmatpush.msra.mxu0 0.0
    %163 = vmatpush.msra.mxu0 0.0
    %164 = vmatpush.msra.mxu0 0.0
    %165 = vmatpush.msra.mxu0 0.0
    %166 = vmatpush.msra.mxu0 0.0
    %167 = vmatpush.msra.mxu0 0.0
    %168 = vmatpush.msra.mxu0 0.0
    %169 = vmatpush.msra.mxu0 %v145
    %170 = vmatpush.msra.mxu0 %v144
    %171 = vmatpush.msra.mxu0 %v143
    %172 = vmatpush.msra.mxu0 %v142
    %173 = vmatmul.f32.gmra.mxu0 %v152
    %v174 = vpop.f32.mrf.mxu0
    %v175 = vadd.f32 %v148, %v174
    %176 = vmatmul.f32.gmra.mxu0 %v155
    %v177 = vpop.f32.mrf.mxu0
    %v178 = vadd.f32 %v148, %v177
    %179 = vdwg.mxu0
    %v180 = vadd.f32 %v74, %v175
    %v181 = vadd.f32 %v75, %v178
    %v183 = vsel %vm112, %v78, 0
    %v186 = vsel %vm112, %v79, 0
    %188 = vmatpush.msra.mxu0 0.0
    %189 = vmatpush.msra.mxu0 0.0
    %190 = vmatpush.msra.mxu0 0.0
    %191 = vmatpush.msra.mxu0 0.0
    %192 = vmatpush.msra.mxu0 0.0
    %193 = vmatpush.msra.mxu0 0.0
    %194 = vmatpush.msra.mxu0 0.0
    %195 = vmatpush.msra.mxu0 0.0
    %196 = vmatpush.msra.mxu0 0.0
    %197 = vmatpush.msra.mxu0 0.0
    %198 = vmatpush.msra.mxu0 0.0
    %199 = vmatpush.msra.mxu0 0.0
    %200 = vmatpush.msra.mxu0 0.0
    %201 = vmatpush.msra.mxu0 0.0
    %202 = vmatpush.msra.mxu0 %v181
    %203 = vmatpush.msra.mxu0 %v180
    %204 = vmatmul.f32.gmra.mxu0 %v183
    %v205 = vpop.f32.mrf.mxu0
    %v206 = vadd.f32 0.0, %v205
    %207 = vmatmul.f32.gmra.mxu0 %v186
    %v208 = vpop.f32.mrf.mxu0
    %v209 = vadd.f32 0.0, %v208
    %210 = vdwg.mxu0
    %v211 = vsub.f32 %v180, %v206
    %v212 = vsub.f32 %v181, %v209
    %v213 = vld [vmem:[%s7] sm:$0xff]
    %v214 = vld [vmem:[%s7 + $0x8] sm:$0xff]
    %v215 = vld [vmem:[%s7 + $0x10] sm:$0xff]
    %v216 = vld [vmem:[%s7 + $0x18] sm:$0xff]
    %v218 = vsel %vm150, %v211, 0
    %v221 = vsel %vm150, %v212, 0
    %223 = vmatpush.msra.mxu0 0.0
    %224 = vmatpush.msra.mxu0 0.0
    %225 = vmatpush.msra.mxu0 0.0
    %226 = vmatpush.msra.mxu0 0.0
    %227 = vmatpush.msra.mxu0 0.0
    %228 = vmatpush.msra.mxu0 0.0
    %229 = vmatpush.msra.mxu0 0.0
    %230 = vmatpush.msra.mxu0 0.0
    %231 = vmatpush.msra.mxu0 0.0
    %232 = vmatpush.msra.mxu0 0.0
    %233 = vmatpush.msra.mxu0 0.0
    %234 = vmatpush.msra.mxu0 0.0
    %235 = vmatpush.msra.mxu0 %v216
    %236 = vmatpush.msra.mxu0 %v215
    %237 = vmatpush.msra.mxu0 %v214
    %238 = vmatpush.msra.mxu0 %v213
    %239 = vmatmul.f32.gmra.mxu0 %v218
    %v240 = vpop.f32.mrf.mxu0
    %v241 = vadd.f32 0.0, %v240
    %242 = vmatmul.f32.gmra.mxu0 %v221
    %v243 = vpop.f32.mrf.mxu0
    %v244 = vadd.f32 0.0, %v243
    %245 = vdwg.mxu0
    %v246 = vmul.f32 %v241, 0.5
    %v247 = vmul.f32 %v244, 0.5
    %v248 = vmul.f32 %v241, 0.70710677
    %v249 = vmul.f32 %v244, 0.70710677
    %v250 = vmax.f32 %v248, -3.832507
    %v251 = vmax.f32 %v249, -3.832507
    %v252 = vmin.f32 %v250, 3.832507
    %v253 = vmin.f32 %v251, 3.832507
    %v254 = vmul.f32 %v252, %v252
    %v255 = vmul.f32 %v253, %v253
    %v256 = vmul.f32 %v254, 0.00022905065
    %v257 = vmul.f32 %v255, 0.00022905065
    %v258 = vadd.f32 %v256, 0.003408291
    %v259 = vadd.f32 %v257, 0.003408291
    %v260 = vmul.f32 %v258, %v254
    %v261 = vmul.f32 %v259, %v255
    %v262 = vadd.f32 %v260, 0.050955694
    %v263 = vadd.f32 %v261, 0.050955694
    %v264 = vmul.f32 %v262, %v254
    %v265 = vmul.f32 %v263, %v255
    %v266 = vadd.f32 %v264, 0.18520832
    %v267 = vadd.f32 %v265, 0.18520832
    %v268 = vmul.f32 %v266, %v254
    %v269 = vmul.f32 %v267, %v255
    %v270 = vadd.f32 %v268, 1.1283791
    %v271 = vadd.f32 %v269, 1.1283791
    %v272 = vmul.f32 %v254, -1.1791603e-07
    %v273 = vmul.f32 %v255, -1.1791603e-07
    %v274 = vadd.f32 %v272, 2.3547966e-05
    %v275 = vadd.f32 %v273, 2.3547966e-05
    %v276 = vmul.f32 %v274, %v254
    %v277 = vmul.f32 %v275, %v255
    %v278 = vadd.f32 %v276, 0.0010179626
    %v279 = vadd.f32 %v277, 0.0010179626
    %v280 = vmul.f32 %v278, %v254
    %v281 = vmul.f32 %v279, %v255
    %v282 = vadd.f32 %v280, 0.01407047
    %v283 = vadd.f32 %v281, 0.01407047
    %v284 = vmul.f32 %v282, %v254
    %v285 = vmul.f32 %v283, %v255
    %v286 = vadd.f32 %v284, 0.11098505
    %v287 = vadd.f32 %v285, 0.11098505
    %v288 = vmul.f32 %v286, %v254
    %v289 = vmul.f32 %v287, %v255
    %v290 = vadd.f32 %v288, 0.49746925
    %v291 = vadd.f32 %v289, 0.49746925
    %v292 = vmul.f32 %v290, %v254
    %v293 = vmul.f32 %v291, %v255
    %v294 = vadd.f32 %v292, 1.0
    %v295 = vadd.f32 %v293, 1.0
    %v296 = vmul.f32 %v252, %v270
    %v297 = vmul.f32 %v253, %v271
    %v298 = vrcp.pop %v294
    %v299 = vmul.f32 %v294, %v298
    %v300 = vsub.f32 1.0, %v299
    %v301 = vmul.f32 %v298, %v300
    %v302 = vadd.f32 %v298, %v301
    %vm303 = vweird.f32 %v294
    %vm304 = vweird.f32 %v298
    %vm305 = vmor %vm303, %vm304
    %v306 = vsel %vm305, %v298, %v302
    %v307 = vand.u32 2147483647, %v294
    %vm308 = vcmp.eq.f32.partialorder %v307, 8.507059e+37
    %v309 = vand.u32 %v294, 2147483648
    %v310 = vor.u32 1.1754944e-38, %v309
    %v311 = vsel %vm308, %v310, %v306
    %v312 = vmul.f32 %v296, %v311
    %v313 = vrcp.pop %v295
    %v314 = vmul.f32 %v295, %v313
    %v315 = vsub.f32 1.0, %v314
    %v316 = vmul.f32 %v313, %v315
    %v317 = vadd.f32 %v313, %v316
    %vm318 = vweird.f32 %v295
    %vm319 = vweird.f32 %v313
    %vm320 = vmor %vm318, %vm319
    %v321 = vsel %vm320, %v313, %v317
    %v322 = vand.u32 2147483647, %v295
    %vm323 = vcmp.eq.f32.partialorder %v322, 8.507059e+37
    %v324 = vand.u32 %v295, 2147483648
    %v325 = vor.u32 1.1754944e-38, %v324
    %v326 = vsel %vm323, %v325, %v321
    %v327 = vmul.f32 %v297, %v326
    %v328 = vadd.f32 %v312, 1.0
    %v329 = vadd.f32 %v327, 1.0
    %v330 = vmul.f32 %v246, %v328
    %v331 = vmul.f32 %v247, %v329
    %v332 = vld [vmem:[%s8] sm:$0xff]
    %v333 = vld [vmem:[%s8 + $0x8] sm:$0xff]
    %v334 = vld [vmem:[%s8 + $0x10] sm:$0xff]
    %v335 = vld [vmem:[%s8 + $0x18] sm:$0xff]
    %v336 = vld [vmem:[%s8 + $0x20] sm:$0xff]
    %v337 = vld [vmem:[%s8 + $0x28] sm:$0xff]
    %v338 = vld [vmem:[%s8 + $0x30] sm:$0xff]
    %v339 = vld [vmem:[%s8 + $0x38] sm:$0xff]
    %vm340 = vcmask 523264
    %v342 = vsel %vm340, %v330, 0
    %v345 = vsel %vm340, %v331, 0
    %347 = vmatpush.msra.mxu0 0.0
    %348 = vmatpush.msra.mxu0 0.0
    %349 = vmatpush.msra.mxu0 0.0
    %350 = vmatpush.msra.mxu0 0.0
    %351 = vmatpush.msra.mxu0 0.0
    %352 = vmatpush.msra.mxu0 0.0
    %353 = vmatpush.msra.mxu0 0.0
    %354 = vmatpush.msra.mxu0 0.0
    %355 = vmatpush.msra.mxu0 %v339
    %356 = vmatpush.msra.mxu0 %v338
    %357 = vmatpush.msra.mxu0 %v337
    %358 = vmatpush.msra.mxu0 %v336
    %359 = vmatpush.msra.mxu0 %v335
    %360 = vmatpush.msra.mxu0 %v334
    %361 = vmatpush.msra.mxu0 %v333
    %362 = vmatpush.msra.mxu0 %v332
    %363 = vmatmul.f32.gmra.mxu0 %v342
    %v364 = vpop.f32.mrf.mxu0
    %v365 = vadd.f32 0.0, %v364
    %366 = vmatmul.f32.gmra.mxu0 %v345
    %v367 = vpop.f32.mrf.mxu0
    %v368 = vadd.f32 0.0, %v367
    %369 = vdwg.mxu0
    %v370 = vadd.f32 %v211, %v365
    %v371 = vadd.f32 %v212, %v368
    %372 = vmatpush.msra.mxu0 0.0
    %373 = vmatpush.msra.mxu0 0.0
    %374 = vmatpush.msra.mxu0 0.0
    %375 = vmatpush.msra.mxu0 0.0
    %376 = vmatpush.msra.mxu0 0.0
    %377 = vmatpush.msra.mxu0 0.0
    %378 = vmatpush.msra.mxu0 0.0
    %379 = vmatpush.msra.mxu0 0.0
    %380 = vmatpush.msra.mxu0 0.0
    %381 = vmatpush.msra.mxu0 0.0
    %382 = vmatpush.msra.mxu0 0.0
    %383 = vmatpush.msra.mxu0 0.0
    %384 = vmatpush.msra.mxu0 0.0
    %385 = vmatpush.msra.mxu0 0.0
    %386 = vmatpush.msra.mxu0 %v371
    %387 = vmatpush.msra.mxu0 %v370
    %388 = vmatmul.f32.gmra.mxu0 %v183
    %v389 = vpop.f32.mrf.mxu0
    %v390 = vadd.f32 0.0, %v389
    %391 = vmatmul.f32.gmra.mxu0 %v186
    %v392 = vpop.f32.mrf.mxu0
    %v393 = vadd.f32 0.0, %v392
    %394 = vdwg.mxu0
    %v395 = vsub.f32 %v370, %v390
    %v396 = vsub.f32 %v371, %v393
    %v397 = vsel %vm150, %v395, 0.0
    %398 = vadd.xlane.f32.xlu0 %v397
    %v399 = vpop.xlane.xlu0 %398
    %v400 = vsel %vm150, %v396, 0.0
    %401 = vadd.xlane.f32.xlu0 %v400
    %v402 = vpop.xlane.xlu0 %401
    %v403 = vrcp.pop 32.0
    %v404 = vmul.f32 32.0, %v403
    %v405 = vsub.f32 1.0, %v404
    %v406 = vmul.f32 %v403, %v405
    %v407 = vadd.f32 %v403, %v406
    %vm408 = vweird.f32 %v403
    %v409 = vsel %vm408, %v403, %v407
    %v410 = vmul.f32 %v399, %v409
    %v411 = vmul.f32 %v402, %v409
    %v412 = vsub.f32 %v395, %v410
    %v413 = vsub.f32 %v396, %v411
    %v414 = vmul.f32 %v412, %v412
    %v415 = vmul.f32 %v413, %v413
    %v416 = vsel %vm150, %v414, 0.0
    %417 = vadd.xlane.f32.xlu0 %v416
    %v418 = vpop.xlane.xlu0 %417
    %v419 = vsel %vm150, %v415, 0.0
    %420 = vadd.xlane.f32.xlu0 %v419
    %v421 = vpop.xlane.xlu0 %420
    %v422 = vmul.f32 %v418, %v409
    %v423 = vmul.f32 %v421, %v409
    %v424 = vadd.f32 %v422, 1e-05
    %v425 = vadd.f32 %v423, 1e-05
    %v426 = vrsqrt.pop %v424
    %v427 = vmul.f32 %v426, %v424
    %v428 = vmul.f32 %v427, %v426
    %v429 = vmul.f32 0.5, %v428
    %v430 = vsub.f32 1.5, %v429
    %v431 = vmul.f32 %v426, %v430
    %vm432 = vweird.f32 %v424
    %vm433 = vweird.f32 %v426
    %vm434 = vmor %vm432, %vm433
    %v435 = vsel %vm434, %v426, %v431
    %v436 = vrsqrt.pop %v425
    %v437 = vmul.f32 %v436, %v425
    %v438 = vmul.f32 %v437, %v436
    %v439 = vmul.f32 0.5, %v438
    %v440 = vsub.f32 1.5, %v439
    %v441 = vmul.f32 %v436, %v440
    %vm442 = vweird.f32 %v425
    %vm443 = vweird.f32 %v436
    %vm444 = vmor %vm442, %vm443
    %v445 = vsel %vm444, %v436, %v441
    %v446 = vmul.f32 %v412, %v435
    %v447 = vmul.f32 %v413, %v445
    %v448 = vld [vmem:[%s9] sm:$0x1]
    %v450 = vperm.slane %v448, 0
    %v452 = vmul.f32 %v446, %v450
    %v453 = vmul.f32 %v447, %v450
    %v454 = vld [vmem:[%s10] sm:$0x1]
    %v456 = vperm.slane %v454, 0
    %v458 = vadd.f32 %v452, %v456
    %v459 = vadd.f32 %v453, %v456
    %v460 = vsel %vm150, %v458, 0.0
    %v461 = vsel %vm150, %v459, 0.0
    %v462 = vadd.f32 %v460, %v461
    %v463 = vrot.slane %v462, 4
    %v464 = vadd.f32 %v462, %v463
    %v465 = vrot.slane %v464, 2
    %v466 = vadd.f32 %v464, %v465
    %v467 = vrot.slane %v466, 1
    %v468 = vadd.f32 %v466, %v467
    %v469 = vrcp.pop 16.0
    %v470 = vmul.f32 16.0, %v469
    %v471 = vsub.f32 1.0, %v470
    %v472 = vmul.f32 %v469, %v471
    %v473 = vadd.f32 %v469, %v472
    %vm474 = vweird.f32 %v469
    %v475 = vsel %vm474, %v469, %v473
    %v476 = vmul.f32 %v468, %v475
    %v477 = vsub.f32 %v458, %v476
    %v478 = vsub.f32 %v459, %v476
    %479 = vst.msk [vmem:[%s11] sm:$0xff] %vm150, %v477
    %480 = vst.msk [vmem:[%s11 + $0x8] sm:$0xff] %vm150, %v478
    %s481 = sld [smem:[#allocation2 + $0x80]]
    %s482 = sld [smem:[#allocation4 + $0x80]]
    %v483 = vstv %s481
    %vm484 = vcmp.eq.s32.totalorder %v68, %v483
    %vm485 = vcmp.eq.s32.totalorder %v69, %v483
    %s486 = ssub.s32 %s481, 16
    %v487 = vstv %s486
    %vm488 = vcmp.eq.s32.totalorder %v68, %v487
    %vm489 = vcmp.eq.s32.totalorder %v69, %v487
    %vm490 = vmor %vm484, %vm488
    %vm491 = vmor %vm485, %vm489
    %v492 = vstv %s482
    %v493 = vsel %vm490, %v492, 0.0
    %v494 = vsel %vm491, %v492, 0.0
    %v495 = vadd.f32 %v493, 0.0
    %v496 = vadd.f32 %v494, 0.0
    %s497 = sld [smem:[#allocation2 + $0x81]]
    %s498 = sld [smem:[#allocation4 + $0x81]]
    %v499 = vstv %s497
    %vm500 = vcmp.eq.s32.totalorder %v68, %v499
    %vm501 = vcmp.eq.s32.totalorder %v69, %v499
    %s502 = ssub.s32 %s497, 16
    %v503 = vstv %s502
    %vm504 = vcmp.eq.s32.totalorder %v68, %v503
    %vm505 = vcmp.eq.s32.totalorder %v69, %v503
    %vm506 = vmor %vm500, %vm504
    %vm507 = vmor %vm501, %vm505
    %v508 = vstv %s498
    %v509 = vsel %vm506, %v508, 0.0
    %v510 = vsel %vm507, %v508, 0.0
    %v511 = vadd.f32 %v495, %v509
    %v512 = vadd.f32 %v496, %v510
    %v514 = vsel %vm112, %v511, 0
    %v517 = vsel %vm112, %v512, 0
    %519 = vmatpush.msra.mxu0 0.0
    %520 = vmatpush.msra.mxu0 0.0
    %521 = vmatpush.msra.mxu0 0.0
    %522 = vmatpush.msra.mxu0 0.0
    %523 = vmatpush.msra.mxu0 0.0
    %524 = vmatpush.msra.mxu0 0.0
    %525 = vmatpush.msra.mxu0 0.0
    %526 = vmatpush.msra.mxu0 0.0
    %527 = vmatpush.msra.mxu0 0.0
    %528 = vmatpush.msra.mxu0 0.0
    %529 = vmatpush.msra.mxu0 0.0
    %530 = vmatpush.msra.mxu0 0.0
    %531 = vmatpush.msra.mxu0 0.0
    %532 = vmatpush.msra.mxu0 0.0
    %533 = vmatpush.msra.mxu0 %v73
    %534 = vmatpush.msra.mxu0 %v72
    %535 = vmatmul.f32.gmra.mxu0 %v514
    %v536 = vpop.f32.mrf.mxu0
    %v537 = vadd.f32 0.0, %v536
    %538 = vmatmul.f32.gmra.mxu0 %v517
    %v539 = vpop.f32.mrf.mxu0
    %v540 = vadd.f32 0.0, %v539
    %541 = vdwg.mxu0
    %v542 = vld [vmem:[%s4] sm:$0xff]
    %v543 = vld [vmem:[%s4 + $0x8] sm:$0xff]
    %v544 = vld [vmem:[%s4 + $0x10] sm:$0xff]
    %v545 = vld [vmem:[%s4 + $0x18] sm:$0xff]
    %v546 = vld [vmem:[%s5] sm:$0x1]
    %v548 = vperm.slane %v546, 0
    %v551 = vsel %vm150, %v537, 0
    %v554 = vsel %vm150, %v540, 0
    %556 = vmatpush.msra.mxu0 0.0
    %557 = vmatpush.msra.mxu0 0.0
    %558 = vmatpush.msra.mxu0 0.0
    %559 = vmatpush.msra.mxu0 0.0
    %560 = vmatpush.msra.mxu0 0.0
    %561 = vmatpush.msra.mxu0 0.0
    %562 = vmatpush.msra.mxu0 0.0
    %563 = vmatpush.msra.mxu0 0.0
    %564 = vmatpush.msra.mxu0 0.0
    %565 = vmatpush.msra.mxu0 0.0
    %566 = vmatpush.msra.mxu0 0.0
    %567 = vmatpush.msra.mxu0 0.0
    %568 = vmatpush.msra.mxu0 %v545
    %569 = vmatpush.msra.mxu0 %v544
    %570 = vmatpush.msra.mxu0 %v543
    %571 = vmatpush.msra.mxu0 %v542
    %572 = vmatmul.f32.gmra.mxu0 %v551
    %v573 = vpop.f32.mrf.mxu0
    %v574 = vadd.f32 %v548, %v573
    %575 = vmatmul.f32.gmra.mxu0 %v554
    %v576 = vpop.f32.mrf.mxu0
    %v577 = vadd.f32 %v548, %v576
    %578 = vdwg.mxu0
    %v579 = vadd.f32 %v76, %v574
    %v580 = vadd.f32 %v77, %v577
    %581 = vmatpush.msra.mxu0 0.0
    %582 = vmatpush.msra.mxu0 0.0
    %583 = vmatpush.msra.mxu0 0.0
    %584 = vmatpush.msra.mxu0 0.0
    %585 = vmatpush.msra.mxu0 0.0
    %586 = vmatpush.msra.mxu0 0.0
    %587 = vmatpush.msra.mxu0 0.0
    %588 = vmatpush.msra.mxu0 0.0
    %589 = vmatpush.msra.mxu0 0.0
    %590 = vmatpush.msra.mxu0 0.0
    %591 = vmatpush.msra.mxu0 0.0
    %592 = vmatpush.msra.mxu0 0.0
    %593 = vmatpush.msra.mxu0 0.0
    %594 = vmatpush.msra.mxu0 0.0
    %595 = vmatpush.msra.mxu0 %v580
    %596 = vmatpush.msra.mxu0 %v579
    %597 = vmatmul.f32.gmra.mxu0 %v183
    %v598 = vpop.f32.mrf.mxu0
    %v599 = vadd.f32 0.0, %v598
    %600 = vmatmul.f32.gmra.mxu0 %v186
    %v601 = vpop.f32.mrf.mxu0
    %v602 = vadd.f32 0.0, %v601
    %603 = vdwg.mxu0
    %v604 = vsub.f32 %v579, %v599
    %v605 = vsub.f32 %v580, %v602
    %v606 = vld [vmem:[%s7] sm:$0xff]
    %v607 = vld [vmem:[%s7 + $0x8] sm:$0xff]
    %v608 = vld [vmem:[%s7 + $0x10] sm:$0xff]
    %v609 = vld [vmem:[%s7 + $0x18] sm:$0xff]
    %v611 = vsel %vm150, %v604, 0
    %v614 = vsel %vm150, %v605, 0
    %616 = vmatpush.msra.mxu0 0.0
    %617 = vmatpush.msra.mxu0 0.0
    %618 = vmatpush.msra.mxu0 0.0
    %619 = vmatpush.msra.mxu0 0.0
    %620 = vmatpush.msra.mxu0 0.0
    %621 = vmatpush.msra.mxu0 0.0
    %622 = vmatpush.msra.mxu0 0.0
    %623 = vmatpush.msra.mxu0 0.0
    %624 = vmatpush.msra.mxu0 0.0
    %625 = vmatpush.msra.mxu0 0.0
    %626 = vmatpush.msra.mxu0 0.0
    %627 = vmatpush.msra.mxu0 0.0
    %628 = vmatpush.msra.mxu0 %v609
    %629 = vmatpush.msra.mxu0 %v608
    %630 = vmatpush.msra.mxu0 %v607
    %631 = vmatpush.msra.mxu0 %v606
    %632 = vmatmul.f32.gmra.mxu0 %v611
    %v633 = vpop.f32.mrf.mxu0
    %v634 = vadd.f32 0.0, %v633
    %635 = vmatmul.f32.gmra.mxu0 %v614
    %v636 = vpop.f32.mrf.mxu0
    %v637 = vadd.f32 0.0, %v636
    %638 = vdwg.mxu0
    %v639 = vmul.f32 %v634, 0.5
    %v640 = vmul.f32 %v637, 0.5
    %v641 = vmul.f32 %v634, 0.70710677
    %v642 = vmul.f32 %v637, 0.70710677
    %v643 = vmax.f32 %v641, -3.832507
    %v644 = vmax.f32 %v642, -3.832507
    %v645 = vmin.f32 %v643, 3.832507
    %v646 = vmin.f32 %v644, 3.832507
    %v647 = vmul.f32 %v645, %v645
    %v648 = vmul.f32 %v646, %v646
    %v649 = vmul.f32 %v647, 0.00022905065
    %v650 = vmul.f32 %v648, 0.00022905065
    %v651 = vadd.f32 %v649, 0.003408291
    %v652 = vadd.f32 %v650, 0.003408291
    %v653 = vmul.f32 %v651, %v647
    %v654 = vmul.f32 %v652, %v648
    %v655 = vadd.f32 %v653, 0.050955694
    %v656 = vadd.f32 %v654, 0.050955694
    %v657 = vmul.f32 %v655, %v647
    %v658 = vmul.f32 %v656, %v648
    %v659 = vadd.f32 %v657, 0.18520832
    %v660 = vadd.f32 %v658, 0.18520832
    %v661 = vmul.f32 %v659, %v647
    %v662 = vmul.f32 %v660, %v648
    %v663 = vadd.f32 %v661, 1.1283791
    %v664 = vadd.f32 %v662, 1.1283791
    %v665 = vmul.f32 %v647, -1.1791603e-07
    %v666 = vmul.f32 %v648, -1.1791603e-07
    %v667 = vadd.f32 %v665, 2.3547966e-05
    %v668 = vadd.f32 %v666, 2.3547966e-05
    %v669 = vmul.f32 %v667, %v647
    %v670 = vmul.f32 %v668, %v648
    %v671 = vadd.f32 %v669, 0.0010179626
    %v672 = vadd.f32 %v670, 0.0010179626
    %v673 = vmul.f32 %v671, %v647
    %v674 = vmul.f32 %v672, %v648
    %v675 = vadd.f32 %v673, 0.01407047
    %v676 = vadd.f32 %v674, 0.01407047
    %v677 = vmul.f32 %v675, %v647
    %v678 = vmul.f32 %v676, %v648
    %v679 = vadd.f32 %v677, 0.11098505
    %v680 = vadd.f32 %v678, 0.11098505
    %v681 = vmul.f32 %v679, %v647
    %v682 = vmul.f32 %v680, %v648
    %v683 = vadd.f32 %v681, 0.49746925
    %v684 = vadd.f32 %v682, 0.49746925
    %v685 = vmul.f32 %v683, %v647
    %v686 = vmul.f32 %v684, %v648
    %v687 = vadd.f32 %v685, 1.0
    %v688 = vadd.f32 %v686, 1.0
    %v689 = vmul.f32 %v645, %v663
    %v690 = vmul.f32 %v646, %v664
    %v691 = vrcp.pop %v687
    %v692 = vmul.f32 %v687, %v691
    %v693 = vsub.f32 1.0, %v692
    %v694 = vmul.f32 %v691, %v693
    %v695 = vadd.f32 %v691, %v694
    %vm696 = vweird.f32 %v687
    %vm697 = vweird.f32 %v691
    %vm698 = vmor %vm696, %vm697
    %v699 = vsel %vm698, %v691, %v695
    %v700 = vand.u32 2147483647, %v687
    %vm701 = vcmp.eq.f32.partialorder %v700, 8.507059e+37
    %v702 = vand.u32 %v687, 2147483648
    %v703 = vor.u32 1.1754944e-38, %v702
    %v704 = vsel %vm701, %v703, %v699
    %v705 = vmul.f32 %v689, %v704
    %v706 = vrcp.pop %v688
    %v707 = vmul.f32 %v688, %v706
    %v708 = vsub.f32 1.0, %v707
    %v709 = vmul.f32 %v706, %v708
    %v710 = vadd.f32 %v706, %v709
    %vm711 = vweird.f32 %v688
    %vm712 = vweird.f32 %v706
    %vm713 = vmor %vm711, %vm712
    %v714 = vsel %vm713, %v706, %v710
    %v715 = vand.u32 2147483647, %v688
    %vm716 = vcmp.eq.f32.partialorder %v715, 8.507059e+37
    %v717 = vand.u32 %v688, 2147483648
    %v718 = vor.u32 1.1754944e-38, %v717
    %v719 = vsel %vm716, %v718, %v714
    %v720 = vmul.f32 %v690, %v719
    %v721 = vadd.f32 %v705, 1.0
    %v722 = vadd.f32 %v720, 1.0
    %v723 = vmul.f32 %v639, %v721
    %v724 = vmul.f32 %v640, %v722
    %v725 = vld [vmem:[%s8] sm:$0xff]
    %v726 = vld [vmem:[%s8 + $0x8] sm:$0xff]
    %v727 = vld [vmem:[%s8 + $0x10] sm:$0xff]
    %v728 = vld [vmem:[%s8 + $0x18] sm:$0xff]
    %v729 = vld [vmem:[%s8 + $0x20] sm:$0xff]
    %v730 = vld [vmem:[%s8 + $0x28] sm:$0xff]
    %v731 = vld [vmem:[%s8 + $0x30] sm:$0xff]
    %v732 = vld [vmem:[%s8 + $0x38] sm:$0xff]
    %v734 = vsel %vm340, %v723, 0
    %v737 = vsel %vm340, %v724, 0
    %739 = vmatpush.msra.mxu0 0.0
    %740 = vmatpush.msra.mxu0 0.0
    %741 = vmatpush.msra.mxu0 0.0
    %742 = vmatpush.msra.mxu0 0.0
    %743 = vmatpush.msra.mxu0 0.0
    %744 = vmatpush.msra.mxu0 0.0
    %745 = vmatpush.msra.mxu0 0.0
    %746 = vmatpush.msra.mxu0 0.0
    %747 = vmatpush.msra.mxu0 %v732
    %748 = vmatpush.msra.mxu0 %v731
    %749 = vmatpush.msra.mxu0 %v730
    %750 = vmatpush.msra.mxu0 %v729
    %751 = vmatpush.msra.mxu0 %v728
    %752 = vmatpush.msra.mxu0 %v727
    %753 = vmatpush.msra.mxu0 %v726
    %754 = vmatpush.msra.mxu0 %v725
    %755 = vmatmul.f32.gmra.mxu0 %v734
    %v756 = vpop.f32.mrf.mxu0
    %v757 = vadd.f32 0.0, %v756
    %758 = vmatmul.f32.gmra.mxu0 %v737
    %v759 = vpop.f32.mrf.mxu0
    %v760 = vadd.f32 0.0, %v759
    %761 = vdwg.mxu0
    %v762 = vadd.f32 %v604, %v757
    %v763 = vadd.f32 %v605, %v760
    %764 = vmatpush.msra.mxu0 0.0
    %765 = vmatpush.msra.mxu0 0.0
    %766 = vmatpush.msra.mxu0 0.0
    %767 = vmatpush.msra.mxu0 0.0
    %768 = vmatpush.msra.mxu0 0.0
    %769 = vmatpush.msra.mxu0 0.0
    %770 = vmatpush.msra.mxu0 0.0
    %771 = vmatpush.msra.mxu0 0.0
    %772 = vmatpush.msra.mxu0 0.0
    %773 = vmatpush.msra.mxu0 0.0
    %774 = vmatpush.msra.mxu0 0.0
    %775 = vmatpush.msra.mxu0 0.0
    %776 = vmatpush.msra.mxu0 0.0
    %777 = vmatpush.msra.mxu0 0.0
    %778 = vmatpush.msra.mxu0 %v763
    %779 = vmatpush.msra.mxu0 %v762
    %780 = vmatmul.f32.gmra.mxu0 %v183
    %v781 = vpop.f32.mrf.mxu0
    %v782 = vadd.f32 0.0, %v781
    %783 = vmatmul.f32.gmra.mxu0 %v186
    %v784 = vpop.f32.mrf.mxu0
    %v785 = vadd.f32 0.0, %v784
    %786 = vdwg.mxu0
    %v787 = vsub.f32 %v762, %v782
    %v788 = vsub.f32 %v763, %v785
    %v789 = vsel %vm150, %v787, 0.0
    %790 = vadd.xlane.f32.xlu0 %v789
    %v791 = vpop.xlane.xlu0 %790
    %v792 = vsel %vm150, %v788, 0.0
    %793 = vadd.xlane.f32.xlu0 %v792
    %v794 = vpop.xlane.xlu0 %793
    %v795 = vmul.f32 %v791, %v409
    %v796 = vmul.f32 %v794, %v409
    %v797 = vsub.f32 %v787, %v795
    %v798 = vsub.f32 %v788, %v796
    %v799 = vmul.f32 %v797, %v797
    %v800 = vmul.f32 %v798, %v798
    %v801 = vsel %vm150, %v799, 0.0
    %802 = vadd.xlane.f32.xlu0 %v801
    %v803 = vpop.xlane.xlu0 %802
    %v804 = vsel %vm150, %v800, 0.0
    %805 = vadd.xlane.f32.xlu0 %v804
    %v806 = vpop.xlane.xlu0 %805
    %v807 = vmul.f32 %v803, %v409
    %v808 = vmul.f32 %v806, %v409
    %v809 = vadd.f32 %v807, 1e-05
    %v810 = vadd.f32 %v808, 1e-05
    %v811 = vrsqrt.pop %v809
    %v812 = vmul.f32 %v811, %v809
    %v813 = vmul.f32 %v812, %v811
    %v814 = vmul.f32 0.5, %v813
    %v815 = vsub.f32 1.5, %v814
    %v816 = vmul.f32 %v811, %v815
    %vm817 = vweird.f32 %v809
    %vm818 = vweird.f32 %v811
    %vm819 = vmor %vm817, %vm818
    %v820 = vsel %vm819, %v811, %v816
    %v821 = vrsqrt.pop %v810
    %v822 = vmul.f32 %v821, %v810
    %v823 = vmul.f32 %v822, %v821
    %v824 = vmul.f32 0.5, %v823
    %v825 = vsub.f32 1.5, %v824
    %v826 = vmul.f32 %v821, %v825
    %vm827 = vweird.f32 %v810
    %vm828 = vweird.f32 %v821
    %vm829 = vmor %vm827, %vm828
    %v830 = vsel %vm829, %v821, %v826
    %v831 = vmul.f32 %v797, %v820
    %v832 = vmul.f32 %v798, %v830
    %v833 = vld [vmem:[%s9] sm:$0x1]
    %v835 = vperm.slane %v833, 0
    %v837 = vmul.f32 %v831, %v835
    %v838 = vmul.f32 %v832, %v835
    %v839 = vld [vmem:[%s10] sm:$0x1]
    %v841 = vperm.slane %v839, 0
    %v843 = vadd.f32 %v837, %v841
    %v844 = vadd.f32 %v838, %v841
    %v845 = vsel %vm150, %v843, 0.0
    %v846 = vsel %vm150, %v844, 0.0
    %v847 = vadd.f32 %v845, %v846
    %v848 = vrot.slane %v847, 4
    %v849 = vadd.f32 %v847, %v848
    %v850 = vrot.slane %v849, 2
    %v851 = vadd.f32 %v849, %v850
    %v852 = vrot.slane %v851, 1
    %v853 = vadd.f32 %v851, %v852
    %v854 = vmul.f32 %v853, %v475
    %v855 = vsub.f32 %v843, %v854
    %v856 = vsub.f32 %v844, %v854
    %857 = vst.msk [vmem:[%s11 + $0x10] sm:$0xff] %vm150, %v855
    %858 = vst.msk [vmem:[%s11 + $0x18] sm:$0xff] %vm150, %v856
    // Predicated region
    $region54: #{_lambda_.14} parent=1 // pred_check
      _
    $region55: #{_lambda_.14} parent=1 // pred_check_branch
      %860 = sbr.rel (0) target = $region57
    $region56: #{_lambda_.14} parent=1 // pred_region
      _
    $region57: #{_lambda_.14} parent=1 // pred_fallthru
      _
    // Predicated region
    $region58: #{_lambda_.14} parent=1 // pred_check
      _
    $region59: #{_lambda_.14} parent=1 // pred_check_branch
      %862 = sbr.rel (0) target = $region61
    $region60: #{_lambda_.14} parent=1 // pred_region
      _
    $region61: #{_lambda_.14} parent=1 // pred_fallthru
      _
    %863 = vsyncpa [#allocation3], 1
    %864 = vsyncpa [#allocation5], 1

// kernel: _lambda_.17
$region0: #{_lambda_.17}
  #allocation0 [shape = 'u32[]', space=smem, size = 0x4, offset = 0x4, fixed_abs, tag = 'smem constant byte address 0x4 - core index']
  #allocation1 [shape = 'u32[72,128]{1,0:T(1,128)}', space=vmem, size = 0x9000, scoped, tag = 'internal scratch']
  %s0 = inlined_call_operand.vmem [shape: s32[2,2], index: 0, kind: input, shape index: {}]
  %s1 = inlined_call_operand.vmem [shape: f32[2,2], index: 1, kind: input, shape index: {}]
  %s2 = inlined_call_operand.vmem [shape: f32[32,32], index: 2, kind: input, shape index: {}]
  %s3 = inlined_call_operand.vmem [shape: f32[32,32], index: 3, kind: input, shape index: {}]
  %s4 = inlined_call_operand.vmem [shape: f32[32,32], index: 4, kind: input, shape index: {}]
  %s5 = inlined_call_operand.vmem [shape: f32[1,32], index: 5, kind: input, shape index: {}]
  %s6 = inlined_call_operand.vmem [shape: f32[16,16], index: 6, kind: input, shape index: {}]
  %s7 = inlined_call_operand.vmem [shape: f32[2,32,32], index: 7, kind: output, shape index: {}]
  %s8 = sld [smem:[#allocation0]]
  $region46: #{_lambda_.17} parent=0
    _
  %s10 = ssub.s32 1, %s8
  %s11 = scalar_select 0, %s10, %s8
  $region1: #{_lambda_.17} parent=0
    #allocation2 [shape = 'u8[1024]{0}', space=smem, size = 0x400, scoped, tag = 'input window, operand 0, single buffered']
    #allocation3 [shape = 's32[1]{0}', space=sflag, size = 0x4, scoped, tag = 'scoped memory for _lambda_.17']
    #allocation4 [shape = 'u8[1024]{0}', space=smem, size = 0x400, scoped, tag = 'input window, operand 1, single buffered']
    #allocation5 [shape = 's32[1]{0}', space=sflag, size = 0x4, scoped, tag = 'scoped memory for _lambda_.17']
    %12 = vsyncpa [#allocation3], 0
    %13 = vsyncpa [#allocation5], 0
    // Predicated region
    $region2: #{_lambda_.17} parent=1 // pred_check
      _
    $region3: #{_lambda_.17} parent=1 // pred_check_branch
      %15 = sbr.rel (0) target = $region5
    $region4: #{_lambda_.17} parent=1 // pred_region
      %17 = vsyncadd [#allocation3], 0
      %s19 = sshll.u32 %s0, 4
      %s20 = int_to_ptr.vmem [resolvable:$true] %s19
      %22 = dma.vmem_to_smem %s20, 32, [#allocation2], [#allocation3]
    $region5: #{_lambda_.17} parent=1 // pred_fallthru
      _
    // Predicated region
    $region6: #{_lambda_.17} parent=1 // pred_check
      _
    $region7: #{_lambda_.17} parent=1 // pred_check_branch
      %24 = sbr.rel (0) target = $region9
    $region8: #{_lambda_.17} parent=1 // pred_region
      %26 = vsyncadd [#allocation5], 0
      %s28 = sshll.u32 %s1, 4
      %s29 = int_to_ptr.vmem [resolvable:$true] %s28
      %31 = dma.vmem_to_smem %s29, 32, [#allocation4], [#allocation5]
    $region9: #{_lambda_.17} parent=1 // pred_fallthru
      _
    // Predicated region
    $region10: #{_lambda_.17} parent=1 // pred_check
      _
    $region11: #{_lambda_.17} parent=1 // pred_check_branch
      %33 = sbr.rel (0) target = $region13
    $region12: #{_lambda_.17} parent=1 // pred_region
      _
    $region13: #{_lambda_.17} parent=1 // pred_fallthru
      _
    // Predicated region
    $region14: #{_lambda_.17} parent=1 // pred_check
      _
    $region15: #{_lambda_.17} parent=1 // pred_check_branch
      %35 = sbr.rel (0) target = $region17
    $region16: #{_lambda_.17} parent=1 // pred_region
      _
    $region17: #{_lambda_.17} parent=1 // pred_fallthru
      _
    // Predicated region
    $region18: #{_lambda_.17} parent=1 // pred_check
      _
    $region19: #{_lambda_.17} parent=1 // pred_check_branch
      %37 = sbr.rel (0) target = $region21
    $region20: #{_lambda_.17} parent=1 // pred_region
      _
    $region21: #{_lambda_.17} parent=1 // pred_fallthru
      _
    // Predicated region
    $region22: #{_lambda_.17} parent=1 // pred_check
      _
    $region23: #{_lambda_.17} parent=1 // pred_check_branch
      %39 = sbr.rel (0) target = $region25
    $region24: #{_lambda_.17} parent=1 // pred_region
      _
    $region25: #{_lambda_.17} parent=1 // pred_fallthru
      _
    // Predicated region
    $region26: #{_lambda_.17} parent=1 // pred_check
      _
    $region27: #{_lambda_.17} parent=1 // pred_check_branch
      %41 = sbr.rel (0) target = $region29
    $region28: #{_lambda_.17} parent=1 // pred_region
      _
    $region29: #{_lambda_.17} parent=1 // pred_fallthru
      _
    // Predicated region
    $region30: #{_lambda_.17} parent=1 // pred_check
      _
    $region31: #{_lambda_.17} parent=1 // pred_check_branch
      %43 = sbr.rel (0) target = $region33
    $region32: #{_lambda_.17} parent=1 // pred_region
      %45 = dma.done [#allocation3], 32
    $region33: #{_lambda_.17} parent=1 // pred_fallthru
      _
    // Predicated region
    $region34: #{_lambda_.17} parent=1 // pred_check
      _
    $region35: #{_lambda_.17} parent=1 // pred_check_branch
      %47 = sbr.rel (0) target = $region37
    $region36: #{_lambda_.17} parent=1 // pred_region
      %49 = dma.done [#allocation5], 32
    $region37: #{_lambda_.17} parent=1 // pred_fallthru
      _
    %50 = sfence
    %v51 = vlaneseq
    %v52 = vshrl.u32 %v51, 7
    %v53 = vadd.s32 %v52, 8
    %v54 = vlaneseq
    %v55 = vand.u32 %v54, 127
    %v56 = vsub.s32 %v55, %v52
    %v57 = vsub.s32 %v55, %v53
    %v58 = vld [vmem:[%s2] sm:$0xff]
    %v59 = vld [vmem:[%s2 + $0x8] sm:$0xff]
    %v60 = vld [vmem:[%s2 + $0x10] sm:$0xff]
    %v61 = vld [vmem:[%s2 + $0x18] sm:$0xff]
    %v62 = vld [vmem:[%s3] sm:$0xff]
    %v63 = vld [vmem:[%s3 + $0x8] sm:$0xff]
    %v64 = vld [vmem:[%s3 + $0x10] sm:$0xff]
    %v65 = vld [vmem:[%s3 + $0x18] sm:$0xff]
    %v66 = vld [vmem:[%s6] sm:$0xff]
    %v67 = vld [vmem:[%s6 + $0x8] sm:$0xff]
    %s68 = sld [smem:[#allocation2]]
    %s69 = sld [smem:[#allocation4]]
    %v70 = vstv %s68
    %vm71 = vcmp.eq.s32.totalorder %v56, %v70
    %vm72 = vcmp.eq.s32.totalorder %v57, %v70
    %s73 = ssub.s32 %s68, 16
    %v74 = vstv %s73
    %vm75 = vcmp.eq.s32.totalorder %v56, %v74
    %vm76 = vcmp.eq.s32.totalorder %v57, %v74
    %vm77 = vmor %vm71, %vm75
    %vm78 = vmor %vm72, %vm76
    %v79 = vstv %s69
    %v80 = vsel %vm77, %v79, 0.0
    %v81 = vsel %vm78, %v79, 0.0
    %v82 = vadd.f32 %v80, 0.0
    %v83 = vadd.f32 %v81, 0.0
    %s84 = sld [smem:[#allocation2 + $0x1]]
    %s85 = sld [smem:[#allocation4 + $0x1]]
    %v86 = vstv %s84
    %vm87 = vcmp.eq.s32.totalorder %v56, %v86
    %vm88 = vcmp.eq.s32.totalorder %v57, %v86
    %s89 = ssub.s32 %s84, 16
    %v90 = vstv %s89
    %vm91 = vcmp.eq.s32.totalorder %v56, %v90
    %vm92 = vcmp.eq.s32.totalorder %v57, %v90
    %vm93 = vmor %vm87, %vm91
    %vm94 = vmor %vm88, %vm92
    %v95 = vstv %s85
    %v96 = vsel %vm93, %v95, 0.0
    %v97 = vsel %vm94, %v95, 0.0
    %v98 = vadd.f32 %v82, %v96
    %v99 = vadd.f32 %v83, %v97
    %vm100 = vcmask 130048
    %v102 = vsel %vm100, %v98, 0
    %v105 = vsel %vm100, %v99, 0
    %107 = vmatpush.msra.mxu0 0.0
    %108 = vmatpush.msra.mxu0 0.0
    %109 = vmatpush.msra.mxu0 0.0
    %110 = vmatpush.msra.mxu0 0.0
    %111 = vmatpush.msra.mxu0 0.0
    %112 = vmatpush.msra.mxu0 0.0
    %113 = vmatpush.msra.mxu0 0.0
    %114 = vmatpush.msra.mxu0 0.0
    %115 = vmatpush.msra.mxu0 0.0
    %116 = vmatpush.msra.mxu0 0.0
    %117 = vmatpush.msra.mxu0 0.0
    %118 = vmatpush.msra.mxu0 0.0
    %119 = vmatpush.msra.mxu0 0.0
    %120 = vmatpush.msra.mxu0 0.0
    %121 = vmatpush.msra.mxu0 %v59
    %122 = vmatpush.msra.mxu0 %v58
    %123 = vmatmul.f32.gmra.mxu0 %v102
    %v124 = vpop.f32.mrf.mxu0
    %v125 = vadd.f32 0.0, %v124
    %126 = vmatmul.f32.gmra.mxu0 %v105
    %v127 = vpop.f32.mrf.mxu0
    %v128 = vadd.f32 0.0, %v127
    %129 = vdwg.mxu0
    %v130 = vld [vmem:[%s4] sm:$0xff]
    %v131 = vld [vmem:[%s4 + $0x8] sm:$0xff]
    %v132 = vld [vmem:[%s4 + $0x10] sm:$0xff]
    %v133 = vld [vmem:[%s4 + $0x18] sm:$0xff]
    %v134 = vld [vmem:[%s5] sm:$0x1]
    %v136 = vperm.slane %v134, 0
    %vm138 = vcmask 261120
    %v140 = vsel %vm138, %v125, 0
    %v143 = vsel %vm138, %v128, 0
    %145 = vmatpush.msra.mxu0 0.0
    %146 = vmatpush.msra.mxu0 0.0
    %147 = vmatpush.msra.mxu0 0.0
    %148 = vmatpush.msra.mxu0 0.0
    %149 = vmatpush.msra.mxu0 0.0
    %150 = vmatpush.msra.mxu0 0.0
    %151 = vmatpush.msra.mxu0 0.0
    %152 = vmatpush.msra.mxu0 0.0
    %153 = vmatpush.msra.mxu0 0.0
    %154 = vmatpush.msra.mxu0 0.0
    %155 = vmatpush.msra.mxu0 0.0
    %156 = vmatpush.msra.mxu0 0.0
    %157 = vmatpush.msra.mxu0 %v133
    %158 = vmatpush.msra.mxu0 %v132
    %159 = vmatpush.msra.mxu0 %v131
    %160 = vmatpush.msra.mxu0 %v130
    %161 = vmatmul.f32.gmra.mxu0 %v140
    %v162 = vpop.f32.mrf.mxu0
    %v163 = vadd.f32 %v136, %v162
    %164 = vmatmul.f32.gmra.mxu0 %v143
    %v165 = vpop.f32.mrf.mxu0
    %v166 = vadd.f32 %v136, %v165
    %167 = vdwg.mxu0
    %v168 = vadd.f32 %v62, %v163
    %v169 = vadd.f32 %v63, %v166
    %v171 = vsel %vm100, %v66, 0
    %v174 = vsel %vm100, %v67, 0
    %176 = vmatpush.msra.mxu0 0.0
    %177 = vmatpush.msra.mxu0 0.0
    %178 = vmatpush.msra.mxu0 0.0
    %179 = vmatpush.msra.mxu0 0.0
    %180 = vmatpush.msra.mxu0 0.0
    %181 = vmatpush.msra.mxu0 0.0
    %182 = vmatpush.msra.mxu0 0.0
    %183 = vmatpush.msra.mxu0 0.0
    %184 = vmatpush.msra.mxu0 0.0
    %185 = vmatpush.msra.mxu0 0.0
    %186 = vmatpush.msra.mxu0 0.0
    %187 = vmatpush.msra.mxu0 0.0
    %188 = vmatpush.msra.mxu0 0.0
    %189 = vmatpush.msra.mxu0 0.0
    %190 = vmatpush.msra.mxu0 %v169
    %191 = vmatpush.msra.mxu0 %v168
    %192 = vmatmul.f32.gmra.mxu0 %v171
    %v193 = vpop.f32.mrf.mxu0
    %v194 = vadd.f32 0.0, %v193
    %195 = vmatmul.f32.gmra.mxu0 %v174
    %v196 = vpop.f32.mrf.mxu0
    %v197 = vadd.f32 0.0, %v196
    %198 = vdwg.mxu0
    %v199 = vsub.f32 %v168, %v194
    %v200 = vsub.f32 %v169, %v197
    %201 = vst.msk [vmem:[%s7] sm:$0xff] %vm138, %v199
    %202 = vst.msk [vmem:[%s7 + $0x8] sm:$0xff] %vm138, %v200
    %s203 = scalar_lea.vmem %s7, 32
    %204 = vst.msk [vmem:[%s203] sm:$0xff] %vm138, %v194
    %205 = vst.msk [vmem:[%s203 + $0x8] sm:$0xff] %vm138, %v197
    %s206 = sld [smem:[#allocation2 + $0x80]]
    %s207 = sld [smem:[#allocation4 + $0x80]]
    %v208 = vstv %s206
    %vm209 = vcmp.eq.s32.totalorder %v56, %v208
    %vm210 = vcmp.eq.s32.totalorder %v57, %v208
    %s211 = ssub.s32 %s206, 16
    %v212 = vstv %s211
    %vm213 = vcmp.eq.s32.totalorder %v56, %v212
    %vm214 = vcmp.eq.s32.totalorder %v57, %v212
    %vm215 = vmor %vm209, %vm213
    %vm216 = vmor %vm210, %vm214
    %v217 = vstv %s207
    %v218 = vsel %vm215, %v217, 0.0
    %v219 = vsel %vm216, %v217, 0.0
    %v220 = vadd.f32 %v218, 0.0
    %v221 = vadd.f32 %v219, 0.0
    %s222 = sld [smem:[#allocation2 + $0x81]]
    %s223 = sld [smem:[#allocation4 + $0x81]]
    %v224 = vstv %s222
    %vm225 = vcmp.eq.s32.totalorder %v56, %v224
    %vm226 = vcmp.eq.s32.totalorder %v57, %v224
    %s227 = ssub.s32 %s222, 16
    %v228 = vstv %s227
    %vm229 = vcmp.eq.s32.totalorder %v56, %v228
    %vm230 = vcmp.eq.s32.totalorder %v57, %v228
    %vm231 = vmor %vm225, %vm229
    %vm232 = vmor %vm226, %vm230
    %v233 = vstv %s223
    %v234 = vsel %vm231, %v233, 0.0
    %v235 = vsel %vm232, %v233, 0.0
    %v236 = vadd.f32 %v220, %v234
    %v237 = vadd.f32 %v221, %v235
    %v239 = vsel %vm100, %v236, 0
    %v242 = vsel %vm100, %v237, 0
    %244 = vmatpush.msra.mxu0 0.0
    %245 = vmatpush.msra.mxu0 0.0
    %246 = vmatpush.msra.mxu0 0.0
    %247 = vmatpush.msra.mxu0 0.0
    %248 = vmatpush.msra.mxu0 0.0
    %249 = vmatpush.msra.mxu0 0.0
    %250 = vmatpush.msra.mxu0 0.0
    %251 = vmatpush.msra.mxu0 0.0
    %252 = vmatpush.msra.mxu0 0.0
    %253 = vmatpush.msra.mxu0 0.0
    %254 = vmatpush.msra.mxu0 0.0
    %255 = vmatpush.msra.mxu0 0.0
    %256 = vmatpush.msra.mxu0 0.0
    %257 = vmatpush.msra.mxu0 0.0
    %258 = vmatpush.msra.mxu0 %v61
    %259 = vmatpush.msra.mxu0 %v60
    %260 = vmatmul.f32.gmra.mxu0 %v239
    %v261 = vpop.f32.mrf.mxu0
    %v262 = vadd.f32 0.0, %v261
    %263 = vmatmul.f32.gmra.mxu0 %v242
    %v264 = vpop.f32.mrf.mxu0
    %v265 = vadd.f32 0.0, %v264
    %266 = vdwg.mxu0
    %v267 = vld [vmem:[%s4] sm:$0xff]
    %v268 = vld [vmem:[%s4 + $0x8] sm:$0xff]
    %v269 = vld [vmem:[%s4 + $0x10] sm:$0xff]
    %v270 = vld [vmem:[%s4 + $0x18] sm:$0xff]
    %v271 = vld [vmem:[%s5] sm:$0x1]
    %v273 = vperm.slane %v271, 0
    %v276 = vsel %vm138, %v262, 0
    %v279 = vsel %vm138, %v265, 0
    %281 = vmatpush.msra.mxu0 0.0
    %282 = vmatpush.msra.mxu0 0.0
    %283 = vmatpush.msra.mxu0 0.0
    %284 = vmatpush.msra.mxu0 0.0
    %285 = vmatpush.msra.mxu0 0.0
    %286 = vmatpush.msra.mxu0 0.0
    %287 = vmatpush.msra.mxu0 0.0
    %288 = vmatpush.msra.mxu0 0.0
    %289 = vmatpush.msra.mxu0 0.0
    %290 = vmatpush.msra.mxu0 0.0
    %291 = vmatpush.msra.mxu0 0.0
    %292 = vmatpush.msra.mxu0 0.0
    %293 = vmatpush.msra.mxu0 %v270
    %294 = vmatpush.msra.mxu0 %v269
    %295 = vmatpush.msra.mxu0 %v268
    %296 = vmatpush.msra.mxu0 %v267
    %297 = vmatmul.f32.gmra.mxu0 %v276
    %v298 = vpop.f32.mrf.mxu0
    %v299 = vadd.f32 %v273, %v298
    %300 = vmatmul.f32.gmra.mxu0 %v279
    %v301 = vpop.f32.mrf.mxu0
    %v302 = vadd.f32 %v273, %v301
    %303 = vdwg.mxu0
    %v304 = vadd.f32 %v64, %v299
    %v305 = vadd.f32 %v65, %v302
    %306 = vmatpush.msra.mxu0 0.0
    %307 = vmatpush.msra.mxu0 0.0
    %308 = vmatpush.msra.mxu0 0.0
    %309 = vmatpush.msra.mxu0 0.0
    %310 = vmatpush.msra.mxu0 0.0
    %311 = vmatpush.msra.mxu0 0.0
    %312 = vmatpush.msra.mxu0 0.0
    %313 = vmatpush.msra.mxu0 0.0
    %314 = vmatpush.msra.mxu0 0.0
    %315 = vmatpush.msra.mxu0 0.0
    %316 = vmatpush.msra.mxu0 0.0
    %317 = vmatpush.msra.mxu0 0.0
    %318 = vmatpush.msra.mxu0 0.0
    %319 = vmatpush.msra.mxu0 0.0
    %320 = vmatpush.msra.mxu0 %v305
    %321 = vmatpush.msra.mxu0 %v304
    %322 = vmatmul.f32.gmra.mxu0 %v171
    %v323 = vpop.f32.mrf.mxu0
    %v324 = vadd.f32 0.0, %v323
    %325 = vmatmul.f32.gmra.mxu0 %v174
    %v326 = vpop.f32.mrf.mxu0
    %v327 = vadd.f32 0.0, %v326
    %328 = vdwg.mxu0
    %v329 = vsub.f32 %v304, %v324
    %v330 = vsub.f32 %v305, %v327
    %331 = vst.msk [vmem:[%s7 + $0x10] sm:$0xff] %vm138, %v329
    %332 = vst.msk [vmem:[%s7 + $0x18] sm:$0xff] %vm138, %v330
    %333 = vst.msk [vmem:[%s203 + $0x10] sm:$0xff] %vm138, %v324
    %334 = vst.msk [vmem:[%s203 + $0x18] sm:$0xff] %vm138, %v327
    // Predicated region
    $region38: #{_lambda_.17} parent=1 // pred_check
      _
    $region39: #{_lambda_.17} parent=1 // pred_check_branch
      %336 = sbr.rel (0) target = $region41
    $region40: #{_lambda_.17} parent=1 // pred_region
      _
    $region41: #{_lambda_.17} parent=1 // pred_fallthru
      _
    // Predicated region
    $region42: #{_lambda_.17} parent=1 // pred_check
      _
    $region43: #{_lambda_.17} parent=1 // pred_check_branch
      %338 = sbr.rel (0) target = $region45
    $region44: #{_lambda_.17} parent=1 // pred_region
      _
    $region45: #{_lambda_.17} parent=1 // pred_fallthru
      _
    %339 = vsyncpa [#allocation3], 1
    %340 = vsyncpa [#allocation5], 1

// kernel: _lambda_.19
$region0: #{_lambda_.19}
  #allocation0 [shape = 'u32[]', space=smem, size = 0x4, offset = 0x4, fixed_abs, tag = 'smem constant byte address 0x4 - core index']
  #allocation1 [shape = 'u32[72,128]{1,0:T(1,128)}', space=vmem, size = 0x9000, scoped, tag = 'internal scratch']
  %s0 = inlined_call_operand.vmem [shape: s32[2,2], index: 0, kind: input, shape index: {}]
  %s1 = inlined_call_operand.vmem [shape: f32[2,2], index: 1, kind: input, shape index: {}]
  %s2 = inlined_call_operand.vmem [shape: f32[32,32], index: 2, kind: input, shape index: {}]
  %s3 = inlined_call_operand.vmem [shape: f32[32,32], index: 3, kind: input, shape index: {}]
  %s4 = inlined_call_operand.vmem [shape: f32[32,32], index: 4, kind: input, shape index: {}]
  %s5 = inlined_call_operand.vmem [shape: f32[1,32], index: 5, kind: input, shape index: {}]
  %s6 = inlined_call_operand.vmem [shape: f32[16,16], index: 6, kind: input, shape index: {}]
  %s7 = inlined_call_operand.vmem [shape: f32[32,64], index: 7, kind: input, shape index: {}]
  %s8 = inlined_call_operand.vmem [shape: f32[64,32], index: 8, kind: input, shape index: {}]
  %s9 = inlined_call_operand.vmem [shape: f32[1,32], index: 9, kind: input, shape index: {}]
  %s10 = inlined_call_operand.vmem [shape: f32[1,32], index: 10, kind: input, shape index: {}]
  %s11 = inlined_call_operand.vmem [shape: f32[2,32,32], index: 11, kind: output, shape index: {}]
  %s12 = sld [smem:[#allocation0]]
  $region62: #{_lambda_.19} parent=0
    _
  %s14 = ssub.s32 1, %s12
  %s15 = scalar_select 0, %s14, %s12
  $region1: #{_lambda_.19} parent=0
    #allocation2 [shape = 'u8[1024]{0}', space=smem, size = 0x400, scoped, tag = 'input window, operand 0, single buffered']
    #allocation3 [shape = 's32[1]{0}', space=sflag, size = 0x4, scoped, tag = 'scoped memory for _lambda_.19']
    #allocation4 [shape = 'u8[1024]{0}', space=smem, size = 0x400, scoped, tag = 'input window, operand 1, single buffered']
    #allocation5 [shape = 's32[1]{0}', space=sflag, size = 0x4, scoped, tag = 'scoped memory for _lambda_.19']
    %16 = vsyncpa [#allocation3], 0
    %17 = vsyncpa [#allocation5], 0
    // Predicated region
    $region2: #{_lambda_.19} parent=1 // pred_check
      _
    $region3: #{_lambda_.19} parent=1 // pred_check_branch
      %19 = sbr.rel (0) target = $region5
    $region4: #{_lambda_.19} parent=1 // pred_region
      %21 = vsyncadd [#allocation3], 0
      %s23 = sshll.u32 %s0, 4
      %s24 = int_to_ptr.vmem [resolvable:$true] %s23
      %26 = dma.vmem_to_smem %s24, 32, [#allocation2], [#allocation3]
    $region5: #{_lambda_.19} parent=1 // pred_fallthru
      _
    // Predicated region
    $region6: #{_lambda_.19} parent=1 // pred_check
      _
    $region7: #{_lambda_.19} parent=1 // pred_check_branch
      %28 = sbr.rel (0) target = $region9
    $region8: #{_lambda_.19} parent=1 // pred_region
      %30 = vsyncadd [#allocation5], 0
      %s32 = sshll.u32 %s1, 4
      %s33 = int_to_ptr.vmem [resolvable:$true] %s32
      %35 = dma.vmem_to_smem %s33, 32, [#allocation4], [#allocation5]
    $region9: #{_lambda_.19} parent=1 // pred_fallthru
      _
    // Predicated region
    $region10: #{_lambda_.19} parent=1 // pred_check
      _
    $region11: #{_lambda_.19} parent=1 // pred_check_branch
      %37 = sbr.rel (0) target = $region13
    $region12: #{_lambda_.19} parent=1 // pred_region
      _
    $region13: #{_lambda_.19} parent=1 // pred_fallthru
      _
    // Predicated region
    $region14: #{_lambda_.19} parent=1 // pred_check
      _
    $region15: #{_lambda_.19} parent=1 // pred_check_branch
      %39 = sbr.rel (0) target = $region17
    $region16: #{_lambda_.19} parent=1 // pred_region
      _
    $region17: #{_lambda_.19} parent=1 // pred_fallthru
      _
    // Predicated region
    $region18: #{_lambda_.19} parent=1 // pred_check
      _
    $region19: #{_lambda_.19} parent=1 // pred_check_branch
      %41 = sbr.rel (0) target = $region21
    $region20: #{_lambda_.19} parent=1 // pred_region
      _
    $region21: #{_lambda_.19} parent=1 // pred_fallthru
      _
    // Predicated region
    $region22: #{_lambda_.19} parent=1 // pred_check
      _
    $region23: #{_lambda_.19} parent=1 // pred_check_branch
      %43 = sbr.rel (0) target = $region25
    $region24: #{_lambda_.19} parent=1 // pred_region
      _
    $region25: #{_lambda_.19} parent=1 // pred_fallthru
      _
    // Predicated region
    $region26: #{_lambda_.19} parent=1 // pred_check
      _
    $region27: #{_lambda_.19} parent=1 // pred_check_branch
      %45 = sbr.rel (0) target = $region29
    $region28: #{_lambda_.19} parent=1 // pred_region
      _
    $region29: #{_lambda_.19} parent=1 // pred_fallthru
      _
    // Predicated region
    $region30: #{_lambda_.19} parent=1 // pred_check
      _
    $region31: #{_lambda_.19} parent=1 // pred_check_branch
      %47 = sbr.rel (0) target = $region33
    $region32: #{_lambda_.19} parent=1 // pred_region
      _
    $region33: #{_lambda_.19} parent=1 // pred_fallthru
      _
    // Predicated region
    $region34: #{_lambda_.19} parent=1 // pred_check
      _
    $region35: #{_lambda_.19} parent=1 // pred_check_branch
      %49 = sbr.rel (0) target = $region37
    $region36: #{_lambda_.19} parent=1 // pred_region
      _
    $region37: #{_lambda_.19} parent=1 // pred_fallthru
      _
    // Predicated region
    $region38: #{_lambda_.19} parent=1 // pred_check
      _
    $region39: #{_lambda_.19} parent=1 // pred_check_branch
      %51 = sbr.rel (0) target = $region41
    $region40: #{_lambda_.19} parent=1 // pred_region
      _
    $region41: #{_lambda_.19} parent=1 // pred_fallthru
      _
    // Predicated region
    $region42: #{_lambda_.19} parent=1 // pred_check
      _
    $region43: #{_lambda_.19} parent=1 // pred_check_branch
      %53 = sbr.rel (0) target = $region45
    $region44: #{_lambda_.19} parent=1 // pred_region
      _
    $region45: #{_lambda_.19} parent=1 // pred_fallthru
      _
    // Predicated region
    $region46: #{_lambda_.19} parent=1 // pred_check
      _
    $region47: #{_lambda_.19} parent=1 // pred_check_branch
      %55 = sbr.rel (0) target = $region49
    $region48: #{_lambda_.19} parent=1 // pred_region
      %57 = dma.done [#allocation3], 32
    $region49: #{_lambda_.19} parent=1 // pred_fallthru
      _
    // Predicated region
    $region50: #{_lambda_.19} parent=1 // pred_check
      _
    $region51: #{_lambda_.19} parent=1 // pred_check_branch
      %59 = sbr.rel (0) target = $region53
    $region52: #{_lambda_.19} parent=1 // pred_region
      %61 = dma.done [#allocation5], 32
    $region53: #{_lambda_.19} parent=1 // pred_fallthru
      _
    %62 = sfence
    %v63 = vlaneseq
    %v64 = vshrl.u32 %v63, 7
    %v65 = vadd.s32 %v64, 8
    %v66 = vlaneseq
    %v67 = vand.u32 %v66, 127
    %v68 = vsub.s32 %v67, %v64
    %v69 = vsub.s32 %v67, %v65
    %v70 = vld [vmem:[%s2] sm:$0xff]
    %v71 = vld [vmem:[%s2 + $0x8] sm:$0xff]
    %v72 = vld [vmem:[%s2 + $0x10] sm:$0xff]
    %v73 = vld [vmem:[%s2 + $0x18] sm:$0xff]
    %v74 = vld [vmem:[%s3] sm:$0xff]
    %v75 = vld [vmem:[%s3 + $0x8] sm:$0xff]
    %v76 = vld [vmem:[%s3 + $0x10] sm:$0xff]
    %v77 = vld [vmem:[%s3 + $0x18] sm:$0xff]
    %v78 = vld [vmem:[%s6] sm:$0xff]
    %v79 = vld [vmem:[%s6 + $0x8] sm:$0xff]
    %s80 = sld [smem:[#allocation2]]
    %s81 = sld [smem:[#allocation4]]
    %v82 = vstv %s80
    %vm83 = vcmp.eq.s32.totalorder %v68, %v82
    %vm84 = vcmp.eq.s32.totalorder %v69, %v82
    %s85 = ssub.s32 %s80, 16
    %v86 = vstv %s85
    %vm87 = vcmp.eq.s32.totalorder %v68, %v86
    %vm88 = vcmp.eq.s32.totalorder %v69, %v86
    %vm89 = vmor %vm83, %vm87
    %vm90 = vmor %vm84, %vm88
    %v91 = vstv %s81
    %v92 = vsel %vm89, %v91, 0.0
    %v93 = vsel %vm90, %v91, 0.0
    %v94 = vadd.f32 %v92, 0.0
    %v95 = vadd.f32 %v93, 0.0
    %s96 = sld [smem:[#allocation2 + $0x1]]
    %s97 = sld [smem:[#allocation4 + $0x1]]
    %v98 = vstv %s96
    %vm99 = vcmp.eq.s32.totalorder %v68, %v98
    %vm100 = vcmp.eq.s32.totalorder %v69, %v98
    %s101 = ssub.s32 %s96, 16
    %v102 = vstv %s101
    %vm103 = vcmp.eq.s32.totalorder %v68, %v102
    %vm104 = vcmp.eq.s32.totalorder %v69, %v102
    %vm105 = vmor %vm99, %vm103
    %vm106 = vmor %vm100, %vm104
    %v107 = vstv %s97
    %v108 = vsel %vm105, %v107, 0.0
    %v109 = vsel %vm106, %v107, 0.0
    %v110 = vadd.f32 %v94, %v108
    %v111 = vadd.f32 %v95, %v109
    %vm112 = vcmask 130048
    %v114 = vsel %vm112, %v110, 0
    %v117 = vsel %vm112, %v111, 0
    %119 = vmatpush.msra.mxu0 0.0
    %120 = vmatpush.msra.mxu0 0.0
    %121 = vmatpush.msra.mxu0 0.0
    %122 = vmatpush.msra.mxu0 0.0
    %123 = vmatpush.msra.mxu0 0.0
    %124 = vmatpush.msra.mxu0 0.0
    %125 = vmatpush.msra.mxu0 0.0
    %126 = vmatpush.msra.mxu0 0.0
    %127 = vmatpush.msra.mxu0 0.0
    %128 = vmatpush.msra.mxu0 0.0
    %129 = vmatpush.msra.mxu0 0.0
    %130 = vmatpush.msra.mxu0 0.0
    %131 = vmatpush.msra.mxu0 0.0
    %132 = vmatpush.msra.mxu0 0.0
    %133 = vmatpush.msra.mxu0 %v71
    %134 = vmatpush.msra.mxu0 %v70
    %135 = vmatmul.f32.gmra.mxu0 %v114
    %v136 = vpop.f32.mrf.mxu0
    %v137 = vadd.f32 0.0, %v136
    %138 = vmatmul.f32.gmra.mxu0 %v117
    %v139 = vpop.f32.mrf.mxu0
    %v140 = vadd.f32 0.0, %v139
    %141 = vdwg.mxu0
    %v142 = vld [vmem:[%s4] sm:$0xff]
    %v143 = vld [vmem:[%s4 + $0x8] sm:$0xff]
    %v144 = vld [vmem:[%s4 + $0x10] sm:$0xff]
    %v145 = vld [vmem:[%s4 + $0x18] sm:$0xff]
    %v146 = vld [vmem:[%s5] sm:$0x1]
    %v148 = vperm.slane %v146, 0
    %vm150 = vcmask 261120
    %v152 = vsel %vm150, %v137, 0
    %v155 = vsel %vm150, %v140, 0
    %157 = vmatpush.msra.mxu0 0.0
    %158 = vmatpush.msra.mxu0 0.0
    %159 = vmatpush.msra.mxu0 0.0
    %160 = vmatpush.msra.mxu0 0.0
    %161 = vmatpush.msra.mxu0 0.0
    %162 = vmatpush.msra.mxu0 0.0
    %163 = vmatpush.msra.mxu0 0.0
    %164 = vmatpush.msra.mxu0 0.0
    %165 = vmatpush.msra.mxu0 0.0
    %166 = vmatpush.msra.mxu0 0.0
    %167 = vmatpush.msra.mxu0 0.0
    %168 = vmatpush.msra.mxu0 0.0
    %169 = vmatpush.msra.mxu0 %v145
    %170 = vmatpush.msra.mxu0 %v144
    %171 = vmatpush.msra.mxu0 %v143
    %172 = vmatpush.msra.mxu0 %v142
    %173 = vmatmul.f32.gmra.mxu0 %v152
    %v174 = vpop.f32.mrf.mxu0
    %v175 = vadd.f32 %v148, %v174
    %176 = vmatmul.f32.gmra.mxu0 %v155
    %v177 = vpop.f32.mrf.mxu0
    %v178 = vadd.f32 %v148, %v177
    %179 = vdwg.mxu0
    %v180 = vadd.f32 %v74, %v175
    %v181 = vadd.f32 %v75, %v178
    %v183 = vsel %vm112, %v78, 0
    %v186 = vsel %vm112, %v79, 0
    %188 = vmatpush.msra.mxu0 0.0
    %189 = vmatpush.msra.mxu0 0.0
    %190 = vmatpush.msra.mxu0 0.0
    %191 = vmatpush.msra.mxu0 0.0
    %192 = vmatpush.msra.mxu0 0.0
    %193 = vmatpush.msra.mxu0 0.0
    %194 = vmatpush.msra.mxu0 0.0
    %195 = vmatpush.msra.mxu0 0.0
    %196 = vmatpush.msra.mxu0 0.0
    %197 = vmatpush.msra.mxu0 0.0
    %198 = vmatpush.msra.mxu0 0.0
    %199 = vmatpush.msra.mxu0 0.0
    %200 = vmatpush.msra.mxu0 0.0
    %201 = vmatpush.msra.mxu0 0.0
    %202 = vmatpush.msra.mxu0 %v181
    %203 = vmatpush.msra.mxu0 %v180
    %204 = vmatmul.f32.gmra.mxu0 %v183
    %v205 = vpop.f32.mrf.mxu0
    %v206 = vadd.f32 0.0, %v205
    %207 = vmatmul.f32.gmra.mxu0 %v186
    %v208 = vpop.f32.mrf.mxu0
    %v209 = vadd.f32 0.0, %v208
    %210 = vdwg.mxu0
    %v211 = vsub.f32 %v180, %v206
    %v212 = vsub.f32 %v181, %v209
    %v213 = vld [vmem:[%s7] sm:$0xff]
    %v214 = vld [vmem:[%s7 + $0x8] sm:$0xff]
    %v215 = vld [vmem:[%s7 + $0x10] sm:$0xff]
    %v216 = vld [vmem:[%s7 + $0x18] sm:$0xff]
    %v218 = vsel %vm150, %v211, 0
    %v221 = vsel %vm150, %v212, 0
    %223 = vmatpush.msra.mxu0 0.0
    %224 = vmatpush.msra.mxu0 0.0
    %225 = vmatpush.msra.mxu0 0.0
    %226 = vmatpush.msra.mxu0 0.0
    %227 = vmatpush.msra.mxu0 0.0
    %228 = vmatpush.msra.mxu0 0.0
    %229 = vmatpush.msra.mxu0 0.0
    %230 = vmatpush.msra.mxu0 0.0
    %231 = vmatpush.msra.mxu0 0.0
    %232 = vmatpush.msra.mxu0 0.0
    %233 = vmatpush.msra.mxu0 0.0
    %234 = vmatpush.msra.mxu0 0.0
    %235 = vmatpush.msra.mxu0 %v216
    %236 = vmatpush.msra.mxu0 %v215
    %237 = vmatpush.msra.mxu0 %v214
    %238 = vmatpush.msra.mxu0 %v213
    %239 = vmatmul.f32.gmra.mxu0 %v218
    %v240 = vpop.f32.mrf.mxu0
    %v241 = vadd.f32 0.0, %v240
    %242 = vmatmul.f32.gmra.mxu0 %v221
    %v243 = vpop.f32.mrf.mxu0
    %v244 = vadd.f32 0.0, %v243
    %245 = vdwg.mxu0
    %v246 = vmul.f32 %v241, 0.5
    %v247 = vmul.f32 %v244, 0.5
    %v248 = vmul.f32 %v241, 0.70710677
    %v249 = vmul.f32 %v244, 0.70710677
    %v250 = vmax.f32 %v248, -3.832507
    %v251 = vmax.f32 %v249, -3.832507
    %v252 = vmin.f32 %v250, 3.832507
    %v253 = vmin.f32 %v251, 3.832507
    %v254 = vmul.f32 %v252, %v252
    %v255 = vmul.f32 %v253, %v253
    %v256 = vmul.f32 %v254, 0.00022905065
    %v257 = vmul.f32 %v255, 0.00022905065
    %v258 = vadd.f32 %v256, 0.003408291
    %v259 = vadd.f32 %v257, 0.003408291
    %v260 = vmul.f32 %v258, %v254
    %v261 = vmul.f32 %v259, %v255
    %v262 = vadd.f32 %v260, 0.050955694
    %v263 = vadd.f32 %v261, 0.050955694
    %v264 = vmul.f32 %v262, %v254
    %v265 = vmul.f32 %v263, %v255
    %v266 = vadd.f32 %v264, 0.18520832
    %v267 = vadd.f32 %v265, 0.18520832
    %v268 = vmul.f32 %v266, %v254
    %v269 = vmul.f32 %v267, %v255
    %v270 = vadd.f32 %v268, 1.1283791
    %v271 = vadd.f32 %v269, 1.1283791
    %v272 = vmul.f32 %v254, -1.1791603e-07
    %v273 = vmul.f32 %v255, -1.1791603e-07
    %v274 = vadd.f32 %v272, 2.3547966e-05
    %v275 = vadd.f32 %v273, 2.3547966e-05
    %v276 = vmul.f32 %v274, %v254
    %v277 = vmul.f32 %v275, %v255
    %v278 = vadd.f32 %v276, 0.0010179626
    %v279 = vadd.f32 %v277, 0.0010179626
    %v280 = vmul.f32 %v278, %v254
    %v281 = vmul.f32 %v279, %v255
    %v282 = vadd.f32 %v280, 0.01407047
    %v283 = vadd.f32 %v281, 0.01407047
    %v284 = vmul.f32 %v282, %v254
    %v285 = vmul.f32 %v283, %v255
    %v286 = vadd.f32 %v284, 0.11098505
    %v287 = vadd.f32 %v285, 0.11098505
    %v288 = vmul.f32 %v286, %v254
    %v289 = vmul.f32 %v287, %v255
    %v290 = vadd.f32 %v288, 0.49746925
    %v291 = vadd.f32 %v289, 0.49746925
    %v292 = vmul.f32 %v290, %v254
    %v293 = vmul.f32 %v291, %v255
    %v294 = vadd.f32 %v292, 1.0
    %v295 = vadd.f32 %v293, 1.0
    %v296 = vmul.f32 %v252, %v270
    %v297 = vmul.f32 %v253, %v271
    %v298 = vrcp.pop %v294
    %v299 = vmul.f32 %v294, %v298
    %v300 = vsub.f32 1.0, %v299
    %v301 = vmul.f32 %v298, %v300
    %v302 = vadd.f32 %v298, %v301
    %vm303 = vweird.f32 %v294
    %vm304 = vweird.f32 %v298
    %vm305 = vmor %vm303, %vm304
    %v306 = vsel %vm305, %v298, %v302
    %v307 = vand.u32 2147483647, %v294
    %vm308 = vcmp.eq.f32.partialorder %v307, 8.507059e+37
    %v309 = vand.u32 %v294, 2147483648
    %v310 = vor.u32 1.1754944e-38, %v309
    %v311 = vsel %vm308, %v310, %v306
    %v312 = vmul.f32 %v296, %v311
    %v313 = vrcp.pop %v295
    %v314 = vmul.f32 %v295, %v313
    %v315 = vsub.f32 1.0, %v314
    %v316 = vmul.f32 %v313, %v315
    %v317 = vadd.f32 %v313, %v316
    %vm318 = vweird.f32 %v295
    %vm319 = vweird.f32 %v313
    %vm320 = vmor %vm318, %vm319
    %v321 = vsel %vm320, %v313, %v317
    %v322 = vand.u32 2147483647, %v295
    %vm323 = vcmp.eq.f32.partialorder %v322, 8.507059e+37
    %v324 = vand.u32 %v295, 2147483648
    %v325 = vor.u32 1.1754944e-38, %v324
    %v326 = vsel %vm323, %v325, %v321
    %v327 = vmul.f32 %v297, %v326
    %v328 = vadd.f32 %v312, 1.0
    %v329 = vadd.f32 %v327, 1.0
    %v330 = vmul.f32 %v246, %v328
    %v331 = vmul.f32 %v247, %v329
    %v332 = vld [vmem:[%s8] sm:$0xff]
    %v333 = vld [vmem:[%s8 + $0x8] sm:$0xff]
    %v334 = vld [vmem:[%s8 + $0x10] sm:$0xff]
    %v335 = vld [vmem:[%s8 + $0x18] sm:$0xff]
    %v336 = vld [vmem:[%s8 + $0x20] sm:$0xff]
    %v337 = vld [vmem:[%s8 + $0x28] sm:$0xff]
    %v338 = vld [vmem:[%s8 + $0x30] sm:$0xff]
    %v339 = vld [vmem:[%s8 + $0x38] sm:$0xff]
    %vm340 = vcmask 523264
    %v342 = vsel %vm340, %v330, 0
    %v345 = vsel %vm340, %v331, 0
    %347 = vmatpush.msra.mxu0 0.0
    %348 = vmatpush.msra.mxu0 0.0
    %349 = vmatpush.msra.mxu0 0.0
    %350 = vmatpush.msra.mxu0 0.0
    %351 = vmatpush.msra.mxu0 0.0
    %352 = vmatpush.msra.mxu0 0.0
    %353 = vmatpush.msra.mxu0 0.0
    %354 = vmatpush.msra.mxu0 0.0
    %355 = vmatpush.msra.mxu0 %v339
    %356 = vmatpush.msra.mxu0 %v338
    %357 = vmatpush.msra.mxu0 %v337
    %358 = vmatpush.msra.mxu0 %v336
    %359 = vmatpush.msra.mxu0 %v335
    %360 = vmatpush.msra.mxu0 %v334
    %361 = vmatpush.msra.mxu0 %v333
    %362 = vmatpush.msra.mxu0 %v332
    %363 = vmatmul.f32.gmra.mxu0 %v342
    %v364 = vpop.f32.mrf.mxu0
    %v365 = vadd.f32 0.0, %v364
    %366 = vmatmul.f32.gmra.mxu0 %v345
    %v367 = vpop.f32.mrf.mxu0
    %v368 = vadd.f32 0.0, %v367
    %369 = vdwg.mxu0
    %v370 = vadd.f32 %v211, %v365
    %v371 = vadd.f32 %v212, %v368
    %372 = vmatpush.msra.mxu0 0.0
    %373 = vmatpush.msra.mxu0 0.0
    %374 = vmatpush.msra.mxu0 0.0
    %375 = vmatpush.msra.mxu0 0.0
    %376 = vmatpush.msra.mxu0 0.0
    %377 = vmatpush.msra.mxu0 0.0
    %378 = vmatpush.msra.mxu0 0.0
    %379 = vmatpush.msra.mxu0 0.0
    %380 = vmatpush.msra.mxu0 0.0
    %381 = vmatpush.msra.mxu0 0.0
    %382 = vmatpush.msra.mxu0 0.0
    %383 = vmatpush.msra.mxu0 0.0
    %384 = vmatpush.msra.mxu0 0.0
    %385 = vmatpush.msra.mxu0 0.0
    %386 = vmatpush.msra.mxu0 %v371
    %387 = vmatpush.msra.mxu0 %v370
    %388 = vmatmul.f32.gmra.mxu0 %v183
    %v389 = vpop.f32.mrf.mxu0
    %v390 = vadd.f32 0.0, %v389
    %391 = vmatmul.f32.gmra.mxu0 %v186
    %v392 = vpop.f32.mrf.mxu0
    %v393 = vadd.f32 0.0, %v392
    %394 = vdwg.mxu0
    %v395 = vsub.f32 %v370, %v390
    %v396 = vsub.f32 %v371, %v393
    %v397 = vadd.f32 %v206, %v390
    %v398 = vadd.f32 %v209, %v393
    %v399 = vsel %vm150, %v395, 0.0
    %400 = vadd.xlane.f32.xlu0 %v399
    %v401 = vpop.xlane.xlu0 %400
    %v402 = vsel %vm150, %v396, 0.0
    %403 = vadd.xlane.f32.xlu0 %v402
    %v404 = vpop.xlane.xlu0 %403
    %v405 = vrcp.pop 32.0
    %v406 = vmul.f32 32.0, %v405
    %v407 = vsub.f32 1.0, %v406
    %v408 = vmul.f32 %v405, %v407
    %v409 = vadd.f32 %v405, %v408
    %vm410 = vweird.f32 %v405
    %v411 = vsel %vm410, %v405, %v409
    %v412 = vmul.f32 %v401, %v411
    %v413 = vmul.f32 %v404, %v411
    %v414 = vsub.f32 %v395, %v412
    %v415 = vsub.f32 %v396, %v413
    %v416 = vmul.f32 %v414, %v414
    %v417 = vmul.f32 %v415, %v415
    %v418 = vsel %vm150, %v416, 0.0
    %419 = vadd.xlane.f32.xlu0 %v418
    %v420 = vpop.xlane.xlu0 %419
    %v421 = vsel %vm150, %v417, 0.0
    %422 = vadd.xlane.f32.xlu0 %v421
    %v423 = vpop.xlane.xlu0 %422
    %v424 = vmul.f32 %v420, %v411
    %v425 = vmul.f32 %v423, %v411
    %v426 = vadd.f32 %v424, 1e-05
    %v427 = vadd.f32 %v425, 1e-05
    %v428 = vrsqrt.pop %v426
    %v429 = vmul.f32 %v428, %v426
    %v430 = vmul.f32 %v429, %v428
    %v431 = vmul.f32 0.5, %v430
    %v432 = vsub.f32 1.5, %v431
    %v433 = vmul.f32 %v428, %v432
    %vm434 = vweird.f32 %v426
    %vm435 = vweird.f32 %v428
    %vm436 = vmor %vm434, %vm435
    %v437 = vsel %vm436, %v428, %v433
    %v438 = vrsqrt.pop %v427
    %v439 = vmul.f32 %v438, %v427
    %v440 = vmul.f32 %v439, %v438
    %v441 = vmul.f32 0.5, %v440
    %v442 = vsub.f32 1.5, %v441
    %v443 = vmul.f32 %v438, %v442
    %vm444 = vweird.f32 %v427
    %vm445 = vweird.f32 %v438
    %vm446 = vmor %vm444, %vm445
    %v447 = vsel %vm446, %v438, %v443
    %v448 = vmul.f32 %v414, %v437
    %v449 = vmul.f32 %v415, %v447
    %v450 = vld [vmem:[%s9] sm:$0x1]
    %v452 = vperm.slane %v450, 0
    %v454 = vmul.f32 %v448, %v452
    %v455 = vmul.f32 %v449, %v452
    %v456 = vld [vmem:[%s10] sm:$0x1]
    %v458 = vperm.slane %v456, 0
    %v460 = vadd.f32 %v454, %v458
    %v461 = vadd.f32 %v455, %v458
    %v462 = vsel %vm150, %v460, 0.0
    %v463 = vsel %vm150, %v461, 0.0
    %v464 = vadd.f32 %v462, %v463
    %v465 = vrot.slane %v464, 4
    %v466 = vadd.f32 %v464, %v465
    %v467 = vrot.slane %v466, 2
    %v468 = vadd.f32 %v466, %v467
    %v469 = vrot.slane %v468, 1
    %v470 = vadd.f32 %v468, %v469
    %v471 = vrcp.pop 16.0
    %v472 = vmul.f32 16.0, %v471
    %v473 = vsub.f32 1.0, %v472
    %v474 = vmul.f32 %v471, %v473
    %v475 = vadd.f32 %v471, %v474
    %vm476 = vweird.f32 %v471
    %v477 = vsel %vm476, %v471, %v475
    %v478 = vmul.f32 %v470, %v477
    %v479 = vsub.f32 %v460, %v478
    %v480 = vsub.f32 %v461, %v478
    %481 = vst.msk [vmem:[%s11] sm:$0xff] %vm150, %v479
    %482 = vst.msk [vmem:[%s11 + $0x8] sm:$0xff] %vm150, %v480
    %s483 = scalar_lea.vmem %s11, 32
    %484 = vst.msk [vmem:[%s483] sm:$0xff] %vm150, %v397
    %485 = vst.msk [vmem:[%s483 + $0x8] sm:$0xff] %vm150, %v398
    %s486 = sld [smem:[#allocation2 + $0x80]]
    %s487 = sld [smem:[#allocation4 + $0x80]]
    %v488 = vstv %s486
    %vm489 = vcmp.eq.s32.totalorder %v68, %v488
    %vm490 = vcmp.eq.s32.totalorder %v69, %v488
    %s491 = ssub.s32 %s486, 16
    %v492 = vstv %s491
    %vm493 = vcmp.eq.s32.totalorder %v68, %v492
    %vm494 = vcmp.eq.s32.totalorder %v69, %v492
    %vm495 = vmor %vm489, %vm493
    %vm496 = vmor %vm490, %vm494
    %v497 = vstv %s487
    %v498 = vsel %vm495, %v497, 0.0
    %v499 = vsel %vm496, %v497, 0.0
    %v500 = vadd.f32 %v498, 0.0
    %v501 = vadd.f32 %v499, 0.0
    %s502 = sld [smem:[#allocation2 + $0x81]]
    %s503 = sld [smem:[#allocation4 + $0x81]]
    %v504 = vstv %s502
    %vm505 = vcmp.eq.s32.totalorder %v68, %v504
    %vm506 = vcmp.eq.s32.totalorder %v69, %v504
    %s507 = ssub.s32 %s502, 16
    %v508 = vstv %s507
    %vm509 = vcmp.eq.s32.totalorder %v68, %v508
    %vm510 = vcmp.eq.s32.totalorder %v69, %v508
    %vm511 = vmor %vm505, %vm509
    %vm512 = vmor %vm506, %vm510
    %v513 = vstv %s503
    %v514 = vsel %vm511, %v513, 0.0
    %v515 = vsel %vm512, %v513, 0.0
    %v516 = vadd.f32 %v500, %v514
    %v517 = vadd.f32 %v501, %v515
    %v519 = vsel %vm112, %v516, 0
    %v522 = vsel %vm112, %v517, 0
    %524 = vmatpush.msra.mxu0 0.0
    %525 = vmatpush.msra.mxu0 0.0
    %526 = vmatpush.msra.mxu0 0.0
    %527 = vmatpush.msra.mxu0 0.0
    %528 = vmatpush.msra.mxu0 0.0
    %529 = vmatpush.msra.mxu0 0.0
    %530 = vmatpush.msra.mxu0 0.0
    %531 = vmatpush.msra.mxu0 0.0
    %532 = vmatpush.msra.mxu0 0.0
    %533 = vmatpush.msra.mxu0 0.0
    %534 = vmatpush.msra.mxu0 0.0
    %535 = vmatpush.msra.mxu0 0.0
    %536 = vmatpush.msra.mxu0 0.0
    %537 = vmatpush.msra.mxu0 0.0
    %538 = vmatpush.msra.mxu0 %v73
    %539 = vmatpush.msra.mxu0 %v72
    %540 = vmatmul.f32.gmra.mxu0 %v519
    %v541 = vpop.f32.mrf.mxu0
    %v542 = vadd.f32 0.0, %v541
    %543 = vmatmul.f32.gmra.mxu0 %v522
    %v544 = vpop.f32.mrf.mxu0
    %v545 = vadd.f32 0.0, %v544
    %546 = vdwg.mxu0
    %v547 = vld [vmem:[%s4] sm:$0xff]
    %v548 = vld [vmem:[%s4 + $0x8] sm:$0xff]
    %v549 = vld [vmem:[%s4 + $0x10] sm:$0xff]
    %v550 = vld [vmem:[%s4 + $0x18] sm:$0xff]
    %v551 = vld [vmem:[%s5] sm:$0x1]
    %v553 = vperm.slane %v551, 0
    %v556 = vsel %vm150, %v542, 0
    %v559 = vsel %vm150, %v545, 0
    %561 = vmatpush.msra.mxu0 0.0
    %562 = vmatpush.msra.mxu0 0.0
    %563 = vmatpush.msra.mxu0 0.0
    %564 = vmatpush.msra.mxu0 0.0
    %565 = vmatpush.msra.mxu0 0.0
    %566 = vmatpush.msra.mxu0 0.0
    %567 = vmatpush.msra.mxu0 0.0
    %568 = vmatpush.msra.mxu0 0.0
    %569 = vmatpush.msra.mxu0 0.0
    %570 = vmatpush.msra.mxu0 0.0
    %571 = vmatpush.msra.mxu0 0.0
    %572 = vmatpush.msra.mxu0 0.0
    %573 = vmatpush.msra.mxu0 %v550
    %574 = vmatpush.msra.mxu0 %v549
    %575 = vmatpush.msra.mxu0 %v548
    %576 = vmatpush.msra.mxu0 %v547
    %577 = vmatmul.f32.gmra.mxu0 %v556
    %v578 = vpop.f32.mrf.mxu0
    %v579 = vadd.f32 %v553, %v578
    %580 = vmatmul.f32.gmra.mxu0 %v559
    %v581 = vpop.f32.mrf.mxu0
    %v582 = vadd.f32 %v553, %v581
    %583 = vdwg.mxu0
    %v584 = vadd.f32 %v76, %v579
    %v585 = vadd.f32 %v77, %v582
    %586 = vmatpush.msra.mxu0 0.0
    %587 = vmatpush.msra.mxu0 0.0
    %588 = vmatpush.msra.mxu0 0.0
    %589 = vmatpush.msra.mxu0 0.0
    %590 = vmatpush.msra.mxu0 0.0
    %591 = vmatpush.msra.mxu0 0.0
    %592 = vmatpush.msra.mxu0 0.0
    %593 = vmatpush.msra.mxu0 0.0
    %594 = vmatpush.msra.mxu0 0.0
    %595 = vmatpush.msra.mxu0 0.0
    %596 = vmatpush.msra.mxu0 0.0
    %597 = vmatpush.msra.mxu0 0.0
    %598 = vmatpush.msra.mxu0 0.0
    %599 = vmatpush.msra.mxu0 0.0
    %600 = vmatpush.msra.mxu0 %v585
    %601 = vmatpush.msra.mxu0 %v584
    %602 = vmatmul.f32.gmra.mxu0 %v183
    %v603 = vpop.f32.mrf.mxu0
    %v604 = vadd.f32 0.0, %v603
    %605 = vmatmul.f32.gmra.mxu0 %v186
    %v606 = vpop.f32.mrf.mxu0
    %v607 = vadd.f32 0.0, %v606
    %608 = vdwg.mxu0
    %v609 = vsub.f32 %v584, %v604
    %v610 = vsub.f32 %v585, %v607
    %v611 = vld [vmem:[%s7] sm:$0xff]
    %v612 = vld [vmem:[%s7 + $0x8] sm:$0xff]
    %v613 = vld [vmem:[%s7 + $0x10] sm:$0xff]
    %v614 = vld [vmem:[%s7 + $0x18] sm:$0xff]
    %v616 = vsel %vm150, %v609, 0
    %v619 = vsel %vm150, %v610, 0
    %621 = vmatpush.msra.mxu0 0.0
    %622 = vmatpush.msra.mxu0 0.0
    %623 = vmatpush.msra.mxu0 0.0
    %624 = vmatpush.msra.mxu0 0.0
    %625 = vmatpush.msra.mxu0 0.0
    %626 = vmatpush.msra.mxu0 0.0
    %627 = vmatpush.msra.mxu0 0.0
    %628 = vmatpush.msra.mxu0 0.0
    %629 = vmatpush.msra.mxu0 0.0
    %630 = vmatpush.msra.mxu0 0.0
    %631 = vmatpush.msra.mxu0 0.0
    %632 = vmatpush.msra.mxu0 0.0
    %633 = vmatpush.msra.mxu0 %v614
    %634 = vmatpush.msra.mxu0 %v613
    %635 = vmatpush.msra.mxu0 %v612
    %636 = vmatpush.msra.mxu0 %v611
    %637 = vmatmul.f32.gmra.mxu0 %v616
    %v638 = vpop.f32.mrf.mxu0
    %v639 = vadd.f32 0.0, %v638
    %640 = vmatmul.f32.gmra.mxu0 %v619
    %v641 = vpop.f32.mrf.mxu0
    %v642 = vadd.f32 0.0, %v641
    %643 = vdwg.mxu0
    %v644 = vmul.f32 %v639, 0.5
    %v645 = vmul.f32 %v642, 0.5
    %v646 = vmul.f32 %v639, 0.70710677
    %v647 = vmul.f32 %v642, 0.70710677
    %v648 = vmax.f32 %v646, -3.832507
    %v649 = vmax.f32 %v647, -3.832507
    %v650 = vmin.f32 %v648, 3.832507
    %v651 = vmin.f32 %v649, 3.832507
    %v652 = vmul.f32 %v650, %v650
    %v653 = vmul.f32 %v651, %v651
    %v654 = vmul.f32 %v652, 0.00022905065
    %v655 = vmul.f32 %v653, 0.00022905065
    %v656 = vadd.f32 %v654, 0.003408291
    %v657 = vadd.f32 %v655, 0.003408291
    %v658 = vmul.f32 %v656, %v652
    %v659 = vmul.f32 %v657, %v653
    %v660 = vadd.f32 %v658, 0.050955694
    %v661 = vadd.f32 %v659, 0.050955694
    %v662 = vmul.f32 %v660, %v652
    %v663 = vmul.f32 %v661, %v653
    %v664 = vadd.f32 %v662, 0.18520832
    %v665 = vadd.f32 %v663, 0.18520832
    %v666 = vmul.f32 %v664, %v652
    %v667 = vmul.f32 %v665, %v653
    %v668 = vadd.f32 %v666, 1.1283791
    %v669 = vadd.f32 %v667, 1.1283791
    %v670 = vmul.f32 %v652, -1.1791603e-07
    %v671 = vmul.f32 %v653, -1.1791603e-07
    %v672 = vadd.f32 %v670, 2.3547966e-05
    %v673 = vadd.f32 %v671, 2.3547966e-05
    %v674 = vmul.f32 %v672, %v652
    %v675 = vmul.f32 %v673, %v653
    %v676 = vadd.f32 %v674, 0.0010179626
    %v677 = vadd.f32 %v675, 0.0010179626
    %v678 = vmul.f32 %v676, %v652
    %v679 = vmul.f32 %v677, %v653
    %v680 = vadd.f32 %v678, 0.01407047
    %v681 = vadd.f32 %v679, 0.01407047
    %v682 = vmul.f32 %v680, %v652
    %v683 = vmul.f32 %v681, %v653
    %v684 = vadd.f32 %v682, 0.11098505
    %v685 = vadd.f32 %v683, 0.11098505
    %v686 = vmul.f32 %v684, %v652
    %v687 = vmul.f32 %v685, %v653
    %v688 = vadd.f32 %v686, 0.49746925
    %v689 = vadd.f32 %v687, 0.49746925
    %v690 = vmul.f32 %v688, %v652
    %v691 = vmul.f32 %v689, %v653
    %v692 = vadd.f32 %v690, 1.0
    %v693 = vadd.f32 %v691, 1.0
    %v694 = vmul.f32 %v650, %v668
    %v695 = vmul.f32 %v651, %v669
    %v696 = vrcp.pop %v692
    %v697 = vmul.f32 %v692, %v696
    %v698 = vsub.f32 1.0, %v697
    %v699 = vmul.f32 %v696, %v698
    %v700 = vadd.f32 %v696, %v699
    %vm701 = vweird.f32 %v692
    %vm702 = vweird.f32 %v696
    %vm703 = vmor %vm701, %vm702
    %v704 = vsel %vm703, %v696, %v700
    %v705 = vand.u32 2147483647, %v692
    %vm706 = vcmp.eq.f32.partialorder %v705, 8.507059e+37
    %v707 = vand.u32 %v692, 2147483648
    %v708 = vor.u32 1.1754944e-38, %v707
    %v709 = vsel %vm706, %v708, %v704
    %v710 = vmul.f32 %v694, %v709
    %v711 = vrcp.pop %v693
    %v712 = vmul.f32 %v693, %v711
    %v713 = vsub.f32 1.0, %v712
    %v714 = vmul.f32 %v711, %v713
    %v715 = vadd.f32 %v711, %v714
    %vm716 = vweird.f32 %v693
    %vm717 = vweird.f32 %v711
    %vm718 = vmor %vm716, %vm717
    %v719 = vsel %vm718, %v711, %v715
    %v720 = vand.u32 2147483647, %v693
    %vm721 = vcmp.eq.f32.partialorder %v720, 8.507059e+37
    %v722 = vand.u32 %v693, 2147483648
    %v723 = vor.u32 1.1754944e-38, %v722
    %v724 = vsel %vm721, %v723, %v719
    %v725 = vmul.f32 %v695, %v724
    %v726 = vadd.f32 %v710, 1.0
    %v727 = vadd.f32 %v725, 1.0
    %v728 = vmul.f32 %v644, %v726
    %v729 = vmul.f32 %v645, %v727
    %v730 = vld [vmem:[%s8] sm:$0xff]
    %v731 = vld [vmem:[%s8 + $0x8] sm:$0xff]
    %v732 = vld [vmem:[%s8 + $0x10] sm:$0xff]
    %v733 = vld [vmem:[%s8 + $0x18] sm:$0xff]
    %v734 = vld [vmem:[%s8 + $0x20] sm:$0xff]
    %v735 = vld [vmem:[%s8 + $0x28] sm:$0xff]
    %v736 = vld [vmem:[%s8 + $0x30] sm:$0xff]
    %v737 = vld [vmem:[%s8 + $0x38] sm:$0xff]
    %v739 = vsel %vm340, %v728, 0
    %v742 = vsel %vm340, %v729, 0
    %744 = vmatpush.msra.mxu0 0.0
    %745 = vmatpush.msra.mxu0 0.0
    %746 = vmatpush.msra.mxu0 0.0
    %747 = vmatpush.msra.mxu0 0.0
    %748 = vmatpush.msra.mxu0 0.0
    %749 = vmatpush.msra.mxu0 0.0
    %750 = vmatpush.msra.mxu0 0.0
    %751 = vmatpush.msra.mxu0 0.0
    %752 = vmatpush.msra.mxu0 %v737
    %753 = vmatpush.msra.mxu0 %v736
    %754 = vmatpush.msra.mxu0 %v735
    %755 = vmatpush.msra.mxu0 %v734
    %756 = vmatpush.msra.mxu0 %v733
    %757 = vmatpush.msra.mxu0 %v732
    %758 = vmatpush.msra.mxu0 %v731
    %759 = vmatpush.msra.mxu0 %v730
    %760 = vmatmul.f32.gmra.mxu0 %v739
    %v761 = vpop.f32.mrf.mxu0
    %v762 = vadd.f32 0.0, %v761
    %763 = vmatmul.f32.gmra.mxu0 %v742
    %v764 = vpop.f32.mrf.mxu0
    %v765 = vadd.f32 0.0, %v764
    %766 = vdwg.mxu0
    %v767 = vadd.f32 %v609, %v762
    %v768 = vadd.f32 %v610, %v765
    %769 = vmatpush.msra.mxu0 0.0
    %770 = vmatpush.msra.mxu0 0.0
    %771 = vmatpush.msra.mxu0 0.0
    %772 = vmatpush.msra.mxu0 0.0
    %773 = vmatpush.msra.mxu0 0.0
    %774 = vmatpush.msra.mxu0 0.0
    %775 = vmatpush.msra.mxu0 0.0
    %776 = vmatpush.msra.mxu0 0.0
    %777 = vmatpush.msra.mxu0 0.0
    %778 = vmatpush.msra.mxu0 0.0
    %779 = vmatpush.msra.mxu0 0.0
    %780 = vmatpush.msra.mxu0 0.0
    %781 = vmatpush.msra.mxu0 0.0
    %782 = vmatpush.msra.mxu0 0.0
    %783 = vmatpush.msra.mxu0 %v768
    %784 = vmatpush.msra.mxu0 %v767
    %785 = vmatmul.f32.gmra.mxu0 %v183
    %v786 = vpop.f32.mrf.mxu0
    %v787 = vadd.f32 0.0, %v786
    %788 = vmatmul.f32.gmra.mxu0 %v186
    %v789 = vpop.f32.mrf.mxu0
    %v790 = vadd.f32 0.0, %v789
    %791 = vdwg.mxu0
    %v792 = vsub.f32 %v767, %v787
    %v793 = vsub.f32 %v768, %v790
    %v794 = vadd.f32 %v604, %v787
    %v795 = vadd.f32 %v607, %v790
    %v796 = vsel %vm150, %v792, 0.0
    %797 = vadd.xlane.f32.xlu0 %v796
    %v798 = vpop.xlane.xlu0 %797
    %v799 = vsel %vm150, %v793, 0.0
    %800 = vadd.xlane.f32.xlu0 %v799
    %v801 = vpop.xlane.xlu0 %800
    %v802 = vmul.f32 %v798, %v411
    %v803 = vmul.f32 %v801, %v411
    %v804 = vsub.f32 %v792, %v802
    %v805 = vsub.f32 %v793, %v803
    %v806 = vmul.f32 %v804, %v804
    %v807 = vmul.f32 %v805, %v805
    %v808 = vsel %vm150, %v806, 0.0
    %809 = vadd.xlane.f32.xlu0 %v808
    %v810 = vpop.xlane.xlu0 %809
    %v811 = vsel %vm150, %v807, 0.0
    %812 = vadd.xlane.f32.xlu0 %v811
    %v813 = vpop.xlane.xlu0 %812
    %v814 = vmul.f32 %v810, %v411
    %v815 = vmul.f32 %v813, %v411
    %v816 = vadd.f32 %v814, 1e-05
    %v817 = vadd.f32 %v815, 1e-05
    %v818 = vrsqrt.pop %v816
    %v819 = vmul.f32 %v818, %v816
    %v820 = vmul.f32 %v819, %v818
    %v821 = vmul.f32 0.5, %v820
    %v822 = vsub.f32 1.5, %v821
    %v823 = vmul.f32 %v818, %v822
    %vm824 = vweird.f32 %v816
    %vm825 = vweird.f32 %v818
    %vm826 = vmor %vm824, %vm825
    %v827 = vsel %vm826, %v818, %v823
    %v828 = vrsqrt.pop %v817
    %v829 = vmul.f32 %v828, %v817
    %v830 = vmul.f32 %v829, %v828
    %v831 = vmul.f32 0.5, %v830
    %v832 = vsub.f32 1.5, %v831
    %v833 = vmul.f32 %v828, %v832
    %vm834 = vweird.f32 %v817
    %vm835 = vweird.f32 %v828
    %vm836 = vmor %vm834, %vm835
    %v837 = vsel %vm836, %v828, %v833
    %v838 = vmul.f32 %v804, %v827
    %v839 = vmul.f32 %v805, %v837
    %v840 = vld [vmem:[%s9] sm:$0x1]
    %v842 = vperm.slane %v840, 0
    %v844 = vmul.f32 %v838, %v842
    %v845 = vmul.f32 %v839, %v842
    %v846 = vld [vmem:[%s10] sm:$0x1]
    %v848 = vperm.slane %v846, 0
    %v850 = vadd.f32 %v844, %v848
    %v851 = vadd.f32 %v845, %v848
    %v852 = vsel %vm150, %v850, 0.0
    %v853 = vsel %vm150, %v851, 0.0
    %v854 = vadd.f32 %v852, %v853
    %v855 = vrot.slane %v854, 4
    %v856 = vadd.f32 %v854, %v855
    %v857 = vrot.slane %v856, 2
    %v858 = vadd.f32 %v856, %v857
    %v859 = vrot.slane %v858, 1
    %v860 = vadd.f32 %v858, %v859
    %v861 = vmul.f32 %v860, %v477
    %v862 = vsub.f32 %v850, %v861
    %v863 = vsub.f32 %v851, %v861
    %864 = vst.msk [vmem:[%s11 + $0x10] sm:$0xff] %vm150, %v862
    %865 = vst.msk [vmem:[%s11 + $0x18] sm:$0xff] %vm150, %v863
    %866 = vst.msk [vmem:[%s483 + $0x10] sm:$0xff] %vm150, %v794
    %867 = vst.msk [vmem:[%s483 + $0x18] sm:$0xff] %vm150, %v795
    // Predicated region
    $region54: #{_lambda_.19} parent=1 // pred_check
      _
    $region55: #{_lambda_.19} parent=1 // pred_check_branch
      %869 = sbr.rel (0) target = $region57
    $region56: #{_lambda_.19} parent=1 // pred_region
      _
    $region57: #{_lambda_.19} parent=1 // pred_fallthru
      _
    // Predicated region
    $region58: #{_lambda_.19} parent=1 // pred_check
      _
    $region59: #{_lambda_.19} parent=1 // pred_check_branch
      %871 = sbr.rel (0) target = $region61
    $region60: #{_lambda_.19} parent=1 // pred_region
      _
    $region61: #{_lambda_.19} parent=1 // pred_fallthru
      _
    %872 = vsyncpa [#allocation3], 1
    %873 = vsyncpa [#allocation5], 1

</llo_original>
